<compile_context>
chip_gen: v7x
topology: tpu7x:2x2x1
jax: 0.10.0
libtpu: 0.0.40
codegen_flags: <defaults>
</compile_context>

<pallas_src>
import functools

import numpy as np
import jax
import jax.numpy as jnp
from jax.experimental import pallas as pl
from jax.experimental.pallas import tpu as pltpu


_SQRT_HALF = 0.7071067811865476


def _erf_approx(x):
    # Abramowitz & Stegun 7.1.26 rational approximation, |err| <= 1.5e-7.
    # Gives exact-GELU (erf) semantics without relying on an erf lowering.
    a1, a2, a3, a4, a5 = (0.254829592, -0.284496736, 1.421413741,
                          -1.453152027, 1.061405429)
    p = 0.3275911
    ax = jnp.abs(x)
    t = 1.0 / (1.0 + p * ax)
    poly = ((((a5 * t + a4) * t + a3) * t + a2) * t + a1) * t
    y = 1.0 - poly * jnp.exp(-ax * ax)
    return jnp.where(x < 0, -y, y)


def _gelu_exact(x):
    return 0.5 * x * (1.0 + _erf_approx(x * _SQRT_HALF))


# ----------------------------------------------------------------------------
# Kernel 1: fused norm1 + window attention + proj + residual
# ----------------------------------------------------------------------------
def _win_attn_kernel(num_heads, head_dim, scale, eps,
                     x_ref, bias_ref, g1_ref, bt1_ref,
                     wqkv_ref, bqkv_ref, wproj_ref, bproj_ref, o_ref):
    _, TW, N, C = x_ref.shape
    M = TW * N

    xf = x_ref[...].reshape(M, C).astype(jnp.float32)     # raw (rolled) tokens

    # LayerNorm1 (per-token, so applying it in window layout is exact).
    mu = jnp.mean(xf, axis=-1, keepdims=True)
    var = jnp.mean(jnp.square(xf - mu), axis=-1, keepdims=True)
    xn = (xf - mu) * jax.lax.rsqrt(var + eps)
    xn = xn * g1_ref[...] + bt1_ref[...]                   # (1, C) broadcasts

    wqkv = wqkv_ref[...]                                   # (C, 3C)
    wproj = wproj_ref[...]                                 # (C, C)
    bias = bias_ref[...]                                   # (TWb, nH, N, N)

    # Single fused QKV matmul (MXU); heads handled by a small static loop.
    qkv = jnp.dot(xn, wqkv, preferred_element_type=jnp.float32) + bqkv_ref[...]

    attn_out = jnp.zeros((M, C), jnp.float32)
    for h in range(num_heads):
        lo, hi = h * head_dim, (h + 1) * head_dim
        q = (qkv[:, lo:hi] * scale).reshape(TW, N, head_dim)
        k = qkv[:, C + lo:C + hi].reshape(TW, N, head_dim)
        v = qkv[:, 2 * C + lo:2 * C + hi].reshape(TW, N, head_dim)

        logits = jnp.einsum('wnd,wmd->wnm', q, k,
                            preferred_element_type=jnp.float32)
        logits = logits + bias[:, h]                       # rel-pos bias (+ mask)
        logits = logits - jnp.max(logits, axis=-1, keepdims=True)
        p = jnp.exp(logits)
        p = p / jnp.sum(p, axis=-1, keepdims=True)

        oh = jnp.einsum('wnm,wmd->wnd', p, v,
                        preferred_element_type=jnp.float32)
        # proj(concat_h oh) == sum_h oh @ Wproj[rows of head h]  -> no concat.
        attn_out = attn_out + jnp.dot(oh.reshape(M, head_dim), wproj[lo:hi, :],
                                      preferred_element_type=jnp.float32)

    y = xf + attn_out + bproj_ref[...]                     # residual fused
    o_ref[...] = y.reshape(1, TW, N, C).astype(o_ref.dtype)


# ----------------------------------------------------------------------------
# Kernel 2: fused norm2 + MLP (fc1 -> GELU -> fc2) + residual, row-tiled
# ----------------------------------------------------------------------------
def _mlp_kernel(eps, y_ref, g2_ref, bt2_ref, w1_ref, bb1_ref, w2_ref, bb2_ref,
                o_ref):
    y = y_ref[...].astype(jnp.float32)                     # (tm, C)
    mu = jnp.mean(y, axis=-1, keepdims=True)
    var = jnp.mean(jnp.square(y - mu), axis=-1, keepdims=True)
    yn = (y - mu) * jax.lax.rsqrt(var + eps)
    yn = yn * g2_ref[...] + bt2_ref[...]

    h = jnp.dot(yn, w1_ref[...], preferred_element_type=jnp.float32) + bb1_ref[...]
    h = _gelu_exact(h)
    out = jnp.dot(h, w2_ref[...], preferred_element_type=jnp.float32) + bb2_ref[...]
    o_ref[...] = (y + out).astype(o_ref.dtype)


# ----------------------------------------------------------------------------
# Host-side constant precompute (tiny, done once per call)
# ----------------------------------------------------------------------------
def _relative_position_bias(table, ws, num_heads):
    coords = jnp.stack(jnp.meshgrid(jnp.arange(ws), jnp.arange(ws),
                                    indexing="ij"))        # (2, ws, ws)
    coords = coords.reshape(2, -1)                         # (2, N)
    rel = coords[:, :, None] - coords[:, None, :]          # (2, N, N)
    rel = rel.transpose(1, 2, 0)                           # (N, N, 2)
    idx = (rel[..., 0] + ws - 1) * (2 * ws - 1) + (rel[..., 1] + ws - 1)
    N = ws * ws
    bias = table[idx.reshape(-1)].reshape(N, N, num_heads)
    return bias.transpose(2, 0, 1).astype(jnp.float32)     # (nH, N, N)


def _shift_attn_mask(H, W, ws, ss):
    img = np.zeros((H, W), dtype=np.float32)
    cnt = 0
    for hs in (slice(0, -ws), slice(-ws, -ss), slice(-ss, None)):
        for wsl in (slice(0, -ws), slice(-ws, -ss), slice(-ss, None)):
            img[hs, wsl] = cnt
            cnt += 1
    img = jnp.asarray(img)
    N = ws * ws
    mw = img.reshape(H // ws, ws, W // ws, ws).transpose(0, 2, 1, 3)
    mw = mw.reshape(-1, N)                                 # (nW, N)
    am = mw[:, None, :] - mw[:, :, None]                   # (nW, N, N)
    return jnp.where(am != 0, -100.0, 0.0).astype(jnp.float32)


def _window_partition(x, ws):
    # (B, H, W, C) -> (B, nW, ws*ws, C), same raster order as the torch helper.
    B, H, W, C = x.shape
    x = x.reshape(B, H // ws, ws, W // ws, ws, C).transpose(0, 1, 3, 2, 4, 5)
    return x.reshape(B, (H // ws) * (W // ws), ws * ws, C)


def _window_reverse(w, ws, H, W):
    B, _, _, C = w.shape
    x = w.reshape(B, H // ws, W // ws, ws, ws, C).transpose(0, 1, 3, 2, 4, 5)
    return x.reshape(B, H, W, C)


def _pick_window_tile(nW, cap=16):
    if nW <= cap:
        return nW
    for t in range(cap, 0, -1):
        if nW % t == 0:
            return t
    return 1


# ----------------------------------------------------------------------------
# Wrapper: full SwinTransformerBlock forward
# ----------------------------------------------------------------------------
def swin_block_forward(x, params, *, input_resolution, num_heads,
                       window_size=7, shift_size=0, qk_scale=None,
                       window_tile=None, row_tile=512, eps=1e-5):
    B, L, C = x.shape
    H, W = input_resolution
    assert L == H * W, "input feature has wrong size"

    ws, ss = window_size, shift_size
    if min(H, W) <= ws:                 # same adjustment as the module __init__
        ss, ws = 0, min(H, W)
    assert 0 <= ss < ws
    assert H % ws == 0 and W % ws == 0

    nH = num_heads
    hd = C // nH
    scale = qk_scale if qk_scale is not None else hd ** (-0.5)
    N = ws * ws
    nW = (H // ws) * (W // ws)
    assert params["rel_pos_bias_table"].shape == ((2 * ws - 1) ** 2, nH)

    # --- constants: relative position bias (+ shift mask), shape (nWb,nH,N,N)
    rel_bias = _relative_position_bias(params["rel_pos_bias_table"], ws, nH)
    if ss > 0:
        attn_mask = _shift_attn_mask(H, W, ws, ss)          # (nW, N, N)
        bias_full = rel_bias[None, :, :, :] + attn_mask[:, None, :, :]
    else:
        bias_full = rel_bias[None, :, :, :]                 # (1, nH, N, N)

    # --- layout glue: (B, L, C) -> rolled -> windows (B, nW, N, C)
    xi = x.reshape(B, H, W, C)
    if ss > 0:
        xi = jnp.roll(xi, shift=(-ss, -ss), axis=(1, 2))
    xw = _window_partition(xi, ws)                          # (B, nW, N, C)

    # --- matmul-form parameters (PyTorch Linear is y = x @ W.T + b)
    wqkv = params["qkv_weight"].T                           # (C, 3C)
    bqkv = params["qkv_bias"].reshape(1, 3 * C)
    wproj = params["proj_weight"].T                         # (C, C)
    bproj = params["proj_bias"].reshape(1, C)
    g1 = params["norm1_weight"].reshape(1, C)
    bt1 = params["norm1_bias"].reshape(1, C)

    TW = _pick_window_tile(nW) if window_tile is None else window_tile
    assert nW % TW == 0
    grid = (B, nW // TW)

    nWb = bias_full.shape[0]
    TWb = TW if nWb == nW else 1
    if nWb == nW:
        bias_index = lambda b, w: (w, 0, 0, 0)
    else:
        bias_index = lambda b, w: (0, 0, 0, 0)

    attn_flops = int(2 * B * nW * N * (3 * C * C + 2 * nH * N * hd + C * C))
    attn_bytes = int(4 * (2 * B * nW * N * C + bias_full.size + wqkv.size
                          + bqkv.size + wproj.size + bproj.size + 2 * C))

    y_windows = pl.pallas_call(
        functools.partial(_win_attn_kernel, nH, hd, scale, eps),
        out_shape=jax.ShapeDtypeStruct((B, nW, N, C), x.dtype),
        grid_spec=pltpu.PrefetchScalarGridSpec(
            num_scalar_prefetch=0,
            grid=grid,
            in_specs=[
                pl.BlockSpec((1, TW, N, C), lambda b, w: (b, w, 0, 0)),
                pl.BlockSpec((TWb, nH, N, N), bias_index),
                pl.BlockSpec((1, C), lambda b, w: (0, 0)),
                pl.BlockSpec((1, C), lambda b, w: (0, 0)),
                pl.BlockSpec((C, 3 * C), lambda b, w: (0, 0)),
                pl.BlockSpec((1, 3 * C), lambda b, w: (0, 0)),
                pl.BlockSpec((C, C), lambda b, w: (0, 0)),
                pl.BlockSpec((1, C), lambda b, w: (0, 0)),
            ],
            out_specs=pl.BlockSpec((1, TW, N, C), lambda b, w: (b, w, 0, 0)),
        ),
        compiler_params=pltpu.CompilerParams(
            dimension_semantics=("parallel", "parallel")),
        cost_estimate=pl.CostEstimate(
            flops=attn_flops,
            transcendentals=int(B * nW * nH * N * N),
            bytes_accessed=attn_bytes),
    )(xw, bias_full, g1, bt1, wqkv, bqkv, wproj, bproj)

    # --- undo windows / shift; y already contains the attention residual
    y = _window_reverse(y_windows, ws, H, W)
    if ss > 0:
        y = jnp.roll(y, shift=(ss, ss), axis=(1, 2))
    y = y.reshape(B * L, C)

    # --- fused norm2 + MLP + residual, row-tiled
    Ch = params["fc1_weight"].shape[0]
    g2 = params["norm2_weight"].reshape(1, C)
    bt2 = params["norm2_bias"].reshape(1, C)
    w1 = params["fc1_weight"].T                             # (C, Ch)
    bb1 = params["fc1_bias"].reshape(1, Ch)
    w2 = params["fc2_weight"].T                             # (Ch, C)
    bb2 = params["fc2_bias"].reshape(1, C)

    M = B * L
    tm = M if M <= row_tile else row_tile

    out = pl.pallas_call(
        functools.partial(_mlp_kernel, eps),
        out_shape=jax.ShapeDtypeStruct((M, C), x.dtype),
        grid_spec=pltpu.PrefetchScalarGridSpec(
            num_scalar_prefetch=0,
            grid=(pl.cdiv(M, tm),),
            in_specs=[
                pl.BlockSpec((tm, C), lambda i: (i, 0)),
                pl.BlockSpec((1, C), lambda i: (0, 0)),
                pl.BlockSpec((1, C), lambda i: (0, 0)),
                pl.BlockSpec((C, Ch), lambda i: (0, 0)),
                pl.BlockSpec((1, Ch), lambda i: (0, 0)),
                pl.BlockSpec((Ch, C), lambda i: (0, 0)),
                pl.BlockSpec((1, C), lambda i: (0, 0)),
            ],
            out_specs=pl.BlockSpec((tm, C), lambda i: (i, 0)),
        ),
        compiler_params=pltpu.CompilerParams(
            dimension_semantics=("parallel",)),
        cost_estimate=pl.CostEstimate(
            flops=int(4 * M * C * Ch),
            transcendentals=int(M * Ch),
            bytes_accessed=int(4 * (2 * M * C + 2 * C * Ch + Ch + 3 * C))),
    )(y, g2, bt2, w1, bb1, w2, bb2)

    return out.reshape(B, L, C)


# ----------------------------------------------------------------------------
# Pure-JAX reference (mirrors the PyTorch forward exactly, erf GELU)
# ----------------------------------------------------------------------------
def _reference(x, params, *, input_resolution, num_heads, window_size,
               shift_size, qk_scale=None, eps=1e-5):
    B, L, C = x.shape
    H, W = input_resolution
    ws, ss = window_size, shift_size
    if min(H, W) <= ws:
        ss, ws = 0, min(H, W)
    nH = num_heads
    hd = C // nH
    scale = qk_scale if qk_scale is not None else hd ** (-0.5)
    N = ws * ws
    nW = (H // ws) * (W // ws)

    def ln(v, g, b):
        mu = v.mean(-1, keepdims=True)
        var = ((v - mu) ** 2).mean(-1, keepdims=True)
        return (v - mu) / jnp.sqrt(var + eps) * g + b

    shortcut = x
    h = ln(x, params["norm1_weight"], params["norm1_bias"]).reshape(B, H, W, C)
    if ss > 0:
        h = jnp.roll(h, shift=(-ss, -ss), axis=(1, 2))
    hw = _window_partition(h, ws).reshape(B * nW, N, C)

    qkv = hw @ params["qkv_weight"].T + params["qkv_bias"]
    qkv = qkv.reshape(B * nW, N, 3, nH, hd).transpose(2, 0, 3, 1, 4)
    q, k, v = qkv[0] * scale, qkv[1], qkv[2]
    attn = q @ jnp.swapaxes(k, -2, -1)                      # (B*nW, nH, N, N)
    attn = attn + _relative_position_bias(
        params["rel_pos_bias_table"], ws, nH)[None]
    if ss > 0:
        mask = _shift_attn_mask(H, W, ws, ss)
        attn = attn.reshape(B, nW, nH, N, N) + mask[None, :, None]
        attn = attn.reshape(B * nW, nH, N, N)
    attn = jax.nn.softmax(attn, axis=-1)
    o = (attn @ v).transpose(0, 2, 1, 3).reshape(B * nW, N, C)
    o = o @ params["proj_weight"].T + params["proj_bias"]
    o = _window_reverse(o.reshape(B, nW, N, C), ws, H, W)
    if ss > 0:
        o = jnp.roll(o, shift=(ss, ss), axis=(1, 2))
    xx = shortcut + o.reshape(B, L, C)

    hh = ln(xx, params["norm2_weight"], params["norm2_bias"])
    hh = jax.nn.gelu(hh @ params["fc1_weight"].T + params["fc1_bias"],
                     approximate=False)
    hh = hh @ params["fc2_weight"].T + params["fc2_bias"]
    return xx + hh


if __name__ == "__main__":
    # Small shapes consistent with the module: dim=32, res=(8,8), heads=4,
    # window=4, mlp_ratio=4 -> hidden=128, batch=2.
    B = 2
    dim = 32
    input_resolution = (8, 8)
    num_heads = 4
    window_size = 4
    mlp_ratio = 4.0
    L = input_resolution[0] * input_resolution[1]
    hidden = int(dim * mlp_ratio)

    key = jax.random.PRNGKey(0)
    keys = jax.random.split(key, 16)

    def nrm(k, shape, s):
        return jax.random.normal(k, shape, dtype=jnp.float32) * s

    params = {
        "norm1_weight": 1.0 + nrm(keys[0], (dim,), 0.05),
        "norm1_bias": nrm(keys[1], (dim,), 0.05),
        "qkv_weight": nrm(keys[2], (3 * dim, dim), 0.05),
        "qkv_bias": nrm(keys[3], (3 * dim,), 0.1),
        "proj_weight": nrm(keys[4], (dim, dim), 0.05),
        "proj_bias": nrm(keys[5], (dim,), 0.1),
        "rel_pos_bias_table": nrm(keys[6], ((2 * window_size - 1) ** 2,
                                            num_heads), 0.5),
        "norm2_weight": 1.0 + nrm(keys[7], (dim,), 0.05),
        "norm2_bias": nrm(keys[8], (dim,), 0.05),
        "fc1_weight": nrm(keys[9], (hidden, dim), 0.05),
        "fc1_bias": nrm(keys[10], (hidden,), 0.1),
        "fc2_weight": nrm(keys[11], (dim, hidden), 0.05),
        "fc2_bias": nrm(keys[12], (dim,), 0.1),
    }
    x = jax.random.normal(keys[13], (B, L, dim), dtype=jnp.float32)

    # Exercise both the plain (W-MSA) and the shifted (SW-MSA + mask) paths.
    for shift_size in (0, 2):
        out = swin_block_forward(
            x, params, input_resolution=input_resolution, num_heads=num_heads,
            window_size=window_size, shift_size=shift_size)
        out = jax.block_until_ready(out)
        assert out.shape == (B, L, dim)

        with jax.default_matmul_precision("float32"):
            ref = _reference(
                x, params, input_resolution=input_resolution,
                num_heads=num_heads, window_size=window_size,
                shift_size=shift_size)
        err = float(jnp.max(jnp.abs(out - ref)))
        assert jnp.allclose(out, ref, atol=5e-3, rtol=5e-3), (
            f"shift={shift_size} max|diff|={err}")

    print("KERNEL_OK")
</pallas_src>

<mosaic_0001>
module attributes {stable_mosaic.version = 11 : i64} {
  func.func @_win_attn_kernel(%arg0: i32, %arg1: i32, %arg2: memref<1x4x16x32xf32, #tpu.memory_space<vmem>>, %arg3: memref<1x4x16x16xf32, #tpu.memory_space<vmem>>, %arg4: memref<1x32xf32, #tpu.memory_space<vmem>>, %arg5: memref<1x32xf32, #tpu.memory_space<vmem>>, %arg6: memref<32x96xf32, #tpu.memory_space<vmem>>, %arg7: memref<1x96xf32, #tpu.memory_space<vmem>>, %arg8: memref<32x32xf32, #tpu.memory_space<vmem>>, %arg9: memref<1x32xf32, #tpu.memory_space<vmem>>, %arg10: memref<1x4x16x32xf32, #tpu.memory_space<vmem>>) attributes {dimension_semantics = [#tpu.dimension_semantics<parallel>, #tpu.dimension_semantics<parallel>], iteration_bounds = array<i64: 2, 1>, scalar_prefetch = 0 : i64, scratch_operands = 0 : i64, tpu.core_type = #tpu.core_type<tc>, window_params = [{transform_indices = @transform_0, window_bounds = array<i64: 1, 4, 16, 32>}, {pipeline_mode = #tpu.pipeline_mode<synchronous>, transform_indices = @transform_1, window_bounds = array<i64: 1, 4, 16, 16>}, {pipeline_mode = #tpu.pipeline_mode<synchronous>, transform_indices = @transform_2, window_bounds = array<i64: 1, 32>}, {pipeline_mode = #tpu.pipeline_mode<synchronous>, transform_indices = @transform_3, window_bounds = array<i64: 1, 32>}, {pipeline_mode = #tpu.pipeline_mode<synchronous>, transform_indices = @transform_4, window_bounds = array<i64: 32, 96>}, {pipeline_mode = #tpu.pipeline_mode<synchronous>, transform_indices = @transform_5, window_bounds = array<i64: 1, 96>}, {pipeline_mode = #tpu.pipeline_mode<synchronous>, transform_indices = @transform_6, window_bounds = array<i64: 32, 32>}, {pipeline_mode = #tpu.pipeline_mode<synchronous>, transform_indices = @transform_7, window_bounds = array<i64: 1, 32>}, {transform_indices = @transform_8, window_bounds = array<i64: 1, 4, 16, 32>}]} {
    %c0 = arith.constant 0 : index
    %c0_0 = arith.constant 0 : index
    %c0_1 = arith.constant 0 : index
    %c0_2 = arith.constant 0 : index
    %0 = vector.load %arg2[%c0, %c0_0, %c0_1, %c0_2] : memref<1x4x16x32xf32, #tpu.memory_space<vmem>>, vector<1x4x16x32xf32>
    %1 = vector.shape_cast %0 : vector<1x4x16x32xf32> to vector<64x32xf32>
    %cst = arith.constant dense<0.000000e+00> : vector<64xf32>
    %2 = vector.multi_reduction <add>, %1, %cst [1] : vector<64x32xf32> to vector<64xf32>
    %3 = vector.shape_cast %2 : vector<64xf32> to vector<64x1xf32>
    %cst_3 = arith.constant 3.200000e+01 : f32
    %4 = vector.broadcast %cst_3 : f32 to vector<64x1xf32>
    %5 = arith.divf %3, %4 : vector<64x1xf32>
    %6 = vector.broadcast %5 : vector<64x1xf32> to vector<64x32xf32>
    %7 = arith.subf %1, %6 : vector<64x32xf32>
    %8 = arith.mulf %7, %7 : vector<64x32xf32>
    %cst_4 = arith.constant dense<0.000000e+00> : vector<64xf32>
    %9 = vector.multi_reduction <add>, %8, %cst_4 [1] : vector<64x32xf32> to vector<64xf32>
    %10 = vector.shape_cast %9 : vector<64xf32> to vector<64x1xf32>
    %cst_5 = arith.constant 3.200000e+01 : f32
    %11 = vector.broadcast %cst_5 : f32 to vector<64x1xf32>
    %12 = arith.divf %10, %11 : vector<64x1xf32>
    %13 = vector.broadcast %5 : vector<64x1xf32> to vector<64x32xf32>
    %14 = arith.subf %1, %13 : vector<64x32xf32>
    %cst_6 = arith.constant 9.99999974E-6 : f32
    %15 = vector.broadcast %cst_6 : f32 to vector<64x1xf32>
    %16 = arith.addf %12, %15 : vector<64x1xf32>
    %17 = math.rsqrt %16 : vector<64x1xf32>
    %18 = vector.broadcast %17 : vector<64x1xf32> to vector<64x32xf32>
    %19 = arith.mulf %14, %18 : vector<64x32xf32>
    %c0_7 = arith.constant 0 : index
    %c0_8 = arith.constant 0 : index
    %20 = vector.load %arg4[%c0_7, %c0_8] : memref<1x32xf32, #tpu.memory_space<vmem>>, vector<1x32xf32>
    %21 = vector.broadcast %20 : vector<1x32xf32> to vector<64x32xf32>
    %22 = arith.mulf %19, %21 : vector<64x32xf32>
    %c0_9 = arith.constant 0 : index
    %c0_10 = arith.constant 0 : index
    %23 = vector.load %arg5[%c0_9, %c0_10] : memref<1x32xf32, #tpu.memory_space<vmem>>, vector<1x32xf32>
    %24 = vector.broadcast %23 : vector<1x32xf32> to vector<64x32xf32>
    %25 = arith.addf %22, %24 : vector<64x32xf32>
    %c0_11 = arith.constant 0 : index
    %c0_12 = arith.constant 0 : index
    %26 = vector.load %arg6[%c0_11, %c0_12] : memref<32x96xf32, #tpu.memory_space<vmem>>, vector<32x96xf32>
    %c0_13 = arith.constant 0 : index
    %c0_14 = arith.constant 0 : index
    %27 = vector.load %arg8[%c0_13, %c0_14] : memref<32x32xf32, #tpu.memory_space<vmem>>, vector<32x32xf32>
    %c0_15 = arith.constant 0 : index
    %c0_16 = arith.constant 0 : index
    %c0_17 = arith.constant 0 : index
    %c0_18 = arith.constant 0 : index
    %28 = vector.load %arg3[%c0_15, %c0_16, %c0_17, %c0_18] : memref<1x4x16x16xf32, #tpu.memory_space<vmem>>, vector<1x4x16x16xf32>
    %cst_19 = arith.constant dense<0.000000e+00> : vector<64x96xf32>
    %29 = tpu.matmul %25, %26, %cst_19 {dimension_numbers = #tpu.dot_dimension_numbers<[1], [0], [0], [1], [0, 0, 1, 1], [], []>} : vector<64x32xf32>, vector<32x96xf32>, vector<64x96xf32> -> vector<64x96xf32>
    %c0_20 = arith.constant 0 : index
    %c0_21 = arith.constant 0 : index
    %30 = vector.load %arg7[%c0_20, %c0_21] : memref<1x96xf32, #tpu.memory_space<vmem>>, vector<1x96xf32>
    %31 = vector.broadcast %30 : vector<1x96xf32> to vector<64x96xf32>
    %32 = arith.addf %29, %31 : vector<64x96xf32>
    %cst_22 = arith.constant 0.000000e+00 : f32
    %33 = vector.broadcast %cst_22 : f32 to vector<64x32xf32>
    %34 = vector.extract_strided_slice %32 {offsets = [0, 0], sizes = [64, 8], strides = [1, 1]} : vector<64x96xf32> to vector<64x8xf32>
    %cst_23 = arith.constant 0.353553385 : f32
    %35 = vector.broadcast %cst_23 : f32 to vector<64x8xf32>
    %36 = arith.mulf %34, %35 : vector<64x8xf32>
    %37 = vector.shape_cast %36 : vector<64x8xf32> to vector<4x16x8xf32>
    %38 = vector.extract_strided_slice %32 {offsets = [0, 32], sizes = [64, 8], strides = [1, 1]} : vector<64x96xf32> to vector<64x8xf32>
    %39 = vector.shape_cast %38 : vector<64x8xf32> to vector<4x16x8xf32>
    %40 = vector.extract_strided_slice %32 {offsets = [0, 64], sizes = [64, 8], strides = [1, 1]} : vector<64x96xf32> to vector<64x8xf32>
    %41 = vector.shape_cast %40 : vector<64x8xf32> to vector<4x16x8xf32>
    "tpu.trace_start"() <{level = 10 : i32, message = "wnd,wmd->wnm"}> : () -> ()
    %cst_24 = arith.constant dense<0.000000e+00> : vector<4x16x16xf32>
    %42 = tpu.matmul %37, %39, %cst_24 {dimension_numbers = #tpu.dot_dimension_numbers<[2], [2], [1], [1], [0, 0, 0, 1, 1, 1], [0], [0]>} : vector<4x16x8xf32>, vector<4x16x8xf32>, vector<4x16x16xf32> -> vector<4x16x16xf32>
    "tpu.trace_stop"() : () -> ()
    %43 = vector.extract_strided_slice %28 {offsets = [0, 0, 0, 0], sizes = [1, 1, 16, 16], strides = [1, 1, 1, 1]} : vector<1x4x16x16xf32> to vector<1x1x16x16xf32>
    %44 = vector.shape_cast %43 : vector<1x1x16x16xf32> to vector<1x16x16xf32>
    %45 = vector.broadcast %44 : vector<1x16x16xf32> to vector<4x16x16xf32>
    %46 = arith.addf %42, %45 : vector<4x16x16xf32>
    %cst_25 = arith.constant dense<0xFF800000> : vector<4x16xf32>
    %47 = vector.multi_reduction <maximumf>, %46, %cst_25 [2] : vector<4x16x16xf32> to vector<4x16xf32>
    %48 = vector.shape_cast %47 : vector<4x16xf32> to vector<4x16x1xf32>
    %49 = vector.broadcast %48 : vector<4x16x1xf32> to vector<4x16x16xf32>
    %50 = arith.subf %46, %49 : vector<4x16x16xf32>
    %51 = math.exp %50 : vector<4x16x16xf32>
    %cst_26 = arith.constant dense<0.000000e+00> : vector<4x16xf32>
    %52 = vector.multi_reduction <add>, %51, %cst_26 [2] : vector<4x16x16xf32> to vector<4x16xf32>
    %53 = vector.shape_cast %52 : vector<4x16xf32> to vector<4x16x1xf32>
    %54 = vector.broadcast %53 : vector<4x16x1xf32> to vector<4x16x16xf32>
    %55 = arith.divf %51, %54 : vector<4x16x16xf32>
    "tpu.trace_start"() <{level = 10 : i32, message = "wnm,wmd->wnd"}> : () -> ()
    %cst_27 = arith.constant dense<0.000000e+00> : vector<4x16x8xf32>
    %56 = tpu.matmul %55, %41, %cst_27 {dimension_numbers = #tpu.dot_dimension_numbers<[2], [1], [1], [2], [0, 0, 0, 1, 1, 2], [0], [0]>} : vector<4x16x16xf32>, vector<4x16x8xf32>, vector<4x16x8xf32> -> vector<4x16x8xf32>
    "tpu.trace_stop"() : () -> ()
    %57 = vector.shape_cast %56 : vector<4x16x8xf32> to vector<64x8xf32>
    %58 = vector.extract_strided_slice %27 {offsets = [0, 0], sizes = [8, 32], strides = [1, 1]} : vector<32x32xf32> to vector<8x32xf32>
    %cst_28 = arith.constant dense<0.000000e+00> : vector<64x32xf32>
    %59 = tpu.matmul %57, %58, %cst_28 {dimension_numbers = #tpu.dot_dimension_numbers<[1], [0], [0], [1], [0, 0, 1, 1], [], []>} : vector<64x8xf32>, vector<8x32xf32>, vector<64x32xf32> -> vector<64x32xf32>
    %60 = arith.addf %33, %59 : vector<64x32xf32>
    %61 = vector.extract_strided_slice %32 {offsets = [0, 8], sizes = [64, 8], strides = [1, 1]} : vector<64x96xf32> to vector<64x8xf32>
    %cst_29 = arith.constant 0.353553385 : f32
    %62 = vector.broadcast %cst_29 : f32 to vector<64x8xf32>
    %63 = arith.mulf %61, %62 : vector<64x8xf32>
    %64 = vector.shape_cast %63 : vector<64x8xf32> to vector<4x16x8xf32>
    %65 = vector.extract_strided_slice %32 {offsets = [0, 40], sizes = [64, 8], strides = [1, 1]} : vector<64x96xf32> to vector<64x8xf32>
    %66 = vector.shape_cast %65 : vector<64x8xf32> to vector<4x16x8xf32>
    %67 = vector.extract_strided_slice %32 {offsets = [0, 72], sizes = [64, 8], strides = [1, 1]} : vector<64x96xf32> to vector<64x8xf32>
    %68 = vector.shape_cast %67 : vector<64x8xf32> to vector<4x16x8xf32>
    "tpu.trace_start"() <{level = 10 : i32, message = "wnd,wmd->wnm"}> : () -> ()
    %cst_30 = arith.constant dense<0.000000e+00> : vector<4x16x16xf32>
    %69 = tpu.matmul %64, %66, %cst_30 {dimension_numbers = #tpu.dot_dimension_numbers<[2], [2], [1], [1], [0, 0, 0, 1, 1, 1], [0], [0]>} : vector<4x16x8xf32>, vector<4x16x8xf32>, vector<4x16x16xf32> -> vector<4x16x16xf32>
    "tpu.trace_stop"() : () -> ()
    %70 = vector.extract_strided_slice %28 {offsets = [0, 1, 0, 0], sizes = [1, 1, 16, 16], strides = [1, 1, 1, 1]} : vector<1x4x16x16xf32> to vector<1x1x16x16xf32>
    %71 = vector.shape_cast %70 : vector<1x1x16x16xf32> to vector<1x16x16xf32>
    %72 = vector.broadcast %71 : vector<1x16x16xf32> to vector<4x16x16xf32>
    %73 = arith.addf %69, %72 : vector<4x16x16xf32>
    %cst_31 = arith.constant dense<0xFF800000> : vector<4x16xf32>
    %74 = vector.multi_reduction <maximumf>, %73, %cst_31 [2] : vector<4x16x16xf32> to vector<4x16xf32>
    %75 = vector.shape_cast %74 : vector<4x16xf32> to vector<4x16x1xf32>
    %76 = vector.broadcast %75 : vector<4x16x1xf32> to vector<4x16x16xf32>
    %77 = arith.subf %73, %76 : vector<4x16x16xf32>
    %78 = math.exp %77 : vector<4x16x16xf32>
    %cst_32 = arith.constant dense<0.000000e+00> : vector<4x16xf32>
    %79 = vector.multi_reduction <add>, %78, %cst_32 [2] : vector<4x16x16xf32> to vector<4x16xf32>
    %80 = vector.shape_cast %79 : vector<4x16xf32> to vector<4x16x1xf32>
    %81 = vector.broadcast %80 : vector<4x16x1xf32> to vector<4x16x16xf32>
    %82 = arith.divf %78, %81 : vector<4x16x16xf32>
    "tpu.trace_start"() <{level = 10 : i32, message = "wnm,wmd->wnd"}> : () -> ()
    %cst_33 = arith.constant dense<0.000000e+00> : vector<4x16x8xf32>
    %83 = tpu.matmul %82, %68, %cst_33 {dimension_numbers = #tpu.dot_dimension_numbers<[2], [1], [1], [2], [0, 0, 0, 1, 1, 2], [0], [0]>} : vector<4x16x16xf32>, vector<4x16x8xf32>, vector<4x16x8xf32> -> vector<4x16x8xf32>
    "tpu.trace_stop"() : () -> ()
    %84 = vector.shape_cast %83 : vector<4x16x8xf32> to vector<64x8xf32>
    %85 = vector.extract_strided_slice %27 {offsets = [8, 0], sizes = [8, 32], strides = [1, 1]} : vector<32x32xf32> to vector<8x32xf32>
    %cst_34 = arith.constant dense<0.000000e+00> : vector<64x32xf32>
    %86 = tpu.matmul %84, %85, %cst_34 {dimension_numbers = #tpu.dot_dimension_numbers<[1], [0], [0], [1], [0, 0, 1, 1], [], []>} : vector<64x8xf32>, vector<8x32xf32>, vector<64x32xf32> -> vector<64x32xf32>
    %87 = arith.addf %60, %86 : vector<64x32xf32>
    %88 = vector.extract_strided_slice %32 {offsets = [0, 16], sizes = [64, 8], strides = [1, 1]} : vector<64x96xf32> to vector<64x8xf32>
    %cst_35 = arith.constant 0.353553385 : f32
    %89 = vector.broadcast %cst_35 : f32 to vector<64x8xf32>
    %90 = arith.mulf %88, %89 : vector<64x8xf32>
    %91 = vector.shape_cast %90 : vector<64x8xf32> to vector<4x16x8xf32>
    %92 = vector.extract_strided_slice %32 {offsets = [0, 48], sizes = [64, 8], strides = [1, 1]} : vector<64x96xf32> to vector<64x8xf32>
    %93 = vector.shape_cast %92 : vector<64x8xf32> to vector<4x16x8xf32>
    %94 = vector.extract_strided_slice %32 {offsets = [0, 80], sizes = [64, 8], strides = [1, 1]} : vector<64x96xf32> to vector<64x8xf32>
    %95 = vector.shape_cast %94 : vector<64x8xf32> to vector<4x16x8xf32>
    "tpu.trace_start"() <{level = 10 : i32, message = "wnd,wmd->wnm"}> : () -> ()
    %cst_36 = arith.constant dense<0.000000e+00> : vector<4x16x16xf32>
    %96 = tpu.matmul %91, %93, %cst_36 {dimension_numbers = #tpu.dot_dimension_numbers<[2], [2], [1], [1], [0, 0, 0, 1, 1, 1], [0], [0]>} : vector<4x16x8xf32>, vector<4x16x8xf32>, vector<4x16x16xf32> -> vector<4x16x16xf32>
    "tpu.trace_stop"() : () -> ()
    %97 = vector.extract_strided_slice %28 {offsets = [0, 2, 0, 0], sizes = [1, 1, 16, 16], strides = [1, 1, 1, 1]} : vector<1x4x16x16xf32> to vector<1x1x16x16xf32>
    %98 = vector.shape_cast %97 : vector<1x1x16x16xf32> to vector<1x16x16xf32>
    %99 = vector.broadcast %98 : vector<1x16x16xf32> to vector<4x16x16xf32>
    %100 = arith.addf %96, %99 : vector<4x16x16xf32>
    %cst_37 = arith.constant dense<0xFF800000> : vector<4x16xf32>
    %101 = vector.multi_reduction <maximumf>, %100, %cst_37 [2] : vector<4x16x16xf32> to vector<4x16xf32>
    %102 = vector.shape_cast %101 : vector<4x16xf32> to vector<4x16x1xf32>
    %103 = vector.broadcast %102 : vector<4x16x1xf32> to vector<4x16x16xf32>
    %104 = arith.subf %100, %103 : vector<4x16x16xf32>
    %105 = math.exp %104 : vector<4x16x16xf32>
    %cst_38 = arith.constant dense<0.000000e+00> : vector<4x16xf32>
    %106 = vector.multi_reduction <add>, %105, %cst_38 [2] : vector<4x16x16xf32> to vector<4x16xf32>
    %107 = vector.shape_cast %106 : vector<4x16xf32> to vector<4x16x1xf32>
    %108 = vector.broadcast %107 : vector<4x16x1xf32> to vector<4x16x16xf32>
    %109 = arith.divf %105, %108 : vector<4x16x16xf32>
    "tpu.trace_start"() <{level = 10 : i32, message = "wnm,wmd->wnd"}> : () -> ()
    %cst_39 = arith.constant dense<0.000000e+00> : vector<4x16x8xf32>
    %110 = tpu.matmul %109, %95, %cst_39 {dimension_numbers = #tpu.dot_dimension_numbers<[2], [1], [1], [2], [0, 0, 0, 1, 1, 2], [0], [0]>} : vector<4x16x16xf32>, vector<4x16x8xf32>, vector<4x16x8xf32> -> vector<4x16x8xf32>
    "tpu.trace_stop"() : () -> ()
    %111 = vector.shape_cast %110 : vector<4x16x8xf32> to vector<64x8xf32>
    %112 = vector.extract_strided_slice %27 {offsets = [16, 0], sizes = [8, 32], strides = [1, 1]} : vector<32x32xf32> to vector<8x32xf32>
    %cst_40 = arith.constant dense<0.000000e+00> : vector<64x32xf32>
    %113 = tpu.matmul %111, %112, %cst_40 {dimension_numbers = #tpu.dot_dimension_numbers<[1], [0], [0], [1], [0, 0, 1, 1], [], []>} : vector<64x8xf32>, vector<8x32xf32>, vector<64x32xf32> -> vector<64x32xf32>
    %114 = arith.addf %87, %113 : vector<64x32xf32>
    %115 = vector.extract_strided_slice %32 {offsets = [0, 24], sizes = [64, 8], strides = [1, 1]} : vector<64x96xf32> to vector<64x8xf32>
    %cst_41 = arith.constant 0.353553385 : f32
    %116 = vector.broadcast %cst_41 : f32 to vector<64x8xf32>
    %117 = arith.mulf %115, %116 : vector<64x8xf32>
    %118 = vector.shape_cast %117 : vector<64x8xf32> to vector<4x16x8xf32>
    %119 = vector.extract_strided_slice %32 {offsets = [0, 56], sizes = [64, 8], strides = [1, 1]} : vector<64x96xf32> to vector<64x8xf32>
    %120 = vector.shape_cast %119 : vector<64x8xf32> to vector<4x16x8xf32>
    %121 = vector.extract_strided_slice %32 {offsets = [0, 88], sizes = [64, 8], strides = [1, 1]} : vector<64x96xf32> to vector<64x8xf32>
    %122 = vector.shape_cast %121 : vector<64x8xf32> to vector<4x16x8xf32>
    "tpu.trace_start"() <{level = 10 : i32, message = "wnd,wmd->wnm"}> : () -> ()
    %cst_42 = arith.constant dense<0.000000e+00> : vector<4x16x16xf32>
    %123 = tpu.matmul %118, %120, %cst_42 {dimension_numbers = #tpu.dot_dimension_numbers<[2], [2], [1], [1], [0, 0, 0, 1, 1, 1], [0], [0]>} : vector<4x16x8xf32>, vector<4x16x8xf32>, vector<4x16x16xf32> -> vector<4x16x16xf32>
    "tpu.trace_stop"() : () -> ()
    %124 = vector.extract_strided_slice %28 {offsets = [0, 3, 0, 0], sizes = [1, 1, 16, 16], strides = [1, 1, 1, 1]} : vector<1x4x16x16xf32> to vector<1x1x16x16xf32>
    %125 = vector.shape_cast %124 : vector<1x1x16x16xf32> to vector<1x16x16xf32>
    %126 = vector.broadcast %125 : vector<1x16x16xf32> to vector<4x16x16xf32>
    %127 = arith.addf %123, %126 : vector<4x16x16xf32>
    %cst_43 = arith.constant dense<0xFF800000> : vector<4x16xf32>
    %128 = vector.multi_reduction <maximumf>, %127, %cst_43 [2] : vector<4x16x16xf32> to vector<4x16xf32>
    %129 = vector.shape_cast %128 : vector<4x16xf32> to vector<4x16x1xf32>
    %130 = vector.broadcast %129 : vector<4x16x1xf32> to vector<4x16x16xf32>
    %131 = arith.subf %127, %130 : vector<4x16x16xf32>
    %132 = math.exp %131 : vector<4x16x16xf32>
    %cst_44 = arith.constant dense<0.000000e+00> : vector<4x16xf32>
    %133 = vector.multi_reduction <add>, %132, %cst_44 [2] : vector<4x16x16xf32> to vector<4x16xf32>
    %134 = vector.shape_cast %133 : vector<4x16xf32> to vector<4x16x1xf32>
    %135 = vector.broadcast %134 : vector<4x16x1xf32> to vector<4x16x16xf32>
    %136 = arith.divf %132, %135 : vector<4x16x16xf32>
    "tpu.trace_start"() <{level = 10 : i32, message = "wnm,wmd->wnd"}> : () -> ()
    %cst_45 = arith.constant dense<0.000000e+00> : vector<4x16x8xf32>
    %137 = tpu.matmul %136, %122, %cst_45 {dimension_numbers = #tpu.dot_dimension_numbers<[2], [1], [1], [2], [0, 0, 0, 1, 1, 2], [0], [0]>} : vector<4x16x16xf32>, vector<4x16x8xf32>, vector<4x16x8xf32> -> vector<4x16x8xf32>
    "tpu.trace_stop"() : () -> ()
    %138 = vector.shape_cast %137 : vector<4x16x8xf32> to vector<64x8xf32>
    %139 = vector.extract_strided_slice %27 {offsets = [24, 0], sizes = [8, 32], strides = [1, 1]} : vector<32x32xf32> to vector<8x32xf32>
    %cst_46 = arith.constant dense<0.000000e+00> : vector<64x32xf32>
    %140 = tpu.matmul %138, %139, %cst_46 {dimension_numbers = #tpu.dot_dimension_numbers<[1], [0], [0], [1], [0, 0, 1, 1], [], []>} : vector<64x8xf32>, vector<8x32xf32>, vector<64x32xf32> -> vector<64x32xf32>
    %141 = arith.addf %114, %140 : vector<64x32xf32>
    %142 = arith.addf %1, %141 : vector<64x32xf32>
    %c0_47 = arith.constant 0 : index
    %c0_48 = arith.constant 0 : index
    %143 = vector.load %arg9[%c0_47, %c0_48] : memref<1x32xf32, #tpu.memory_space<vmem>>, vector<1x32xf32>
    %144 = vector.broadcast %143 : vector<1x32xf32> to vector<64x32xf32>
    %145 = arith.addf %142, %144 : vector<64x32xf32>
    %146 = vector.shape_cast %145 : vector<64x32xf32> to vector<1x4x16x32xf32>
    %c0_49 = arith.constant 0 : index
    %c0_50 = arith.constant 0 : index
    %c0_51 = arith.constant 0 : index
    %c0_52 = arith.constant 0 : index
    %147 = vector.load %arg10[%c0_49, %c0_50, %c0_51, %c0_52] : memref<1x4x16x32xf32, #tpu.memory_space<vmem>>, vector<1x4x16x32xf32>
    tpu.vector_store %arg10[%c0_49, %c0_50, %c0_51, %c0_52], %146 {strides = array<i32>} : memref<1x4x16x32xf32, #tpu.memory_space<vmem>>, vector<1x4x16x32xf32>,
    return
  }
  func.func @transform_0(%arg0: i32, %arg1: i32) -> (i32, i32, i32, i32) {
    %c0_i32 = arith.constant 0 : i32
    %c0_i32_0 = arith.constant 0 : i32
    %c0_i32_1 = arith.constant 0 : i32
    return %arg0, %arg1, %c0_i32, %c0_i32_0 : i32, i32, i32, i32
  }
  func.func @transform_1(%arg0: i32, %arg1: i32) -> (i32, i32, i32, i32) {
    %c0_i32 = arith.constant 0 : i32
    %c0_i32_0 = arith.constant 0 : i32
    %c0_i32_1 = arith.constant 0 : i32
    %c0_i32_2 = arith.constant 0 : i32
    %c0_i32_3 = arith.constant 0 : i32
    return %c0_i32, %c0_i32_0, %c0_i32_1, %c0_i32_2 : i32, i32, i32, i32
  }
  func.func @transform_2(%arg0: i32, %arg1: i32) -> (i32, i32) {
    %c0_i32 = arith.constant 0 : i32
    %c0_i32_0 = arith.constant 0 : i32
    %c0_i32_1 = arith.constant 0 : i32
    return %c0_i32, %c0_i32_0 : i32, i32
  }
  func.func @transform_3(%arg0: i32, %arg1: i32) -> (i32, i32) {
    %c0_i32 = arith.constant 0 : i32
    %c0_i32_0 = arith.constant 0 : i32
    %c0_i32_1 = arith.constant 0 : i32
    return %c0_i32, %c0_i32_0 : i32, i32
  }
  func.func @transform_4(%arg0: i32, %arg1: i32) -> (i32, i32) {
    %c0_i32 = arith.constant 0 : i32
    %c0_i32_0 = arith.constant 0 : i32
    %c0_i32_1 = arith.constant 0 : i32
    return %c0_i32, %c0_i32_0 : i32, i32
  }
  func.func @transform_5(%arg0: i32, %arg1: i32) -> (i32, i32) {
    %c0_i32 = arith.constant 0 : i32
    %c0_i32_0 = arith.constant 0 : i32
    %c0_i32_1 = arith.constant 0 : i32
    return %c0_i32, %c0_i32_0 : i32, i32
  }
  func.func @transform_6(%arg0: i32, %arg1: i32) -> (i32, i32) {
    %c0_i32 = arith.constant 0 : i32
    %c0_i32_0 = arith.constant 0 : i32
    %c0_i32_1 = arith.constant 0 : i32
    return %c0_i32, %c0_i32_0 : i32, i32
  }
  func.func @transform_7(%arg0: i32, %arg1: i32) -> (i32, i32) {
    %c0_i32 = arith.constant 0 : i32
    %c0_i32_0 = arith.constant 0 : i32
    %c0_i32_1 = arith.constant 0 : i32
    return %c0_i32, %c0_i32_0 : i32, i32
  }
  func.func @transform_8(%arg0: i32, %arg1: i32) -> (i32, i32, i32, i32) {
    %c0_i32 = arith.constant 0 : i32
    %c0_i32_0 = arith.constant 0 : i32
    %c0_i32_1 = arith.constant 0 : i32
    return %arg0, %arg1, %c0_i32, %c0_i32_0 : i32, i32, i32, i32
  }
}

</mosaic_0001>

<llo_original>
// kernel: tpu_custom_call.1
$region0: #{tpu_custom_call.1}
  #allocation0 [shape = 'u32[]', space=smem, size = 0x4, offset = 0x4, fixed_abs, tag = 'smem constant byte address 0x4 - core index']
  #allocation1 [shape = 'u32[144,128]{1,0:T(1,128)}', space=vmem, size = 0x12000, scoped, tag = 'internal scratch']
  %s0 = inlined_call_operand.hbm [shape: f32[2,4,16,32], index: 0, kind: input, shape index: {}]
  %s1 = inlined_call_operand.hbm [shape: f32[1,4,16,16], index: 1, kind: input, shape index: {}]
  %s2 = inlined_call_operand.vmem [shape: f32[1,32], index: 2, kind: input, shape index: {}]
  %s3 = inlined_call_operand.vmem [shape: f32[1,32], index: 3, kind: input, shape index: {}]
  %s4 = inlined_call_operand.hbm [shape: f32[32,96], index: 4, kind: input, shape index: {}]
  %s5 = inlined_call_operand.vmem [shape: f32[1,96], index: 5, kind: input, shape index: {}]
  %s6 = inlined_call_operand.hbm [shape: f32[32,32], index: 6, kind: input, shape index: {}]
  %s7 = inlined_call_operand.vmem [shape: f32[1,32], index: 7, kind: input, shape index: {}]
  %s8 = inlined_call_operand.hbm [shape: f32[2,4,16,32], index: 8, kind: output, shape index: {}]
  %s9 = sld [smem:[#allocation0]]
  $region81: #{tpu_custom_call.1} parent=0
    _
  %s11 = ssub.s32 1, %s9
  %s12 = scalar_select 0, %s11, %s9
  $region1: #{tpu_custom_call.1} parent=0
    #allocation2 [shape = 'u8[65536]{0}', space=vmem, size = 0x10000, scoped, tag = 'input window, operand 0']
    #allocation3 [shape = 's32[2]{0}', space=sflag, size = 0x8, scoped, tag = 'scoped memory for tpu_custom_call.1']
    #allocation4 [shape = 's32[2]{0}', space=sflag, size = 0x8, scoped, tag = 'scoped memory for tpu_custom_call.1']
    #allocation5 [shape = 'u8[32768]{0}', space=vmem, size = 0x8000, scoped, tag = 'input window, operand 1, single buffered']
    #allocation6 [shape = 's32[1]{0}', space=sflag, size = 0x4, scoped, tag = 'scoped memory for tpu_custom_call.1']
    #allocation7 [shape = 'u8[16384]{0}', space=vmem, size = 0x4000, scoped, tag = 'input window, operand 4, single buffered']
    #allocation8 [shape = 'u8[16384]{0}', space=vmem, size = 0x4000, scoped, tag = 'input window, operand 6, single buffered']
    #allocation9 [shape = 's32[1]{0}', space=sflag, size = 0x4, scoped, tag = 'scoped memory for tpu_custom_call.1']
    #allocation10 [shape = 'u8[65536]{0}', space=vmem, size = 0x10000, scoped, tag = 'output window, operand 0']
    %13 = vsyncpa [#allocation3], 0
    %s14 = scalar_lea.sflag [#allocation3], 1
    %15 = vsyncpa %s14, 0
    %16 = vsyncpa [#allocation6], 0
    %17 = vsyncpa [#allocation9], 0
    %18 = vsyncpa [#allocation4], 0
    %s19 = scalar_lea.sflag [#allocation4], 1
    %20 = vsyncpa %s19, 0
    loop: start=0, step=1, limit=4
    $region2: #{tpu_custom_call.1} parent=1 // loop_pre_header
      _
    $region3: #{tpu_custom_call.1} parent=1 // loop_header
      %s22 = sphi 0, %s26
      %p23 = scmp.ge.s32.totalorder %s22, 4
      %s29 = sphi 0, %s41
      %s30 = sphi 0, %s37
      %s31 = sphi 0, %s29
      %s32 = sphi 0, %s30
      %s33 = sphi 0, %s31
      %s34 = sphi 0, %s32
      %s46 = sphi 0, %s48
      %s49 = sphi 0, %s46
      %s50 = sphi 0, %s49
      %s66 = sphi 0, %s50
      %s70 = sphi 0, %s70
      %s72 = sphi 0, %s70
      %s73 = sphi 0, %s72
      %s87 = sphi 0, %s73
      %s91 = sphi 0, %s91
      %s93 = sphi 0, %s91
      %s94 = sphi 0, %s93
      %s108 = sphi 0, %s94
      %s112 = sphi 0, %s112
      %s114 = sphi 0, %s112
      %s115 = sphi 0, %s114
      %s129 = sphi 0, %s115
      %s133 = sphi 0, %s133
      %s135 = sphi 0, %s133
      %s136 = sphi 0, %s135
      %s150 = sphi 0, %s136
      %s154 = sphi 0, %s154
      %s156 = sphi 0, %s154
      %s157 = sphi 0, %s156
      %s171 = sphi 0, %s157
      %s175 = sphi 0, %s175
      %s177 = sphi 0, %s175
      %s178 = sphi 0, %s177
      %s192 = sphi 0, %s178
      %s196 = sphi 0, %s196
      %s198 = sphi 0, %s196
      %s199 = sphi 0, %s198
      %s213 = sphi 0, %s199
      %s221 = sphi 0, %s223
      %s224 = sphi 0, %s221
      %s225 = sphi 0, %s224
      %s241 = sphi 0, %s225
    $region4: #{tpu_custom_call.1} parent=1 // loop_header_branch
      %25 = sbr.rel (%p23) target = $region8
    $region5: #{tpu_custom_call.1} parent=1 // loop_body
      %s27 = ssub.s32 %s22, 1
      %s28 = ssub.s32 %s22, 2
      %s35 = sadd.s32 1, %s30
      %p36 = scmp.ge.s32.totalorder %s35, 1
      %s37 = scalar_select %p36, 0, %s35
      %s38 = sadd.s32 1, %s29
      %s39 = scalar_select %p36, %s38, %s29
      %p40 = scmp.ge.s32.totalorder %s39, 2
      %s41 = scalar_select %p40, 0, %s39
      %s42 = ssub.s32 %s29, %s41
      %s43 = ssub.s32 %s30, %s37
      %s44 = sor.u32 %s42, %s43
      %p45 = scmp.eq.s32.totalorder %s44, 0
      %s47 = sadd.s32 %s46, 1
      %s48 = scalar_select %p45, %s46, %s47
      %p51 = pneg %p45
      %p52 = scmp.eq.s32.totalorder %s22, 1
      %p53 = por %p51, %p52
      %p54 = scmp.ne.s32.totalorder %s46, %s49
      %p55 = scmp.eq.s32.totalorder %s22, 0
      %p56 = por %p54, %p55
      %p57 = scmp.ne.s32.totalorder %s46, %s49
      %p58 = scmp.eq.s32.totalorder %s27, 1
      %p59 = por %p57, %p58
      %p60 = scmp.ne.s32.totalorder %s49, %s50
      %p61 = scmp.eq.s32.totalorder %s27, 0
      %p62 = por %p60, %p61
      %p63 = scmp.ne.s32.totalorder %s49, %s50
      %p64 = scmp.eq.s32.totalorder %s28, 1
      %p65 = por %p63, %p64
      %p67 = scmp.ne.s32.totalorder %s50, %s66
      %p68 = scmp.eq.s32.totalorder %s28, 0
      %p69 = por %p67, %p68
      %s71 = sadd.s32 %s70, 1
      %p74 = scmp.eq.s32.totalorder %s22, 1
      %p75 = scmp.ne.s32.totalorder %s70, %s72
      %p76 = scmp.eq.s32.totalorder %s22, 0
      %p77 = por %p75, %p76
      %p78 = scmp.ne.s32.totalorder %s70, %s72
      %p79 = scmp.eq.s32.totalorder %s27, 1
      %p80 = por %p78, %p79
      %p81 = scmp.ne.s32.totalorder %s72, %s73
      %p82 = scmp.eq.s32.totalorder %s27, 0
      %p83 = por %p81, %p82
      %p84 = scmp.ne.s32.totalorder %s72, %s73
      %p85 = scmp.eq.s32.totalorder %s28, 1
      %p86 = por %p84, %p85
      %p88 = scmp.ne.s32.totalorder %s73, %s87
      %p89 = scmp.eq.s32.totalorder %s28, 0
      %p90 = por %p88, %p89
      %s92 = sadd.s32 %s91, 1
      %p95 = scmp.eq.s32.totalorder %s22, 1
      %p96 = scmp.ne.s32.totalorder %s91, %s93
      %p97 = scmp.eq.s32.totalorder %s22, 0
      %p98 = por %p96, %p97
      %p99 = scmp.ne.s32.totalorder %s91, %s93
      %p100 = scmp.eq.s32.totalorder %s27, 1
      %p101 = por %p99, %p100
      %p102 = scmp.ne.s32.totalorder %s93, %s94
      %p103 = scmp.eq.s32.totalorder %s27, 0
      %p104 = por %p102, %p103
      %p105 = scmp.ne.s32.totalorder %s93, %s94
      %p106 = scmp.eq.s32.totalorder %s28, 1
      %p107 = por %p105, %p106
      %p109 = scmp.ne.s32.totalorder %s94, %s108
      %p110 = scmp.eq.s32.totalorder %s28, 0
      %p111 = por %p109, %p110
      %s113 = sadd.s32 %s112, 1
      %p116 = scmp.eq.s32.totalorder %s22, 1
      %p117 = scmp.ne.s32.totalorder %s112, %s114
      %p118 = scmp.eq.s32.totalorder %s22, 0
      %p119 = por %p117, %p118
      %p120 = scmp.ne.s32.totalorder %s112, %s114
      %p121 = scmp.eq.s32.totalorder %s27, 1
      %p122 = por %p120, %p121
      %p123 = scmp.ne.s32.totalorder %s114, %s115
      %p124 = scmp.eq.s32.totalorder %s27, 0
      %p125 = por %p123, %p124
      %p126 = scmp.ne.s32.totalorder %s114, %s115
      %p127 = scmp.eq.s32.totalorder %s28, 1
      %p128 = por %p126, %p127
      %p130 = scmp.ne.s32.totalorder %s115, %s129
      %p131 = scmp.eq.s32.totalorder %s28, 0
      %p132 = por %p130, %p131
      %s134 = sadd.s32 %s133, 1
      %p137 = scmp.eq.s32.totalorder %s22, 1
      %p138 = scmp.ne.s32.totalorder %s133, %s135
      %p139 = scmp.eq.s32.totalorder %s22, 0
      %p140 = por %p138, %p139
      %p141 = scmp.ne.s32.totalorder %s133, %s135
      %p142 = scmp.eq.s32.totalorder %s27, 1
      %p143 = por %p141, %p142
      %p144 = scmp.ne.s32.totalorder %s135, %s136
      %p145 = scmp.eq.s32.totalorder %s27, 0
      %p146 = por %p144, %p145
      %p147 = scmp.ne.s32.totalorder %s135, %s136
      %p148 = scmp.eq.s32.totalorder %s28, 1
      %p149 = por %p147, %p148
      %p151 = scmp.ne.s32.totalorder %s136, %s150
      %p152 = scmp.eq.s32.totalorder %s28, 0
      %p153 = por %p151, %p152
      %s155 = sadd.s32 %s154, 1
      %p158 = scmp.eq.s32.totalorder %s22, 1
      %p159 = scmp.ne.s32.totalorder %s154, %s156
      %p160 = scmp.eq.s32.totalorder %s22, 0
      %p161 = por %p159, %p160
      %p162 = scmp.ne.s32.totalorder %s154, %s156
      %p163 = scmp.eq.s32.totalorder %s27, 1
      %p164 = por %p162, %p163
      %p165 = scmp.ne.s32.totalorder %s156, %s157
      %p166 = scmp.eq.s32.totalorder %s27, 0
      %p167 = por %p165, %p166
      %p168 = scmp.ne.s32.totalorder %s156, %s157
      %p169 = scmp.eq.s32.totalorder %s28, 1
      %p170 = por %p168, %p169
      %p172 = scmp.ne.s32.totalorder %s157, %s171
      %p173 = scmp.eq.s32.totalorder %s28, 0
      %p174 = por %p172, %p173
      %s176 = sadd.s32 %s175, 1
      %p179 = scmp.eq.s32.totalorder %s22, 1
      %p180 = scmp.ne.s32.totalorder %s175, %s177
      %p181 = scmp.eq.s32.totalorder %s22, 0
      %p182 = por %p180, %p181
      %p183 = scmp.ne.s32.totalorder %s175, %s177
      %p184 = scmp.eq.s32.totalorder %s27, 1
      %p185 = por %p183, %p184
      %p186 = scmp.ne.s32.totalorder %s177, %s178
      %p187 = scmp.eq.s32.totalorder %s27, 0
      %p188 = por %p186, %p187
      %p189 = scmp.ne.s32.totalorder %s177, %s178
      %p190 = scmp.eq.s32.totalorder %s28, 1
      %p191 = por %p189, %p190
      %p193 = scmp.ne.s32.totalorder %s178, %s192
      %p194 = scmp.eq.s32.totalorder %s28, 0
      %p195 = por %p193, %p194
      %s197 = sadd.s32 %s196, 1
      %p200 = scmp.eq.s32.totalorder %s22, 1
      %p201 = scmp.ne.s32.totalorder %s196, %s198
      %p202 = scmp.eq.s32.totalorder %s22, 0
      %p203 = por %p201, %p202
      %p204 = scmp.ne.s32.totalorder %s196, %s198
      %p205 = scmp.eq.s32.totalorder %s27, 1
      %p206 = por %p204, %p205
      %p207 = scmp.ne.s32.totalorder %s198, %s199
      %p208 = scmp.eq.s32.totalorder %s27, 0
      %p209 = por %p207, %p208
      %p210 = scmp.ne.s32.totalorder %s198, %s199
      %p211 = scmp.eq.s32.totalorder %s28, 1
      %p212 = por %p210, %p211
      %p214 = scmp.ne.s32.totalorder %s199, %s213
      %p215 = scmp.eq.s32.totalorder %s28, 0
      %p216 = por %p214, %p215
      %s217 = ssub.s32 %s29, %s41
      %s218 = ssub.s32 %s30, %s37
      %s219 = sor.u32 %s217, %s218
      %p220 = scmp.eq.s32.totalorder %s219, 0
      %s222 = sadd.s32 %s221, 1
      %s223 = scalar_select %p220, %s221, %s222
      %p226 = pneg %p220
      %p227 = scmp.eq.s32.totalorder %s22, 1
      %p228 = por %p226, %p227
      %p229 = scmp.ne.s32.totalorder %s221, %s224
      %p230 = scmp.eq.s32.totalorder %s22, 0
      %p231 = por %p229, %p230
      %p232 = scmp.ne.s32.totalorder %s221, %s224
      %p233 = scmp.eq.s32.totalorder %s27, 1
      %p234 = por %p232, %p233
      %p235 = scmp.ne.s32.totalorder %s224, %s225
      %p236 = scmp.eq.s32.totalorder %s27, 0
      %p237 = por %p235, %p236
      %p238 = scmp.ne.s32.totalorder %s224, %s225
      %p239 = scmp.eq.s32.totalorder %s28, 1
      %p240 = por %p238, %p239
      %p242 = scmp.ne.s32.totalorder %s225, %s241
      %p243 = scmp.eq.s32.totalorder %s28, 0
      %p244 = por %p242, %p243
      %p245 = scmp.le.s32.totalorder 1, %s22
      %p246 = scmp.lt.s32.totalorder %s22, 3
      %p247 = pnand %p245, %p246
      %p248 = pneg %p247
      // Predicated region
      $region9: #{tpu_custom_call.1} parent=5 // pred_check
        _
      $region10: #{tpu_custom_call.1} parent=5 // pred_check_branch
        %250 = sbr.rel (%p247) target = $region12
      $region11: #{tpu_custom_call.1} parent=5 // pred_region
        %s251 = ssub.s32 %s22, 1
        // Predicated region
        $region13: #{tpu_custom_call.1} parent=11 // pred_check
          %p252 = pneg %p83
        $region14: #{tpu_custom_call.1} parent=11 // pred_check_branch
          %254 = sbr.rel (%p252) target = $region16
        $region15: #{tpu_custom_call.1} parent=11 // pred_region
          %s256 = ssub.s32 1024, 1024
          %257 = vsyncadd [#allocation6], %s256
          %s258 = sshll.u32 [#allocation5], 4
          %s259 = int_to_ptr.vmem [resolvable:$true] %s258
          %264 = dma.hbm_to_vmem [thread:$0]  %s1, 1024, %s259, [#allocation6], 128, 128, 8
        $region16: #{tpu_custom_call.1} parent=11 // pred_fallthru
          _
        // Predicated region
        $region17: #{tpu_custom_call.1} parent=11 // pred_check
          %p265 = pneg %p104
        $region18: #{tpu_custom_call.1} parent=11 // pred_check_branch
          %267 = sbr.rel (%p265) target = $region20
        $region19: #{tpu_custom_call.1} parent=11 // pred_region
          _
        $region20: #{tpu_custom_call.1} parent=11 // pred_fallthru
          _
        // Predicated region
        $region21: #{tpu_custom_call.1} parent=11 // pred_check
          %p268 = pneg %p125
        $region22: #{tpu_custom_call.1} parent=11 // pred_check_branch
          %270 = sbr.rel (%p268) target = $region24
        $region23: #{tpu_custom_call.1} parent=11 // pred_region
          _
        $region24: #{tpu_custom_call.1} parent=11 // pred_fallthru
          _
        // Predicated region
        $region25: #{tpu_custom_call.1} parent=11 // pred_check
          %p271 = pneg %p146
        $region26: #{tpu_custom_call.1} parent=11 // pred_check_branch
          %273 = sbr.rel (%p271) target = $region28
        $region27: #{tpu_custom_call.1} parent=11 // pred_region
          %s275 = ssub.s32 512, 512
          %276 = vsyncadd [#allocation6], %s275
          %s277 = sshll.u32 [#allocation7], 4
          %s278 = int_to_ptr.vmem [resolvable:$true] %s277
          %283 = dma.hbm_to_vmem [thread:$0]  %s4, 512, %s278, [#allocation6], 128, 128, 8
        $region28: #{tpu_custom_call.1} parent=11 // pred_fallthru
          _
        // Predicated region
        $region29: #{tpu_custom_call.1} parent=11 // pred_check
          %p284 = pneg %p167
        $region30: #{tpu_custom_call.1} parent=11 // pred_check_branch
          %286 = sbr.rel (%p284) target = $region32
        $region31: #{tpu_custom_call.1} parent=11 // pred_region
          _
        $region32: #{tpu_custom_call.1} parent=11 // pred_fallthru
          _
        // Predicated region
        $region33: #{tpu_custom_call.1} parent=11 // pred_check
          %p287 = pneg %p188
        $region34: #{tpu_custom_call.1} parent=11 // pred_check_branch
          %289 = sbr.rel (%p287) target = $region36
        $region35: #{tpu_custom_call.1} parent=11 // pred_region
          %s291 = ssub.s32 512, 512
          %292 = vsyncadd [#allocation9], %s291
          %s293 = sshll.u32 [#allocation8], 4
          %s294 = int_to_ptr.vmem [resolvable:$true] %s293
          %299 = dma.hbm_to_vmem [thread:$0]  %s6, 512, %s294, [#allocation9], 128, 128, 8
        $region36: #{tpu_custom_call.1} parent=11 // pred_fallthru
          _
        // Predicated region
        $region37: #{tpu_custom_call.1} parent=11 // pred_check
          %p300 = pneg %p209
        $region38: #{tpu_custom_call.1} parent=11 // pred_check_branch
          %302 = sbr.rel (%p300) target = $region40
        $region39: #{tpu_custom_call.1} parent=11 // pred_region
          _
        $region40: #{tpu_custom_call.1} parent=11 // pred_fallthru
          _
      $region12: #{tpu_custom_call.1} parent=5 // pred_fallthru
        _
      %p303 = scmp.lt.s32.totalorder %s22, 2
      // Predicated region
      $region41: #{tpu_custom_call.1} parent=5 // pred_check
        %p304 = pneg %p303
      $region42: #{tpu_custom_call.1} parent=5 // pred_check_branch
        %306 = sbr.rel (%p304) target = $region44
      $region43: #{tpu_custom_call.1} parent=5 // pred_region
        // Predicated region
        $region45: #{tpu_custom_call.1} parent=43 // pred_check
          %p307 = pneg %p56
        $region46: #{tpu_custom_call.1} parent=43 // pred_check_branch
          %309 = sbr.rel (%p307) target = $region48
        $region47: #{tpu_custom_call.1} parent=43 // pred_region
          %s310 = sand.u32 %s46, 1
          %s311 = scalar_lea.sflag [#allocation3], %s310
          %s312 = sand.u32 %s46, 1
          %s313 = smul.addr %s312, 64
          %s314 = scalar_lea.vmem [#allocation2], %s313
          %s315 = smul.u32 4, %s30
          %s317 = ssub.s32 1024, 1024
          %318 = vsyncadd %s311, %s317
          %s319 = smul.addr %s315, 2
          %s320 = smul.addr %s29, 8
          %s321 = sadd.s32 %s319, %s320
          %s322 = smul.addr %s321, 128
          %s323 = scalar_lea.hbm %s0, %s322
          %s324 = sshll.u32 %s314, 4
          %s325 = int_to_ptr.vmem [resolvable:$true] %s324
          %330 = dma.hbm_to_vmem [thread:$0]  %s323, 1024, %s325, %s311, 128, 128, 8
        $region48: #{tpu_custom_call.1} parent=43 // pred_fallthru
          _
      $region44: #{tpu_custom_call.1} parent=5 // pred_fallthru
        _
      %p331 = scmp.le.s32.totalorder 1, %s22
      %p332 = scmp.lt.s32.totalorder %s22, 3
      %p333 = pnand %p331, %p332
      %p334 = pneg %p333
      // Predicated region
      $region49: #{tpu_custom_call.1} parent=5 // pred_check
        _
      $region50: #{tpu_custom_call.1} parent=5 // pred_check_branch
        %336 = sbr.rel (%p333) target = $region52
      $region51: #{tpu_custom_call.1} parent=5 // pred_region
        %s337 = ssub.s32 %s22, 1
        %s338 = sand.u32 %s49, 1
        %s339 = scalar_lea.sflag [#allocation3], %s338
        %s340 = sand.u32 %s49, 1
        %s341 = smul.addr %s340, 64
        %s342 = scalar_lea.vmem [#allocation2], %s341
        // Predicated region
        $region53: #{tpu_custom_call.1} parent=51 // pred_check
          %p343 = pneg %p62
        $region54: #{tpu_custom_call.1} parent=51 // pred_check_branch
          %345 = sbr.rel (%p343) target = $region56
        $region55: #{tpu_custom_call.1} parent=51 // pred_region
          %346 = dma.done %s339, 1024
        $region56: #{tpu_custom_call.1} parent=51 // pred_fallthru
          _
        // Predicated region
        $region57: #{tpu_custom_call.1} parent=51 // pred_check
          %p347 = pneg %p83
        $region58: #{tpu_custom_call.1} parent=51 // pred_check_branch
          %349 = sbr.rel (%p347) target = $region60
        $region59: #{tpu_custom_call.1} parent=51 // pred_region
          %350 = dma.done [#allocation6], 1024
        $region60: #{tpu_custom_call.1} parent=51 // pred_fallthru
          _
        // Predicated region
        $region61: #{tpu_custom_call.1} parent=51 // pred_check
          %p351 = pneg %p146
        $region62: #{tpu_custom_call.1} parent=51 // pred_check_branch
          %353 = sbr.rel (%p351) target = $region64
        $region63: #{tpu_custom_call.1} parent=51 // pred_region
          %354 = dma.done [#allocation6], 512
        $region64: #{tpu_custom_call.1} parent=51 // pred_fallthru
          _
        // Predicated region
        $region65: #{tpu_custom_call.1} parent=51 // pred_check
          %p355 = pneg %p188
        $region66: #{tpu_custom_call.1} parent=51 // pred_check_branch
          %357 = sbr.rel (%p355) target = $region68
        $region67: #{tpu_custom_call.1} parent=51 // pred_region
          %358 = dma.done [#allocation9], 512
        $region68: #{tpu_custom_call.1} parent=51 // pred_fallthru
          _
        %s359 = sand.u32 %s49, 1
        %s360 = scalar_lea.sflag [#allocation3], %s359
        %s361 = sand.u32 %s49, 1
        %s362 = smul.addr %s361, 64
        %s363 = scalar_lea.vmem [#allocation2], %s362
        %p364 = pneg %p62
        %p365 = pneg %p59
        %p366 = pneg %p83
        %p367 = pneg %p80
        %p368 = pneg %p104
        %p369 = pneg %p101
        %p370 = pneg %p125
        %p371 = pneg %p122
        %p372 = pneg %p146
        %p373 = pneg %p143
        %p374 = pneg %p167
        %p375 = pneg %p164
        %p376 = pneg %p188
        %p377 = pneg %p185
        %p378 = pneg %p209
        %p379 = pneg %p206
        %p380 = pneg %p237
        %p381 = pneg %p234
        %s382 = sand.u32 %s224, 1
        %s383 = scalar_lea.sflag [#allocation4], %s382
        %s384 = sand.u32 %s224, 1
        %s385 = smul.addr %s384, 64
        %s386 = scalar_lea.vmem [#allocation10], %s385
        %s387 = smul.u32 4, %s32
        %s388 = smul.u32 4, %s32
        %v389 = vld [vmem:[%s342] sm:$0xff]
        %v390 = vld [vmem:[%s342 + $0x8] sm:$0xff]
        %v391 = vld [vmem:[%s342 + $0x10] sm:$0xff]
        %v392 = vld [vmem:[%s342 + $0x18] sm:$0xff]
        %v393 = vld [vmem:[%s342 + $0x20] sm:$0xff]
        %v394 = vld [vmem:[%s342 + $0x28] sm:$0xff]
        %v395 = vld [vmem:[%s342 + $0x30] sm:$0xff]
        %v396 = vld [vmem:[%s342 + $0x38] sm:$0xff]
        %vm397 = vcmask 261120
        %v398 = vsel %vm397, %v389, 0.0
        %399 = vadd.xlane.f32.xlu0 %v398
        %v400 = vpop.xlane.xlu0 %399
        %v401 = vsel %vm397, %v390, 0.0
        %402 = vadd.xlane.f32.xlu0 %v401
        %v403 = vpop.xlane.xlu0 %402
        %v404 = vsel %vm397, %v391, 0.0
        %405 = vadd.xlane.f32.xlu0 %v404
        %v406 = vpop.xlane.xlu0 %405
        %v407 = vsel %vm397, %v392, 0.0
        %408 = vadd.xlane.f32.xlu0 %v407
        %v409 = vpop.xlane.xlu0 %408
        %v410 = vsel %vm397, %v393, 0.0
        %411 = vadd.xlane.f32.xlu0 %v410
        %v412 = vpop.xlane.xlu0 %411
        %v413 = vsel %vm397, %v394, 0.0
        %414 = vadd.xlane.f32.xlu0 %v413
        %v415 = vpop.xlane.xlu0 %414
        %v416 = vsel %vm397, %v395, 0.0
        %417 = vadd.xlane.f32.xlu0 %v416
        %v418 = vpop.xlane.xlu0 %417
        %v419 = vsel %vm397, %v396, 0.0
        %420 = vadd.xlane.f32.xlu0 %v419
        %v421 = vpop.xlane.xlu0 %420
        %v422 = vrcp.pop 32.0
        %v423 = vmul.f32 %v400, %v422
        %v424 = vmul.f32 %v403, %v422
        %v425 = vmul.f32 %v406, %v422
        %v426 = vmul.f32 %v409, %v422
        %v427 = vmul.f32 %v412, %v422
        %v428 = vmul.f32 %v415, %v422
        %v429 = vmul.f32 %v418, %v422
        %v430 = vmul.f32 %v421, %v422
        %v431 = vsub.f32 %v389, %v423
        %v432 = vsub.f32 %v390, %v424
        %v433 = vsub.f32 %v391, %v425
        %v434 = vsub.f32 %v392, %v426
        %v435 = vsub.f32 %v393, %v427
        %v436 = vsub.f32 %v394, %v428
        %v437 = vsub.f32 %v395, %v429
        %v438 = vsub.f32 %v396, %v430
        %v439 = vmul.f32 %v431, %v431
        %v440 = vmul.f32 %v432, %v432
        %v441 = vmul.f32 %v433, %v433
        %v442 = vmul.f32 %v434, %v434
        %v443 = vmul.f32 %v435, %v435
        %v444 = vmul.f32 %v436, %v436
        %v445 = vmul.f32 %v437, %v437
        %v446 = vmul.f32 %v438, %v438
        %v447 = vsel %vm397, %v439, 0.0
        %448 = vadd.xlane.f32.xlu0 %v447
        %v449 = vpop.xlane.xlu0 %448
        %v450 = vsel %vm397, %v440, 0.0
        %451 = vadd.xlane.f32.xlu0 %v450
        %v452 = vpop.xlane.xlu0 %451
        %v453 = vsel %vm397, %v441, 0.0
        %454 = vadd.xlane.f32.xlu0 %v453
        %v455 = vpop.xlane.xlu0 %454
        %v456 = vsel %vm397, %v442, 0.0
        %457 = vadd.xlane.f32.xlu0 %v456
        %v458 = vpop.xlane.xlu0 %457
        %v459 = vsel %vm397, %v443, 0.0
        %460 = vadd.xlane.f32.xlu0 %v459
        %v461 = vpop.xlane.xlu0 %460
        %v462 = vsel %vm397, %v444, 0.0
        %463 = vadd.xlane.f32.xlu0 %v462
        %v464 = vpop.xlane.xlu0 %463
        %v465 = vsel %vm397, %v445, 0.0
        %466 = vadd.xlane.f32.xlu0 %v465
        %v467 = vpop.xlane.xlu0 %466
        %v468 = vsel %vm397, %v446, 0.0
        %469 = vadd.xlane.f32.xlu0 %v468
        %v470 = vpop.xlane.xlu0 %469
        %v471 = vmul.f32 %v449, %v422
        %v472 = vmul.f32 %v452, %v422
        %v473 = vmul.f32 %v455, %v422
        %v474 = vmul.f32 %v458, %v422
        %v475 = vmul.f32 %v461, %v422
        %v476 = vmul.f32 %v464, %v422
        %v477 = vmul.f32 %v467, %v422
        %v478 = vmul.f32 %v470, %v422
        %v479 = vadd.f32 %v471, 1e-05
        %v480 = vadd.f32 %v472, 1e-05
        %v481 = vadd.f32 %v473, 1e-05
        %v482 = vadd.f32 %v474, 1e-05
        %v483 = vadd.f32 %v475, 1e-05
        %v484 = vadd.f32 %v476, 1e-05
        %v485 = vadd.f32 %v477, 1e-05
        %v486 = vadd.f32 %v478, 1e-05
        %v487 = vrsqrt.pop %v479
        %v488 = vrsqrt.pop %v480
        %v489 = vrsqrt.pop %v481
        %v490 = vrsqrt.pop %v482
        %v491 = vrsqrt.pop %v483
        %v492 = vrsqrt.pop %v484
        %v493 = vrsqrt.pop %v485
        %v494 = vrsqrt.pop %v486
        %v495 = vmul.f32 %v431, %v487
        %v496 = vmul.f32 %v432, %v488
        %v497 = vmul.f32 %v433, %v489
        %v498 = vmul.f32 %v434, %v490
        %v499 = vmul.f32 %v435, %v491
        %v500 = vmul.f32 %v436, %v492
        %v501 = vmul.f32 %v437, %v493
        %v502 = vmul.f32 %v438, %v494
        %v503 = vld [vmem:[%s2] sm:$0x1]
        %v505 = vlaneseq
        %v506 = vshrl.u32 %v505, 7
        %v507 = vsub.s32 0, %v506
        %v508 = vrot.slane %v503, %v507
        %v510 = vmul.f32 %v495, %v508
        %v511 = vmul.f32 %v496, %v508
        %v512 = vmul.f32 %v497, %v508
        %v513 = vmul.f32 %v498, %v508
        %v514 = vmul.f32 %v499, %v508
        %v515 = vmul.f32 %v500, %v508
        %v516 = vmul.f32 %v501, %v508
        %v517 = vmul.f32 %v502, %v508
        %v518 = vld [vmem:[%s3] sm:$0x1]
        %v520 = vlaneseq
        %v521 = vshrl.u32 %v520, 7
        %v522 = vsub.s32 0, %v521
        %v523 = vrot.slane %v518, %v522
        %v525 = vadd.f32 %v510, %v523
        %v526 = vadd.f32 %v511, %v523
        %v527 = vadd.f32 %v512, %v523
        %v528 = vadd.f32 %v513, %v523
        %v529 = vadd.f32 %v514, %v523
        %v530 = vadd.f32 %v515, %v523
        %v531 = vadd.f32 %v516, %v523
        %v532 = vadd.f32 %v517, %v523
        %v533 = vld [vmem:[#allocation7] sm:$0xff]
        %v534 = vld [vmem:[#allocation7 + $0x8] sm:$0xff]
        %v535 = vld [vmem:[#allocation7 + $0x10] sm:$0xff]
        %v536 = vld [vmem:[#allocation7 + $0x18] sm:$0xff]
        %v537 = vld [vmem:[#allocation8] sm:$0xff]
        %v538 = vld [vmem:[#allocation8 + $0x8] sm:$0xff]
        %v539 = vld [vmem:[#allocation8 + $0x10] sm:$0xff]
        %v540 = vld [vmem:[#allocation8 + $0x18] sm:$0xff]
        %v541 = vld [vmem:[#allocation5] sm:$0xff]
        %v542 = vld [vmem:[#allocation5 + $0x8] sm:$0xff]
        %v543 = vld [vmem:[#allocation5 + $0x10] sm:$0xff]
        %v544 = vld [vmem:[#allocation5 + $0x18] sm:$0xff]
        %v545 = vld [vmem:[#allocation5 + $0x20] sm:$0xff]
        %v546 = vld [vmem:[#allocation5 + $0x28] sm:$0xff]
        %v547 = vld [vmem:[#allocation5 + $0x30] sm:$0xff]
        %v548 = vld [vmem:[#allocation5 + $0x38] sm:$0xff]
        %v549 = vld [vmem:[%s5] sm:$0x1]
        %v551 = vlaneseq
        %v552 = vshrl.u32 %v551, 7
        %v553 = vsub.s32 0, %v552
        %v554 = vrot.slane %v549, %v553
        %v557 = vsel %vm397, %v525, 0
        %v560 = vsel %vm397, %v526, 0
        %v563 = vsel %vm397, %v527, 0
        %v566 = vsel %vm397, %v528, 0
        %v569 = vsel %vm397, %v529, 0
        %v572 = vsel %vm397, %v530, 0
        %v575 = vsel %vm397, %v531, 0
        %v578 = vsel %vm397, %v532, 0
        %580 = vmatprep.subr.mxu0 0.0
        %581 = vmatpush1.msra.mxu0 %v533
        %582 = vmatprep.subr.mxu0 0.0
        %583 = vmatpush1.msra.mxu0 %v534
        %584 = vmatprep.subr.mxu0 0.0
        %585 = vmatpush1.msra.mxu0 %v535
        %586 = vmatprep.subr.mxu0 0.0
        %587 = vmatpush1.msra.mxu0 %v536
        %588 = vmatprep.subr.mxu0 0.0
        %589 = vmatpush1.msra.mxu0 0.0
        %590 = vmatprep.subr.mxu0 0.0
        %591 = vmatpush1.msra.mxu0 0.0
        %592 = vmatprep.subr.mxu0 0.0
        %593 = vmatpush1.msra.mxu0 0.0
        %594 = vmatprep.subr.mxu0 0.0
        %595 = vmatpush1.msra.mxu0 0.0
        %596 = vmatprep.subr.mxu0 0.0
        %597 = vmatpush1.msra.mxu0 0.0
        %598 = vmatprep.subr.mxu0 0.0
        %599 = vmatpush1.msra.mxu0 0.0
        %600 = vmatprep.subr.mxu0 0.0
        %601 = vmatpush1.msra.mxu0 0.0
        %602 = vmatprep.subr.mxu0 0.0
        %603 = vmatpush1.msra.mxu0 0.0
        %604 = vmatprep.subr.mxu0 0.0
        %605 = vmatpush1.msra.mxu0 0.0
        %606 = vmatprep.subr.mxu0 0.0
        %607 = vmatpush1.msra.mxu0 0.0
        %608 = vmatprep.subr.mxu0 0.0
        %609 = vmatpush1.msra.mxu0 0.0
        %610 = vmatprep.subr.mxu0 0.0
        %611 = vmatpush1.msra.mxu0 0.0
        %612 = vmatprep.subr.mxu0 0.0
        %613 = vmatpush1.msra.mxu0 0.0
        %614 = vmatprep.subr.mxu0 0.0
        %615 = vmatpush1.msra.mxu0 0.0
        %616 = vmatprep.subr.mxu0 0.0
        %617 = vmatpush1.msra.mxu0 0.0
        %618 = vmatprep.subr.mxu0 0.0
        %619 = vmatpush1.msra.mxu0 0.0
        %620 = vmatprep.subr.mxu0 0.0
        %621 = vmatpush1.msra.mxu0 0.0
        %622 = vmatprep.subr.mxu0 0.0
        %623 = vmatpush1.msra.mxu0 0.0
        %624 = vmatprep.subr.mxu0 0.0
        %625 = vmatpush1.msra.mxu0 0.0
        %626 = vmatprep.subr.mxu0 0.0
        %627 = vmatpush1.msra.mxu0 0.0
        %628 = vmatprep.subr.mxu0 0.0
        %629 = vmatpush1.msra.mxu0 0.0
        %630 = vmatprep.subr.mxu0 0.0
        %631 = vmatpush1.msra.mxu0 0.0
        %632 = vmatprep.subr.mxu0 0.0
        %633 = vmatpush1.msra.mxu0 0.0
        %634 = vmatprep.subr.mxu0 0.0
        %635 = vmatpush1.msra.mxu0 0.0
        %636 = vmatprep.subr.mxu0 0.0
        %637 = vmatpush1.msra.mxu0 0.0
        %638 = vmatprep.subr.mxu0 0.0
        %639 = vmatpush1.msra.mxu0 0.0
        %640 = vmatprep.subr.mxu0 0.0
        %641 = vmatpush1.msra.mxu0 0.0
        %642 = vmatprep.subr.mxu0 0.0
        %643 = vmatpush1.msra.mxu0 0.0
        %644 = vmatprep.mubr.f32.mxu0 0.0
        %645 = vmatmul.mubr.f32.gmra.mrb[0].mxu0 %v557
        %v646 = vpop.f32.mrb[0].mxu0
        %v647 = vadd.f32 %v554, %v646
        %v648 = vpop.f32.mrb[0].mxu0
        %649 = vmatprep.mubr.f32.mxu0 0.0
        %650 = vmatmul.mubr.f32.gmra.mrb[0].mxu0 %v560
        %v651 = vpop.f32.mrb[0].mxu0
        %v652 = vadd.f32 %v554, %v651
        %v653 = vpop.f32.mrb[0].mxu0
        %654 = vmatprep.mubr.f32.mxu0 0.0
        %655 = vmatmul.mubr.f32.gmra.mrb[0].mxu0 %v563
        %v656 = vpop.f32.mrb[0].mxu0
        %v657 = vadd.f32 %v554, %v656
        %v658 = vpop.f32.mrb[0].mxu0
        %659 = vmatprep.mubr.f32.mxu0 0.0
        %660 = vmatmul.mubr.f32.gmra.mrb[0].mxu0 %v566
        %v661 = vpop.f32.mrb[0].mxu0
        %v662 = vadd.f32 %v554, %v661
        %v663 = vpop.f32.mrb[0].mxu0
        %664 = vmatprep.mubr.f32.mxu0 0.0
        %665 = vmatmul.mubr.f32.gmra.mrb[0].mxu0 %v569
        %v666 = vpop.f32.mrb[0].mxu0
        %v667 = vadd.f32 %v554, %v666
        %v668 = vpop.f32.mrb[0].mxu0
        %669 = vmatprep.mubr.f32.mxu0 0.0
        %670 = vmatmul.mubr.f32.gmra.mrb[0].mxu0 %v572
        %v671 = vpop.f32.mrb[0].mxu0
        %v672 = vadd.f32 %v554, %v671
        %v673 = vpop.f32.mrb[0].mxu0
        %674 = vmatprep.mubr.f32.mxu0 0.0
        %675 = vmatmul.mubr.f32.gmra.mrb[0].mxu0 %v575
        %v676 = vpop.f32.mrb[0].mxu0
        %v677 = vadd.f32 %v554, %v676
        %v678 = vpop.f32.mrb[0].mxu0
        %679 = vmatprep.mubr.f32.mxu0 0.0
        %680 = vmatmul.mubr.f32.gmra.mrb[0].mxu0 %v578
        %v681 = vpop.f32.mrb[0].mxu0
        %v682 = vadd.f32 %v554, %v681
        %v683 = vpop.f32.mrb[0].mxu0
        %684 = vdwg.mxu0
        %v685 = vmul.f32 %v647, 0.35355338
        %v686 = vmul.f32 %v652, 0.35355338
        %v687 = vmul.f32 %v657, 0.35355338
        %v688 = vmul.f32 %v662, 0.35355338
        %v689 = vmul.f32 %v667, 0.35355338
        %v690 = vmul.f32 %v672, 0.35355338
        %v691 = vmul.f32 %v677, 0.35355338
        %v692 = vmul.f32 %v682, 0.35355338
        %695 = vrot.lane.b32.xlu0 %v647, 96
        %v696 = vpop.permute.xlu0 %695
        %697 = vrot.lane.b32.xlu0 %v652, 96
        %v698 = vpop.permute.xlu0 %697
        %vm699 = vcmask 64512
        %v701 = vsel %vm699, %v685, 0
        %v704 = vsel %vm699, %v686, 0
        %v706 = vsel %vm699, %v696, 0
        %v708 = vsel %vm699, %v698, 0
        %710 = vmatprep.subr.mxu0 0.0
        %711 = vmatpush1.xpose.msra.mxu0 %v706
        %712 = vmatprep.subr.mxu0 0.0
        %713 = vmatpush1.xpose.msra.mxu0 %v708
        %714 = vmatprep.subr.mxu0 0.0
        %715 = vmatpush1.xpose.msra.mxu0 0.0
        %716 = vmatprep.subr.mxu0 0.0
        %717 = vmatpush1.xpose.msra.mxu0 0.0
        %718 = vmatprep.subr.mxu0 0.0
        %719 = vmatpush1.xpose.msra.mxu0 0.0
        %720 = vmatprep.subr.mxu0 0.0
        %721 = vmatpush1.xpose.msra.mxu0 0.0
        %722 = vmatprep.subr.mxu0 0.0
        %723 = vmatpush1.xpose.msra.mxu0 0.0
        %724 = vmatprep.subr.mxu0 0.0
        %725 = vmatpush1.xpose.msra.mxu0 0.0
        %726 = vmatprep.subr.mxu0 0.0
        %727 = vmatpush1.xpose.msra.mxu0 0.0
        %728 = vmatprep.subr.mxu0 0.0
        %729 = vmatpush1.xpose.msra.mxu0 0.0
        %730 = vmatprep.subr.mxu0 0.0
        %731 = vmatpush1.xpose.msra.mxu0 0.0
        %732 = vmatprep.subr.mxu0 0.0
        %733 = vmatpush1.xpose.msra.mxu0 0.0
        %734 = vmatprep.subr.mxu0 0.0
        %735 = vmatpush1.xpose.msra.mxu0 0.0
        %736 = vmatprep.subr.mxu0 0.0
        %737 = vmatpush1.xpose.msra.mxu0 0.0
        %738 = vmatprep.subr.mxu0 0.0
        %739 = vmatpush1.xpose.msra.mxu0 0.0
        %740 = vmatprep.subr.mxu0 0.0
        %741 = vmatpush1.xpose.msra.mxu0 0.0
        %742 = vmatprep.subr.mxu0 0.0
        %743 = vmatpush1.xpose.msra.mxu0 0.0
        %744 = vmatprep.subr.mxu0 0.0
        %745 = vmatpush1.xpose.msra.mxu0 0.0
        %746 = vmatprep.subr.mxu0 0.0
        %747 = vmatpush1.xpose.msra.mxu0 0.0
        %748 = vmatprep.subr.mxu0 0.0
        %749 = vmatpush1.xpose.msra.mxu0 0.0
        %750 = vmatprep.subr.mxu0 0.0
        %751 = vmatpush1.xpose.msra.mxu0 0.0
        %752 = vmatprep.subr.mxu0 0.0
        %753 = vmatpush1.xpose.msra.mxu0 0.0
        %754 = vmatprep.subr.mxu0 0.0
        %755 = vmatpush1.xpose.msra.mxu0 0.0
        %756 = vmatprep.subr.mxu0 0.0
        %757 = vmatpush1.xpose.msra.mxu0 0.0
        %758 = vmatprep.subr.mxu0 0.0
        %759 = vmatpush1.xpose.msra.mxu0 0.0
        %760 = vmatprep.subr.mxu0 0.0
        %761 = vmatpush1.xpose.msra.mxu0 0.0
        %762 = vmatprep.subr.mxu0 0.0
        %763 = vmatpush1.xpose.msra.mxu0 0.0
        %764 = vmatprep.subr.mxu0 0.0
        %765 = vmatpush1.xpose.msra.mxu0 0.0
        %766 = vmatprep.subr.mxu0 0.0
        %767 = vmatpush1.xpose.msra.mxu0 0.0
        %768 = vmatprep.subr.mxu0 0.0
        %769 = vmatpush1.xpose.msra.mxu0 0.0
        %770 = vmatprep.subr.mxu0 0.0
        %771 = vmatpush1.xpose.msra.mxu0 0.0
        %772 = vmatprep.subr.mxu0 0.0
        %773 = vmatpush1.xpose.msra.mxu0 0.0
        %774 = vmatprep.mubr.f32.mxu0 0.0
        %775 = vmatmul.mubr.f32.gmra.mrb[0].mxu0 %v701
        %v776 = vpop.f32.mrb[0].mxu0
        %v777 = vadd.f32 %v541, %v776
        %v778 = vpop.f32.mrb[0].mxu0
        %779 = vmatprep.mubr.f32.mxu0 0.0
        %780 = vmatmul.mubr.f32.gmra.mrb[0].mxu0 %v704
        %v781 = vpop.f32.mrb[0].mxu0
        %v782 = vadd.f32 %v542, %v781
        %v783 = vpop.f32.mrb[0].mxu0
        %784 = vdwg.mxu0
        %787 = vrot.lane.b32.xlu0 %v657, 96
        %v788 = vpop.permute.xlu0 %787
        %789 = vrot.lane.b32.xlu0 %v662, 96
        %v790 = vpop.permute.xlu0 %789
        %v792 = vsel %vm699, %v687, 0
        %v795 = vsel %vm699, %v688, 0
        %v797 = vsel %vm699, %v788, 0
        %v799 = vsel %vm699, %v790, 0
        %801 = vmatprep.subr.mxu0 0.0
        %802 = vmatpush1.xpose.msra.mxu0 %v797
        %803 = vmatprep.subr.mxu0 0.0
        %804 = vmatpush1.xpose.msra.mxu0 %v799
        %805 = vmatprep.subr.mxu0 0.0
        %806 = vmatpush1.xpose.msra.mxu0 0.0
        %807 = vmatprep.subr.mxu0 0.0
        %808 = vmatpush1.xpose.msra.mxu0 0.0
        %809 = vmatprep.subr.mxu0 0.0
        %810 = vmatpush1.xpose.msra.mxu0 0.0
        %811 = vmatprep.subr.mxu0 0.0
        %812 = vmatpush1.xpose.msra.mxu0 0.0
        %813 = vmatprep.subr.mxu0 0.0
        %814 = vmatpush1.xpose.msra.mxu0 0.0
        %815 = vmatprep.subr.mxu0 0.0
        %816 = vmatpush1.xpose.msra.mxu0 0.0
        %817 = vmatprep.subr.mxu0 0.0
        %818 = vmatpush1.xpose.msra.mxu0 0.0
        %819 = vmatprep.subr.mxu0 0.0
        %820 = vmatpush1.xpose.msra.mxu0 0.0
        %821 = vmatprep.subr.mxu0 0.0
        %822 = vmatpush1.xpose.msra.mxu0 0.0
        %823 = vmatprep.subr.mxu0 0.0
        %824 = vmatpush1.xpose.msra.mxu0 0.0
        %825 = vmatprep.subr.mxu0 0.0
        %826 = vmatpush1.xpose.msra.mxu0 0.0
        %827 = vmatprep.subr.mxu0 0.0
        %828 = vmatpush1.xpose.msra.mxu0 0.0
        %829 = vmatprep.subr.mxu0 0.0
        %830 = vmatpush1.xpose.msra.mxu0 0.0
        %831 = vmatprep.subr.mxu0 0.0
        %832 = vmatpush1.xpose.msra.mxu0 0.0
        %833 = vmatprep.subr.mxu0 0.0
        %834 = vmatpush1.xpose.msra.mxu0 0.0
        %835 = vmatprep.subr.mxu0 0.0
        %836 = vmatpush1.xpose.msra.mxu0 0.0
        %837 = vmatprep.subr.mxu0 0.0
        %838 = vmatpush1.xpose.msra.mxu0 0.0
        %839 = vmatprep.subr.mxu0 0.0
        %840 = vmatpush1.xpose.msra.mxu0 0.0
        %841 = vmatprep.subr.mxu0 0.0
        %842 = vmatpush1.xpose.msra.mxu0 0.0
        %843 = vmatprep.subr.mxu0 0.0
        %844 = vmatpush1.xpose.msra.mxu0 0.0
        %845 = vmatprep.subr.mxu0 0.0
        %846 = vmatpush1.xpose.msra.mxu0 0.0
        %847 = vmatprep.subr.mxu0 0.0
        %848 = vmatpush1.xpose.msra.mxu0 0.0
        %849 = vmatprep.subr.mxu0 0.0
        %850 = vmatpush1.xpose.msra.mxu0 0.0
        %851 = vmatprep.subr.mxu0 0.0
        %852 = vmatpush1.xpose.msra.mxu0 0.0
        %853 = vmatprep.subr.mxu0 0.0
        %854 = vmatpush1.xpose.msra.mxu0 0.0
        %855 = vmatprep.subr.mxu0 0.0
        %856 = vmatpush1.xpose.msra.mxu0 0.0
        %857 = vmatprep.subr.mxu0 0.0
        %858 = vmatpush1.xpose.msra.mxu0 0.0
        %859 = vmatprep.subr.mxu0 0.0
        %860 = vmatpush1.xpose.msra.mxu0 0.0
        %861 = vmatprep.subr.mxu0 0.0
        %862 = vmatpush1.xpose.msra.mxu0 0.0
        %863 = vmatprep.subr.mxu0 0.0
        %864 = vmatpush1.xpose.msra.mxu0 0.0
        %865 = vmatprep.mubr.f32.mxu0 0.0
        %866 = vmatmul.mubr.f32.gmra.mrb[0].mxu0 %v792
        %v867 = vpop.f32.mrb[0].mxu0
        %v868 = vadd.f32 %v541, %v867
        %v869 = vpop.f32.mrb[0].mxu0
        %870 = vmatprep.mubr.f32.mxu0 0.0
        %871 = vmatmul.mubr.f32.gmra.mrb[0].mxu0 %v795
        %v872 = vpop.f32.mrb[0].mxu0
        %v873 = vadd.f32 %v542, %v872
        %v874 = vpop.f32.mrb[0].mxu0
        %875 = vdwg.mxu0
        %878 = vrot.lane.b32.xlu0 %v667, 96
        %v879 = vpop.permute.xlu0 %878
        %880 = vrot.lane.b32.xlu0 %v672, 96
        %v881 = vpop.permute.xlu0 %880
        %v883 = vsel %vm699, %v689, 0
        %v886 = vsel %vm699, %v690, 0
        %v888 = vsel %vm699, %v879, 0
        %v890 = vsel %vm699, %v881, 0
        %892 = vmatprep.subr.mxu0 0.0
        %893 = vmatpush1.xpose.msra.mxu0 %v888
        %894 = vmatprep.subr.mxu0 0.0
        %895 = vmatpush1.xpose.msra.mxu0 %v890
        %896 = vmatprep.subr.mxu0 0.0
        %897 = vmatpush1.xpose.msra.mxu0 0.0
        %898 = vmatprep.subr.mxu0 0.0
        %899 = vmatpush1.xpose.msra.mxu0 0.0
        %900 = vmatprep.subr.mxu0 0.0
        %901 = vmatpush1.xpose.msra.mxu0 0.0
        %902 = vmatprep.subr.mxu0 0.0
        %903 = vmatpush1.xpose.msra.mxu0 0.0
        %904 = vmatprep.subr.mxu0 0.0
        %905 = vmatpush1.xpose.msra.mxu0 0.0
        %906 = vmatprep.subr.mxu0 0.0
        %907 = vmatpush1.xpose.msra.mxu0 0.0
        %908 = vmatprep.subr.mxu0 0.0
        %909 = vmatpush1.xpose.msra.mxu0 0.0
        %910 = vmatprep.subr.mxu0 0.0
        %911 = vmatpush1.xpose.msra.mxu0 0.0
        %912 = vmatprep.subr.mxu0 0.0
        %913 = vmatpush1.xpose.msra.mxu0 0.0
        %914 = vmatprep.subr.mxu0 0.0
        %915 = vmatpush1.xpose.msra.mxu0 0.0
        %916 = vmatprep.subr.mxu0 0.0
        %917 = vmatpush1.xpose.msra.mxu0 0.0
        %918 = vmatprep.subr.mxu0 0.0
        %919 = vmatpush1.xpose.msra.mxu0 0.0
        %920 = vmatprep.subr.mxu0 0.0
        %921 = vmatpush1.xpose.msra.mxu0 0.0
        %922 = vmatprep.subr.mxu0 0.0
        %923 = vmatpush1.xpose.msra.mxu0 0.0
        %924 = vmatprep.subr.mxu0 0.0
        %925 = vmatpush1.xpose.msra.mxu0 0.0
        %926 = vmatprep.subr.mxu0 0.0
        %927 = vmatpush1.xpose.msra.mxu0 0.0
        %928 = vmatprep.subr.mxu0 0.0
        %929 = vmatpush1.xpose.msra.mxu0 0.0
        %930 = vmatprep.subr.mxu0 0.0
        %931 = vmatpush1.xpose.msra.mxu0 0.0
        %932 = vmatprep.subr.mxu0 0.0
        %933 = vmatpush1.xpose.msra.mxu0 0.0
        %934 = vmatprep.subr.mxu0 0.0
        %935 = vmatpush1.xpose.msra.mxu0 0.0
        %936 = vmatprep.subr.mxu0 0.0
        %937 = vmatpush1.xpose.msra.mxu0 0.0
        %938 = vmatprep.subr.mxu0 0.0
        %939 = vmatpush1.xpose.msra.mxu0 0.0
        %940 = vmatprep.subr.mxu0 0.0
        %941 = vmatpush1.xpose.msra.mxu0 0.0
        %942 = vmatprep.subr.mxu0 0.0
        %943 = vmatpush1.xpose.msra.mxu0 0.0
        %944 = vmatprep.subr.mxu0 0.0
        %945 = vmatpush1.xpose.msra.mxu0 0.0
        %946 = vmatprep.subr.mxu0 0.0
        %947 = vmatpush1.xpose.msra.mxu0 0.0
        %948 = vmatprep.subr.mxu0 0.0
        %949 = vmatpush1.xpose.msra.mxu0 0.0
        %950 = vmatprep.subr.mxu0 0.0
        %951 = vmatpush1.xpose.msra.mxu0 0.0
        %952 = vmatprep.subr.mxu0 0.0
        %953 = vmatpush1.xpose.msra.mxu0 0.0
        %954 = vmatprep.subr.mxu0 0.0
        %955 = vmatpush1.xpose.msra.mxu0 0.0
        %956 = vmatprep.mubr.f32.mxu0 0.0
        %957 = vmatmul.mubr.f32.gmra.mrb[0].mxu0 %v883
        %v958 = vpop.f32.mrb[0].mxu0
        %v959 = vadd.f32 %v541, %v958
        %v960 = vpop.f32.mrb[0].mxu0
        %961 = vmatprep.mubr.f32.mxu0 0.0
        %962 = vmatmul.mubr.f32.gmra.mrb[0].mxu0 %v886
        %v963 = vpop.f32.mrb[0].mxu0
        %v964 = vadd.f32 %v542, %v963
        %v965 = vpop.f32.mrb[0].mxu0
        %966 = vdwg.mxu0
        %969 = vrot.lane.b32.xlu0 %v677, 96
        %v970 = vpop.permute.xlu0 %969
        %971 = vrot.lane.b32.xlu0 %v682, 96
        %v972 = vpop.permute.xlu0 %971
        %v974 = vsel %vm699, %v691, 0
        %v977 = vsel %vm699, %v692, 0
        %v979 = vsel %vm699, %v970, 0
        %v981 = vsel %vm699, %v972, 0
        %983 = vmatprep.subr.mxu0 0.0
        %984 = vmatpush1.xpose.msra.mxu0 %v979
        %985 = vmatprep.subr.mxu0 0.0
        %986 = vmatpush1.xpose.msra.mxu0 %v981
        %987 = vmatprep.subr.mxu0 0.0
        %988 = vmatpush1.xpose.msra.mxu0 0.0
        %989 = vmatprep.subr.mxu0 0.0
        %990 = vmatpush1.xpose.msra.mxu0 0.0
        %991 = vmatprep.subr.mxu0 0.0
        %992 = vmatpush1.xpose.msra.mxu0 0.0
        %993 = vmatprep.subr.mxu0 0.0
        %994 = vmatpush1.xpose.msra.mxu0 0.0
        %995 = vmatprep.subr.mxu0 0.0
        %996 = vmatpush1.xpose.msra.mxu0 0.0
        %997 = vmatprep.subr.mxu0 0.0
        %998 = vmatpush1.xpose.msra.mxu0 0.0
        %999 = vmatprep.subr.mxu0 0.0
        %1000 = vmatpush1.xpose.msra.mxu0 0.0
        %1001 = vmatprep.subr.mxu0 0.0
        %1002 = vmatpush1.xpose.msra.mxu0 0.0
        %1003 = vmatprep.subr.mxu0 0.0
        %1004 = vmatpush1.xpose.msra.mxu0 0.0
        %1005 = vmatprep.subr.mxu0 0.0
        %1006 = vmatpush1.xpose.msra.mxu0 0.0
        %1007 = vmatprep.subr.mxu0 0.0
        %1008 = vmatpush1.xpose.msra.mxu0 0.0
        %1009 = vmatprep.subr.mxu0 0.0
        %1010 = vmatpush1.xpose.msra.mxu0 0.0
        %1011 = vmatprep.subr.mxu0 0.0
        %1012 = vmatpush1.xpose.msra.mxu0 0.0
        %1013 = vmatprep.subr.mxu0 0.0
        %1014 = vmatpush1.xpose.msra.mxu0 0.0
        %1015 = vmatprep.subr.mxu0 0.0
        %1016 = vmatpush1.xpose.msra.mxu0 0.0
        %1017 = vmatprep.subr.mxu0 0.0
        %1018 = vmatpush1.xpose.msra.mxu0 0.0
        %1019 = vmatprep.subr.mxu0 0.0
        %1020 = vmatpush1.xpose.msra.mxu0 0.0
        %1021 = vmatprep.subr.mxu0 0.0
        %1022 = vmatpush1.xpose.msra.mxu0 0.0
        %1023 = vmatprep.subr.mxu0 0.0
        %1024 = vmatpush1.xpose.msra.mxu0 0.0
        %1025 = vmatprep.subr.mxu0 0.0
        %1026 = vmatpush1.xpose.msra.mxu0 0.0
        %1027 = vmatprep.subr.mxu0 0.0
        %1028 = vmatpush1.xpose.msra.mxu0 0.0
        %1029 = vmatprep.subr.mxu0 0.0
        %1030 = vmatpush1.xpose.msra.mxu0 0.0
        %1031 = vmatprep.subr.mxu0 0.0
        %1032 = vmatpush1.xpose.msra.mxu0 0.0
        %1033 = vmatprep.subr.mxu0 0.0
        %1034 = vmatpush1.xpose.msra.mxu0 0.0
        %1035 = vmatprep.subr.mxu0 0.0
        %1036 = vmatpush1.xpose.msra.mxu0 0.0
        %1037 = vmatprep.subr.mxu0 0.0
        %1038 = vmatpush1.xpose.msra.mxu0 0.0
        %1039 = vmatprep.subr.mxu0 0.0
        %1040 = vmatpush1.xpose.msra.mxu0 0.0
        %1041 = vmatprep.subr.mxu0 0.0
        %1042 = vmatpush1.xpose.msra.mxu0 0.0
        %1043 = vmatprep.subr.mxu0 0.0
        %1044 = vmatpush1.xpose.msra.mxu0 0.0
        %1045 = vmatprep.subr.mxu0 0.0
        %1046 = vmatpush1.xpose.msra.mxu0 0.0
        %1047 = vmatprep.mubr.f32.mxu0 0.0
        %1048 = vmatmul.mubr.f32.gmra.mrb[0].mxu0 %v974
        %v1049 = vpop.f32.mrb[0].mxu0
        %v1050 = vadd.f32 %v541, %v1049
        %v1051 = vpop.f32.mrb[0].mxu0
        %1052 = vmatprep.mubr.f32.mxu0 0.0
        %1053 = vmatmul.mubr.f32.gmra.mrb[0].mxu0 %v977
        %v1054 = vpop.f32.mrb[0].mxu0
        %v1055 = vadd.f32 %v542, %v1054
        %v1056 = vpop.f32.mrb[0].mxu0
        %1057 = vdwg.mxu0
        %vm1058 = vcmask 130048
        %v1059 = vsel %vm1058, %v777, -inf
        %1060 = vmax.xlane.f32.xlu0 %v1059
        %v1061 = vpop.xlane.xlu0 %1060
        %v1062 = vsel %vm1058, %v782, -inf
        %1063 = vmax.xlane.f32.xlu0 %v1062
        %v1064 = vpop.xlane.xlu0 %1063
        %v1065 = vsel %vm1058, %v868, -inf
        %1066 = vmax.xlane.f32.xlu0 %v1065
        %v1067 = vpop.xlane.xlu0 %1066
        %v1068 = vsel %vm1058, %v873, -inf
        %1069 = vmax.xlane.f32.xlu0 %v1068
        %v1070 = vpop.xlane.xlu0 %1069
        %v1071 = vsel %vm1058, %v959, -inf
        %1072 = vmax.xlane.f32.xlu0 %v1071
        %v1073 = vpop.xlane.xlu0 %1072
        %v1074 = vsel %vm1058, %v964, -inf
        %1075 = vmax.xlane.f32.xlu0 %v1074
        %v1076 = vpop.xlane.xlu0 %1075
        %v1077 = vsel %vm1058, %v1050, -inf
        %1078 = vmax.xlane.f32.xlu0 %v1077
        %v1079 = vpop.xlane.xlu0 %1078
        %v1080 = vsel %vm1058, %v1055, -inf
        %1081 = vmax.xlane.f32.xlu0 %v1080
        %v1082 = vpop.xlane.xlu0 %1081
        %v1083 = vsub.f32 %v777, %v1061
        %v1084 = vsub.f32 %v782, %v1064
        %v1085 = vsub.f32 %v868, %v1067
        %v1086 = vsub.f32 %v873, %v1070
        %v1087 = vsub.f32 %v959, %v1073
        %v1088 = vsub.f32 %v964, %v1076
        %v1089 = vsub.f32 %v1050, %v1079
        %v1090 = vsub.f32 %v1055, %v1082
        %v1091 = vmul.f32 %v1083, 1.442695
        %v1092 = vpow.pop %v1091
        %v1093 = vmul.f32 %v1084, 1.442695
        %v1094 = vpow.pop %v1093
        %v1095 = vmul.f32 %v1085, 1.442695
        %v1096 = vpow.pop %v1095
        %v1097 = vmul.f32 %v1086, 1.442695
        %v1098 = vpow.pop %v1097
        %v1099 = vmul.f32 %v1087, 1.442695
        %v1100 = vpow.pop %v1099
        %v1101 = vmul.f32 %v1088, 1.442695
        %v1102 = vpow.pop %v1101
        %v1103 = vmul.f32 %v1089, 1.442695
        %v1104 = vpow.pop %v1103
        %v1105 = vmul.f32 %v1090, 1.442695
        %v1106 = vpow.pop %v1105
        %v1107 = vsel %vm1058, %v1092, 0.0
        %1108 = vadd.xlane.f32.xlu0 %v1107
        %v1109 = vpop.xlane.xlu0 %1108
        %v1110 = vsel %vm1058, %v1094, 0.0
        %1111 = vadd.xlane.f32.xlu0 %v1110
        %v1112 = vpop.xlane.xlu0 %1111
        %v1113 = vsel %vm1058, %v1096, 0.0
        %1114 = vadd.xlane.f32.xlu0 %v1113
        %v1115 = vpop.xlane.xlu0 %1114
        %v1116 = vsel %vm1058, %v1098, 0.0
        %1117 = vadd.xlane.f32.xlu0 %v1116
        %v1118 = vpop.xlane.xlu0 %1117
        %v1119 = vsel %vm1058, %v1100, 0.0
        %1120 = vadd.xlane.f32.xlu0 %v1119
        %v1121 = vpop.xlane.xlu0 %1120
        %v1122 = vsel %vm1058, %v1102, 0.0
        %1123 = vadd.xlane.f32.xlu0 %v1122
        %v1124 = vpop.xlane.xlu0 %1123
        %v1125 = vsel %vm1058, %v1104, 0.0
        %1126 = vadd.xlane.f32.xlu0 %v1125
        %v1127 = vpop.xlane.xlu0 %1126
        %v1128 = vsel %vm1058, %v1106, 0.0
        %1129 = vadd.xlane.f32.xlu0 %v1128
        %v1130 = vpop.xlane.xlu0 %1129
        %v1131 = vrcp.pop %v1109
        %v1132 = vmul.f32 %v1092, %v1131
        %v1133 = vrcp.pop %v1112
        %v1134 = vmul.f32 %v1094, %v1133
        %v1135 = vrcp.pop %v1115
        %v1136 = vmul.f32 %v1096, %v1135
        %v1137 = vrcp.pop %v1118
        %v1138 = vmul.f32 %v1098, %v1137
        %v1139 = vrcp.pop %v1121
        %v1140 = vmul.f32 %v1100, %v1139
        %v1141 = vrcp.pop %v1124
        %v1142 = vmul.f32 %v1102, %v1141
        %v1143 = vrcp.pop %v1127
        %v1144 = vmul.f32 %v1104, %v1143
        %v1145 = vrcp.pop %v1130
        %v1146 = vmul.f32 %v1106, %v1145
        %1147 = vrot.lane.b32.xlu0 %v647, 64
        %v1148 = vpop.permute.xlu0 %1147
        %1149 = vrot.lane.b32.xlu0 %v652, 64
        %v1150 = vpop.permute.xlu0 %1149
        %v1154 = vsel %vm1058, %v1132, 0
        %v1157 = vsel %vm1058, %v1134, 0
        %1159 = vmatprep.subr.mxu0 0.0
        %1160 = vmatpush1.msra.mxu0 %v1148
        %1161 = vmatprep.subr.mxu0 0.0
        %1162 = vmatpush1.msra.mxu0 %v1150
        %1163 = vmatprep.subr.mxu0 0.0
        %1164 = vmatpush1.msra.mxu0 0.0
        %1165 = vmatprep.subr.mxu0 0.0
        %1166 = vmatpush1.msra.mxu0 0.0
        %1167 = vmatprep.subr.mxu0 0.0
        %1168 = vmatpush1.msra.mxu0 0.0
        %1169 = vmatprep.subr.mxu0 0.0
        %1170 = vmatpush1.msra.mxu0 0.0
        %1171 = vmatprep.subr.mxu0 0.0
        %1172 = vmatpush1.msra.mxu0 0.0
        %1173 = vmatprep.subr.mxu0 0.0
        %1174 = vmatpush1.msra.mxu0 0.0
        %1175 = vmatprep.subr.mxu0 0.0
        %1176 = vmatpush1.msra.mxu0 0.0
        %1177 = vmatprep.subr.mxu0 0.0
        %1178 = vmatpush1.msra.mxu0 0.0
        %1179 = vmatprep.subr.mxu0 0.0
        %1180 = vmatpush1.msra.mxu0 0.0
        %1181 = vmatprep.subr.mxu0 0.0
        %1182 = vmatpush1.msra.mxu0 0.0
        %1183 = vmatprep.subr.mxu0 0.0
        %1184 = vmatpush1.msra.mxu0 0.0
        %1185 = vmatprep.subr.mxu0 0.0
        %1186 = vmatpush1.msra.mxu0 0.0
        %1187 = vmatprep.subr.mxu0 0.0
        %1188 = vmatpush1.msra.mxu0 0.0
        %1189 = vmatprep.subr.mxu0 0.0
        %1190 = vmatpush1.msra.mxu0 0.0
        %1191 = vmatprep.subr.mxu0 0.0
        %1192 = vmatpush1.msra.mxu0 0.0
        %1193 = vmatprep.subr.mxu0 0.0
        %1194 = vmatpush1.msra.mxu0 0.0
        %1195 = vmatprep.subr.mxu0 0.0
        %1196 = vmatpush1.msra.mxu0 0.0
        %1197 = vmatprep.subr.mxu0 0.0
        %1198 = vmatpush1.msra.mxu0 0.0
        %1199 = vmatprep.subr.mxu0 0.0
        %1200 = vmatpush1.msra.mxu0 0.0
        %1201 = vmatprep.subr.mxu0 0.0
        %1202 = vmatpush1.msra.mxu0 0.0
        %1203 = vmatprep.subr.mxu0 0.0
        %1204 = vmatpush1.msra.mxu0 0.0
        %1205 = vmatprep.subr.mxu0 0.0
        %1206 = vmatpush1.msra.mxu0 0.0
        %1207 = vmatprep.subr.mxu0 0.0
        %1208 = vmatpush1.msra.mxu0 0.0
        %1209 = vmatprep.subr.mxu0 0.0
        %1210 = vmatpush1.msra.mxu0 0.0
        %1211 = vmatprep.subr.mxu0 0.0
        %1212 = vmatpush1.msra.mxu0 0.0
        %1213 = vmatprep.subr.mxu0 0.0
        %1214 = vmatpush1.msra.mxu0 0.0
        %1215 = vmatprep.subr.mxu0 0.0
        %1216 = vmatpush1.msra.mxu0 0.0
        %1217 = vmatprep.subr.mxu0 0.0
        %1218 = vmatpush1.msra.mxu0 0.0
        %1219 = vmatprep.subr.mxu0 0.0
        %1220 = vmatpush1.msra.mxu0 0.0
        %1221 = vmatprep.subr.mxu0 0.0
        %1222 = vmatpush1.msra.mxu0 0.0
        %1223 = vmatprep.mubr.f32.mxu0 0.0
        %1224 = vmatmul.mubr.f32.gmra.mrb[0].mxu0 %v1154
        %v1225 = vpop.f32.mrb[0].mxu0
        %v1226 = vadd.f32 0.0, %v1225
        %v1227 = vpop.f32.mrb[0].mxu0
        %1228 = vmatprep.mubr.f32.mxu0 0.0
        %1229 = vmatmul.mubr.f32.gmra.mrb[0].mxu0 %v1157
        %v1230 = vpop.f32.mrb[0].mxu0
        %v1231 = vadd.f32 0.0, %v1230
        %v1232 = vpop.f32.mrb[0].mxu0
        %1233 = vdwg.mxu0
        %1234 = vrot.lane.b32.xlu0 %v657, 64
        %v1235 = vpop.permute.xlu0 %1234
        %1236 = vrot.lane.b32.xlu0 %v662, 64
        %v1237 = vpop.permute.xlu0 %1236
        %v1241 = vsel %vm1058, %v1136, 0
        %v1244 = vsel %vm1058, %v1138, 0
        %1246 = vmatprep.subr.mxu0 0.0
        %1247 = vmatpush1.msra.mxu0 %v1235
        %1248 = vmatprep.subr.mxu0 0.0
        %1249 = vmatpush1.msra.mxu0 %v1237
        %1250 = vmatprep.subr.mxu0 0.0
        %1251 = vmatpush1.msra.mxu0 0.0
        %1252 = vmatprep.subr.mxu0 0.0
        %1253 = vmatpush1.msra.mxu0 0.0
        %1254 = vmatprep.subr.mxu0 0.0
        %1255 = vmatpush1.msra.mxu0 0.0
        %1256 = vmatprep.subr.mxu0 0.0
        %1257 = vmatpush1.msra.mxu0 0.0
        %1258 = vmatprep.subr.mxu0 0.0
        %1259 = vmatpush1.msra.mxu0 0.0
        %1260 = vmatprep.subr.mxu0 0.0
        %1261 = vmatpush1.msra.mxu0 0.0
        %1262 = vmatprep.subr.mxu0 0.0
        %1263 = vmatpush1.msra.mxu0 0.0
        %1264 = vmatprep.subr.mxu0 0.0
        %1265 = vmatpush1.msra.mxu0 0.0
        %1266 = vmatprep.subr.mxu0 0.0
        %1267 = vmatpush1.msra.mxu0 0.0
        %1268 = vmatprep.subr.mxu0 0.0
        %1269 = vmatpush1.msra.mxu0 0.0
        %1270 = vmatprep.subr.mxu0 0.0
        %1271 = vmatpush1.msra.mxu0 0.0
        %1272 = vmatprep.subr.mxu0 0.0
        %1273 = vmatpush1.msra.mxu0 0.0
        %1274 = vmatprep.subr.mxu0 0.0
        %1275 = vmatpush1.msra.mxu0 0.0
        %1276 = vmatprep.subr.mxu0 0.0
        %1277 = vmatpush1.msra.mxu0 0.0
        %1278 = vmatprep.subr.mxu0 0.0
        %1279 = vmatpush1.msra.mxu0 0.0
        %1280 = vmatprep.subr.mxu0 0.0
        %1281 = vmatpush1.msra.mxu0 0.0
        %1282 = vmatprep.subr.mxu0 0.0
        %1283 = vmatpush1.msra.mxu0 0.0
        %1284 = vmatprep.subr.mxu0 0.0
        %1285 = vmatpush1.msra.mxu0 0.0
        %1286 = vmatprep.subr.mxu0 0.0
        %1287 = vmatpush1.msra.mxu0 0.0
        %1288 = vmatprep.subr.mxu0 0.0
        %1289 = vmatpush1.msra.mxu0 0.0
        %1290 = vmatprep.subr.mxu0 0.0
        %1291 = vmatpush1.msra.mxu0 0.0
        %1292 = vmatprep.subr.mxu0 0.0
        %1293 = vmatpush1.msra.mxu0 0.0
        %1294 = vmatprep.subr.mxu0 0.0
        %1295 = vmatpush1.msra.mxu0 0.0
        %1296 = vmatprep.subr.mxu0 0.0
        %1297 = vmatpush1.msra.mxu0 0.0
        %1298 = vmatprep.subr.mxu0 0.0
        %1299 = vmatpush1.msra.mxu0 0.0
        %1300 = vmatprep.subr.mxu0 0.0
        %1301 = vmatpush1.msra.mxu0 0.0
        %1302 = vmatprep.subr.mxu0 0.0
        %1303 = vmatpush1.msra.mxu0 0.0
        %1304 = vmatprep.subr.mxu0 0.0
        %1305 = vmatpush1.msra.mxu0 0.0
        %1306 = vmatprep.subr.mxu0 0.0
        %1307 = vmatpush1.msra.mxu0 0.0
        %1308 = vmatprep.subr.mxu0 0.0
        %1309 = vmatpush1.msra.mxu0 0.0
        %1310 = vmatprep.mubr.f32.mxu0 0.0
        %1311 = vmatmul.mubr.f32.gmra.mrb[0].mxu0 %v1241
        %v1312 = vpop.f32.mrb[0].mxu0
        %v1313 = vadd.f32 0.0, %v1312
        %v1314 = vpop.f32.mrb[0].mxu0
        %1315 = vmatprep.mubr.f32.mxu0 0.0
        %1316 = vmatmul.mubr.f32.gmra.mrb[0].mxu0 %v1244
        %v1317 = vpop.f32.mrb[0].mxu0
        %v1318 = vadd.f32 0.0, %v1317
        %v1319 = vpop.f32.mrb[0].mxu0
        %1320 = vdwg.mxu0
        %1321 = vrot.lane.b32.xlu0 %v667, 64
        %v1322 = vpop.permute.xlu0 %1321
        %1323 = vrot.lane.b32.xlu0 %v672, 64
        %v1324 = vpop.permute.xlu0 %1323
        %v1328 = vsel %vm1058, %v1140, 0
        %v1331 = vsel %vm1058, %v1142, 0
        %1333 = vmatprep.subr.mxu0 0.0
        %1334 = vmatpush1.msra.mxu0 %v1322
        %1335 = vmatprep.subr.mxu0 0.0
        %1336 = vmatpush1.msra.mxu0 %v1324
        %1337 = vmatprep.subr.mxu0 0.0
        %1338 = vmatpush1.msra.mxu0 0.0
        %1339 = vmatprep.subr.mxu0 0.0
        %1340 = vmatpush1.msra.mxu0 0.0
        %1341 = vmatprep.subr.mxu0 0.0
        %1342 = vmatpush1.msra.mxu0 0.0
        %1343 = vmatprep.subr.mxu0 0.0
        %1344 = vmatpush1.msra.mxu0 0.0
        %1345 = vmatprep.subr.mxu0 0.0
        %1346 = vmatpush1.msra.mxu0 0.0
        %1347 = vmatprep.subr.mxu0 0.0
        %1348 = vmatpush1.msra.mxu0 0.0
        %1349 = vmatprep.subr.mxu0 0.0
        %1350 = vmatpush1.msra.mxu0 0.0
        %1351 = vmatprep.subr.mxu0 0.0
        %1352 = vmatpush1.msra.mxu0 0.0
        %1353 = vmatprep.subr.mxu0 0.0
        %1354 = vmatpush1.msra.mxu0 0.0
        %1355 = vmatprep.subr.mxu0 0.0
        %1356 = vmatpush1.msra.mxu0 0.0
        %1357 = vmatprep.subr.mxu0 0.0
        %1358 = vmatpush1.msra.mxu0 0.0
        %1359 = vmatprep.subr.mxu0 0.0
        %1360 = vmatpush1.msra.mxu0 0.0
        %1361 = vmatprep.subr.mxu0 0.0
        %1362 = vmatpush1.msra.mxu0 0.0
        %1363 = vmatprep.subr.mxu0 0.0
        %1364 = vmatpush1.msra.mxu0 0.0
        %1365 = vmatprep.subr.mxu0 0.0
        %1366 = vmatpush1.msra.mxu0 0.0
        %1367 = vmatprep.subr.mxu0 0.0
        %1368 = vmatpush1.msra.mxu0 0.0
        %1369 = vmatprep.subr.mxu0 0.0
        %1370 = vmatpush1.msra.mxu0 0.0
        %1371 = vmatprep.subr.mxu0 0.0
        %1372 = vmatpush1.msra.mxu0 0.0
        %1373 = vmatprep.subr.mxu0 0.0
        %1374 = vmatpush1.msra.mxu0 0.0
        %1375 = vmatprep.subr.mxu0 0.0
        %1376 = vmatpush1.msra.mxu0 0.0
        %1377 = vmatprep.subr.mxu0 0.0
        %1378 = vmatpush1.msra.mxu0 0.0
        %1379 = vmatprep.subr.mxu0 0.0
        %1380 = vmatpush1.msra.mxu0 0.0
        %1381 = vmatprep.subr.mxu0 0.0
        %1382 = vmatpush1.msra.mxu0 0.0
        %1383 = vmatprep.subr.mxu0 0.0
        %1384 = vmatpush1.msra.mxu0 0.0
        %1385 = vmatprep.subr.mxu0 0.0
        %1386 = vmatpush1.msra.mxu0 0.0
        %1387 = vmatprep.subr.mxu0 0.0
        %1388 = vmatpush1.msra.mxu0 0.0
        %1389 = vmatprep.subr.mxu0 0.0
        %1390 = vmatpush1.msra.mxu0 0.0
        %1391 = vmatprep.subr.mxu0 0.0
        %1392 = vmatpush1.msra.mxu0 0.0
        %1393 = vmatprep.subr.mxu0 0.0
        %1394 = vmatpush1.msra.mxu0 0.0
        %1395 = vmatprep.subr.mxu0 0.0
        %1396 = vmatpush1.msra.mxu0 0.0
        %1397 = vmatprep.mubr.f32.mxu0 0.0
        %1398 = vmatmul.mubr.f32.gmra.mrb[0].mxu0 %v1328
        %v1399 = vpop.f32.mrb[0].mxu0
        %v1400 = vadd.f32 0.0, %v1399
        %v1401 = vpop.f32.mrb[0].mxu0
        %1402 = vmatprep.mubr.f32.mxu0 0.0
        %1403 = vmatmul.mubr.f32.gmra.mrb[0].mxu0 %v1331
        %v1404 = vpop.f32.mrb[0].mxu0
        %v1405 = vadd.f32 0.0, %v1404
        %v1406 = vpop.f32.mrb[0].mxu0
        %1407 = vdwg.mxu0
        %1408 = vrot.lane.b32.xlu0 %v677, 64
        %v1409 = vpop.permute.xlu0 %1408
        %1410 = vrot.lane.b32.xlu0 %v682, 64
        %v1411 = vpop.permute.xlu0 %1410
        %v1415 = vsel %vm1058, %v1144, 0
        %v1418 = vsel %vm1058, %v1146, 0
        %1420 = vmatprep.subr.mxu0 0.0
        %1421 = vmatpush1.msra.mxu0 %v1409
        %1422 = vmatprep.subr.mxu0 0.0
        %1423 = vmatpush1.msra.mxu0 %v1411
        %1424 = vmatprep.subr.mxu0 0.0
        %1425 = vmatpush1.msra.mxu0 0.0
        %1426 = vmatprep.subr.mxu0 0.0
        %1427 = vmatpush1.msra.mxu0 0.0
        %1428 = vmatprep.subr.mxu0 0.0
        %1429 = vmatpush1.msra.mxu0 0.0
        %1430 = vmatprep.subr.mxu0 0.0
        %1431 = vmatpush1.msra.mxu0 0.0
        %1432 = vmatprep.subr.mxu0 0.0
        %1433 = vmatpush1.msra.mxu0 0.0
        %1434 = vmatprep.subr.mxu0 0.0
        %1435 = vmatpush1.msra.mxu0 0.0
        %1436 = vmatprep.subr.mxu0 0.0
        %1437 = vmatpush1.msra.mxu0 0.0
        %1438 = vmatprep.subr.mxu0 0.0
        %1439 = vmatpush1.msra.mxu0 0.0
        %1440 = vmatprep.subr.mxu0 0.0
        %1441 = vmatpush1.msra.mxu0 0.0
        %1442 = vmatprep.subr.mxu0 0.0
        %1443 = vmatpush1.msra.mxu0 0.0
        %1444 = vmatprep.subr.mxu0 0.0
        %1445 = vmatpush1.msra.mxu0 0.0
        %1446 = vmatprep.subr.mxu0 0.0
        %1447 = vmatpush1.msra.mxu0 0.0
        %1448 = vmatprep.subr.mxu0 0.0
        %1449 = vmatpush1.msra.mxu0 0.0
        %1450 = vmatprep.subr.mxu0 0.0
        %1451 = vmatpush1.msra.mxu0 0.0
        %1452 = vmatprep.subr.mxu0 0.0
        %1453 = vmatpush1.msra.mxu0 0.0
        %1454 = vmatprep.subr.mxu0 0.0
        %1455 = vmatpush1.msra.mxu0 0.0
        %1456 = vmatprep.subr.mxu0 0.0
        %1457 = vmatpush1.msra.mxu0 0.0
        %1458 = vmatprep.subr.mxu0 0.0
        %1459 = vmatpush1.msra.mxu0 0.0
        %1460 = vmatprep.subr.mxu0 0.0
        %1461 = vmatpush1.msra.mxu0 0.0
        %1462 = vmatprep.subr.mxu0 0.0
        %1463 = vmatpush1.msra.mxu0 0.0
        %1464 = vmatprep.subr.mxu0 0.0
        %1465 = vmatpush1.msra.mxu0 0.0
        %1466 = vmatprep.subr.mxu0 0.0
        %1467 = vmatpush1.msra.mxu0 0.0
        %1468 = vmatprep.subr.mxu0 0.0
        %1469 = vmatpush1.msra.mxu0 0.0
        %1470 = vmatprep.subr.mxu0 0.0
        %1471 = vmatpush1.msra.mxu0 0.0
        %1472 = vmatprep.subr.mxu0 0.0
        %1473 = vmatpush1.msra.mxu0 0.0
        %1474 = vmatprep.subr.mxu0 0.0
        %1475 = vmatpush1.msra.mxu0 0.0
        %1476 = vmatprep.subr.mxu0 0.0
        %1477 = vmatpush1.msra.mxu0 0.0
        %1478 = vmatprep.subr.mxu0 0.0
        %1479 = vmatpush1.msra.mxu0 0.0
        %1480 = vmatprep.subr.mxu0 0.0
        %1481 = vmatpush1.msra.mxu0 0.0
        %1482 = vmatprep.subr.mxu0 0.0
        %1483 = vmatpush1.msra.mxu0 0.0
        %1484 = vmatprep.mubr.f32.mxu0 0.0
        %1485 = vmatmul.mubr.f32.gmra.mrb[0].mxu0 %v1415
        %v1486 = vpop.f32.mrb[0].mxu0
        %v1487 = vadd.f32 0.0, %v1486
        %v1488 = vpop.f32.mrb[0].mxu0
        %1489 = vmatprep.mubr.f32.mxu0 0.0
        %1490 = vmatmul.mubr.f32.gmra.mrb[0].mxu0 %v1418
        %v1491 = vpop.f32.mrb[0].mxu0
        %v1492 = vadd.f32 0.0, %v1491
        %v1493 = vpop.f32.mrb[0].mxu0
        %1494 = vdwg.mxu0
        %1495 = vrot.lane.b32.xlu0 %v685, 120
        %v1496 = vpop.permute.xlu0 %1495
        %1497 = vrot.lane.b32.xlu0 %v686, 120
        %v1498 = vpop.permute.xlu0 %1497
        %1499 = vrot.lane.b32.xlu0 %v647, 88
        %v1500 = vpop.permute.xlu0 %1499
        %1501 = vrot.lane.b32.xlu0 %v652, 88
        %v1502 = vpop.permute.xlu0 %1501
        %v1503 = vsel %vm699, %v1496, 0
        %v1505 = vsel %vm699, %v1498, 0
        %v1507 = vsel %vm699, %v1500, 0
        %v1509 = vsel %vm699, %v1502, 0
        %1511 = vmatprep.subr.mxu0 0.0
        %1512 = vmatpush1.xpose.msra.mxu0 %v1507
        %1513 = vmatprep.subr.mxu0 0.0
        %1514 = vmatpush1.xpose.msra.mxu0 %v1509
        %1515 = vmatprep.subr.mxu0 0.0
        %1516 = vmatpush1.xpose.msra.mxu0 0.0
        %1517 = vmatprep.subr.mxu0 0.0
        %1518 = vmatpush1.xpose.msra.mxu0 0.0
        %1519 = vmatprep.subr.mxu0 0.0
        %1520 = vmatpush1.xpose.msra.mxu0 0.0
        %1521 = vmatprep.subr.mxu0 0.0
        %1522 = vmatpush1.xpose.msra.mxu0 0.0
        %1523 = vmatprep.subr.mxu0 0.0
        %1524 = vmatpush1.xpose.msra.mxu0 0.0
        %1525 = vmatprep.subr.mxu0 0.0
        %1526 = vmatpush1.xpose.msra.mxu0 0.0
        %1527 = vmatprep.subr.mxu0 0.0
        %1528 = vmatpush1.xpose.msra.mxu0 0.0
        %1529 = vmatprep.subr.mxu0 0.0
        %1530 = vmatpush1.xpose.msra.mxu0 0.0
        %1531 = vmatprep.subr.mxu0 0.0
        %1532 = vmatpush1.xpose.msra.mxu0 0.0
        %1533 = vmatprep.subr.mxu0 0.0
        %1534 = vmatpush1.xpose.msra.mxu0 0.0
        %1535 = vmatprep.subr.mxu0 0.0
        %1536 = vmatpush1.xpose.msra.mxu0 0.0
        %1537 = vmatprep.subr.mxu0 0.0
        %1538 = vmatpush1.xpose.msra.mxu0 0.0
        %1539 = vmatprep.subr.mxu0 0.0
        %1540 = vmatpush1.xpose.msra.mxu0 0.0
        %1541 = vmatprep.subr.mxu0 0.0
        %1542 = vmatpush1.xpose.msra.mxu0 0.0
        %1543 = vmatprep.subr.mxu0 0.0
        %1544 = vmatpush1.xpose.msra.mxu0 0.0
        %1545 = vmatprep.subr.mxu0 0.0
        %1546 = vmatpush1.xpose.msra.mxu0 0.0
        %1547 = vmatprep.subr.mxu0 0.0
        %1548 = vmatpush1.xpose.msra.mxu0 0.0
        %1549 = vmatprep.subr.mxu0 0.0
        %1550 = vmatpush1.xpose.msra.mxu0 0.0
        %1551 = vmatprep.subr.mxu0 0.0
        %1552 = vmatpush1.xpose.msra.mxu0 0.0
        %1553 = vmatprep.subr.mxu0 0.0
        %1554 = vmatpush1.xpose.msra.mxu0 0.0
        %1555 = vmatprep.subr.mxu0 0.0
        %1556 = vmatpush1.xpose.msra.mxu0 0.0
        %1557 = vmatprep.subr.mxu0 0.0
        %1558 = vmatpush1.xpose.msra.mxu0 0.0
        %1559 = vmatprep.subr.mxu0 0.0
        %1560 = vmatpush1.xpose.msra.mxu0 0.0
        %1561 = vmatprep.subr.mxu0 0.0
        %1562 = vmatpush1.xpose.msra.mxu0 0.0
        %1563 = vmatprep.subr.mxu0 0.0
        %1564 = vmatpush1.xpose.msra.mxu0 0.0
        %1565 = vmatprep.subr.mxu0 0.0
        %1566 = vmatpush1.xpose.msra.mxu0 0.0
        %1567 = vmatprep.subr.mxu0 0.0
        %1568 = vmatpush1.xpose.msra.mxu0 0.0
        %1569 = vmatprep.subr.mxu0 0.0
        %1570 = vmatpush1.xpose.msra.mxu0 0.0
        %1571 = vmatprep.subr.mxu0 0.0
        %1572 = vmatpush1.xpose.msra.mxu0 0.0
        %1573 = vmatprep.subr.mxu0 0.0
        %1574 = vmatpush1.xpose.msra.mxu0 0.0
        %1575 = vmatprep.mubr.f32.mxu0 0.0
        %1576 = vmatmul.mubr.f32.gmra.mrb[0].mxu0 %v1503
        %v1577 = vpop.f32.mrb[0].mxu0
        %v1578 = vadd.f32 %v543, %v1577
        %v1579 = vpop.f32.mrb[0].mxu0
        %1580 = vmatprep.mubr.f32.mxu0 0.0
        %1581 = vmatmul.mubr.f32.gmra.mrb[0].mxu0 %v1505
        %v1582 = vpop.f32.mrb[0].mxu0
        %v1583 = vadd.f32 %v544, %v1582
        %v1584 = vpop.f32.mrb[0].mxu0
        %1585 = vdwg.mxu0
        %1586 = vrot.lane.b32.xlu0 %v687, 120
        %v1587 = vpop.permute.xlu0 %1586
        %1588 = vrot.lane.b32.xlu0 %v688, 120
        %v1589 = vpop.permute.xlu0 %1588
        %1590 = vrot.lane.b32.xlu0 %v657, 88
        %v1591 = vpop.permute.xlu0 %1590
        %1592 = vrot.lane.b32.xlu0 %v662, 88
        %v1593 = vpop.permute.xlu0 %1592
        %v1594 = vsel %vm699, %v1587, 0
        %v1596 = vsel %vm699, %v1589, 0
        %v1598 = vsel %vm699, %v1591, 0
        %v1600 = vsel %vm699, %v1593, 0
        %1602 = vmatprep.subr.mxu0 0.0
        %1603 = vmatpush1.xpose.msra.mxu0 %v1598
        %1604 = vmatprep.subr.mxu0 0.0
        %1605 = vmatpush1.xpose.msra.mxu0 %v1600
        %1606 = vmatprep.subr.mxu0 0.0
        %1607 = vmatpush1.xpose.msra.mxu0 0.0
        %1608 = vmatprep.subr.mxu0 0.0
        %1609 = vmatpush1.xpose.msra.mxu0 0.0
        %1610 = vmatprep.subr.mxu0 0.0
        %1611 = vmatpush1.xpose.msra.mxu0 0.0
        %1612 = vmatprep.subr.mxu0 0.0
        %1613 = vmatpush1.xpose.msra.mxu0 0.0
        %1614 = vmatprep.subr.mxu0 0.0
        %1615 = vmatpush1.xpose.msra.mxu0 0.0
        %1616 = vmatprep.subr.mxu0 0.0
        %1617 = vmatpush1.xpose.msra.mxu0 0.0
        %1618 = vmatprep.subr.mxu0 0.0
        %1619 = vmatpush1.xpose.msra.mxu0 0.0
        %1620 = vmatprep.subr.mxu0 0.0
        %1621 = vmatpush1.xpose.msra.mxu0 0.0
        %1622 = vmatprep.subr.mxu0 0.0
        %1623 = vmatpush1.xpose.msra.mxu0 0.0
        %1624 = vmatprep.subr.mxu0 0.0
        %1625 = vmatpush1.xpose.msra.mxu0 0.0
        %1626 = vmatprep.subr.mxu0 0.0
        %1627 = vmatpush1.xpose.msra.mxu0 0.0
        %1628 = vmatprep.subr.mxu0 0.0
        %1629 = vmatpush1.xpose.msra.mxu0 0.0
        %1630 = vmatprep.subr.mxu0 0.0
        %1631 = vmatpush1.xpose.msra.mxu0 0.0
        %1632 = vmatprep.subr.mxu0 0.0
        %1633 = vmatpush1.xpose.msra.mxu0 0.0
        %1634 = vmatprep.subr.mxu0 0.0
        %1635 = vmatpush1.xpose.msra.mxu0 0.0
        %1636 = vmatprep.subr.mxu0 0.0
        %1637 = vmatpush1.xpose.msra.mxu0 0.0
        %1638 = vmatprep.subr.mxu0 0.0
        %1639 = vmatpush1.xpose.msra.mxu0 0.0
        %1640 = vmatprep.subr.mxu0 0.0
        %1641 = vmatpush1.xpose.msra.mxu0 0.0
        %1642 = vmatprep.subr.mxu0 0.0
        %1643 = vmatpush1.xpose.msra.mxu0 0.0
        %1644 = vmatprep.subr.mxu0 0.0
        %1645 = vmatpush1.xpose.msra.mxu0 0.0
        %1646 = vmatprep.subr.mxu0 0.0
        %1647 = vmatpush1.xpose.msra.mxu0 0.0
        %1648 = vmatprep.subr.mxu0 0.0
        %1649 = vmatpush1.xpose.msra.mxu0 0.0
        %1650 = vmatprep.subr.mxu0 0.0
        %1651 = vmatpush1.xpose.msra.mxu0 0.0
        %1652 = vmatprep.subr.mxu0 0.0
        %1653 = vmatpush1.xpose.msra.mxu0 0.0
        %1654 = vmatprep.subr.mxu0 0.0
        %1655 = vmatpush1.xpose.msra.mxu0 0.0
        %1656 = vmatprep.subr.mxu0 0.0
        %1657 = vmatpush1.xpose.msra.mxu0 0.0
        %1658 = vmatprep.subr.mxu0 0.0
        %1659 = vmatpush1.xpose.msra.mxu0 0.0
        %1660 = vmatprep.subr.mxu0 0.0
        %1661 = vmatpush1.xpose.msra.mxu0 0.0
        %1662 = vmatprep.subr.mxu0 0.0
        %1663 = vmatpush1.xpose.msra.mxu0 0.0
        %1664 = vmatprep.subr.mxu0 0.0
        %1665 = vmatpush1.xpose.msra.mxu0 0.0
        %1666 = vmatprep.mubr.f32.mxu0 0.0
        %1667 = vmatmul.mubr.f32.gmra.mrb[0].mxu0 %v1594
        %v1668 = vpop.f32.mrb[0].mxu0
        %v1669 = vadd.f32 %v543, %v1668
        %v1670 = vpop.f32.mrb[0].mxu0
        %1671 = vmatprep.mubr.f32.mxu0 0.0
        %1672 = vmatmul.mubr.f32.gmra.mrb[0].mxu0 %v1596
        %v1673 = vpop.f32.mrb[0].mxu0
        %v1674 = vadd.f32 %v544, %v1673
        %v1675 = vpop.f32.mrb[0].mxu0
        %1676 = vdwg.mxu0
        %1677 = vrot.lane.b32.xlu0 %v689, 120
        %v1678 = vpop.permute.xlu0 %1677
        %1679 = vrot.lane.b32.xlu0 %v690, 120
        %v1680 = vpop.permute.xlu0 %1679
        %1681 = vrot.lane.b32.xlu0 %v667, 88
        %v1682 = vpop.permute.xlu0 %1681
        %1683 = vrot.lane.b32.xlu0 %v672, 88
        %v1684 = vpop.permute.xlu0 %1683
        %v1685 = vsel %vm699, %v1678, 0
        %v1687 = vsel %vm699, %v1680, 0
        %v1689 = vsel %vm699, %v1682, 0
        %v1691 = vsel %vm699, %v1684, 0
        %1693 = vmatprep.subr.mxu0 0.0
        %1694 = vmatpush1.xpose.msra.mxu0 %v1689
        %1695 = vmatprep.subr.mxu0 0.0
        %1696 = vmatpush1.xpose.msra.mxu0 %v1691
        %1697 = vmatprep.subr.mxu0 0.0
        %1698 = vmatpush1.xpose.msra.mxu0 0.0
        %1699 = vmatprep.subr.mxu0 0.0
        %1700 = vmatpush1.xpose.msra.mxu0 0.0
        %1701 = vmatprep.subr.mxu0 0.0
        %1702 = vmatpush1.xpose.msra.mxu0 0.0
        %1703 = vmatprep.subr.mxu0 0.0
        %1704 = vmatpush1.xpose.msra.mxu0 0.0
        %1705 = vmatprep.subr.mxu0 0.0
        %1706 = vmatpush1.xpose.msra.mxu0 0.0
        %1707 = vmatprep.subr.mxu0 0.0
        %1708 = vmatpush1.xpose.msra.mxu0 0.0
        %1709 = vmatprep.subr.mxu0 0.0
        %1710 = vmatpush1.xpose.msra.mxu0 0.0
        %1711 = vmatprep.subr.mxu0 0.0
        %1712 = vmatpush1.xpose.msra.mxu0 0.0
        %1713 = vmatprep.subr.mxu0 0.0
        %1714 = vmatpush1.xpose.msra.mxu0 0.0
        %1715 = vmatprep.subr.mxu0 0.0
        %1716 = vmatpush1.xpose.msra.mxu0 0.0
        %1717 = vmatprep.subr.mxu0 0.0
        %1718 = vmatpush1.xpose.msra.mxu0 0.0
        %1719 = vmatprep.subr.mxu0 0.0
        %1720 = vmatpush1.xpose.msra.mxu0 0.0
        %1721 = vmatprep.subr.mxu0 0.0
        %1722 = vmatpush1.xpose.msra.mxu0 0.0
        %1723 = vmatprep.subr.mxu0 0.0
        %1724 = vmatpush1.xpose.msra.mxu0 0.0
        %1725 = vmatprep.subr.mxu0 0.0
        %1726 = vmatpush1.xpose.msra.mxu0 0.0
        %1727 = vmatprep.subr.mxu0 0.0
        %1728 = vmatpush1.xpose.msra.mxu0 0.0
        %1729 = vmatprep.subr.mxu0 0.0
        %1730 = vmatpush1.xpose.msra.mxu0 0.0
        %1731 = vmatprep.subr.mxu0 0.0
        %1732 = vmatpush1.xpose.msra.mxu0 0.0
        %1733 = vmatprep.subr.mxu0 0.0
        %1734 = vmatpush1.xpose.msra.mxu0 0.0
        %1735 = vmatprep.subr.mxu0 0.0
        %1736 = vmatpush1.xpose.msra.mxu0 0.0
        %1737 = vmatprep.subr.mxu0 0.0
        %1738 = vmatpush1.xpose.msra.mxu0 0.0
        %1739 = vmatprep.subr.mxu0 0.0
        %1740 = vmatpush1.xpose.msra.mxu0 0.0
        %1741 = vmatprep.subr.mxu0 0.0
        %1742 = vmatpush1.xpose.msra.mxu0 0.0
        %1743 = vmatprep.subr.mxu0 0.0
        %1744 = vmatpush1.xpose.msra.mxu0 0.0
        %1745 = vmatprep.subr.mxu0 0.0
        %1746 = vmatpush1.xpose.msra.mxu0 0.0
        %1747 = vmatprep.subr.mxu0 0.0
        %1748 = vmatpush1.xpose.msra.mxu0 0.0
        %1749 = vmatprep.subr.mxu0 0.0
        %1750 = vmatpush1.xpose.msra.mxu0 0.0
        %1751 = vmatprep.subr.mxu0 0.0
        %1752 = vmatpush1.xpose.msra.mxu0 0.0
        %1753 = vmatprep.subr.mxu0 0.0
        %1754 = vmatpush1.xpose.msra.mxu0 0.0
        %1755 = vmatprep.subr.mxu0 0.0
        %1756 = vmatpush1.xpose.msra.mxu0 0.0
        %1757 = vmatprep.mubr.f32.mxu0 0.0
        %1758 = vmatmul.mubr.f32.gmra.mrb[0].mxu0 %v1685
        %v1759 = vpop.f32.mrb[0].mxu0
        %v1760 = vadd.f32 %v543, %v1759
        %v1761 = vpop.f32.mrb[0].mxu0
        %1762 = vmatprep.mubr.f32.mxu0 0.0
        %1763 = vmatmul.mubr.f32.gmra.mrb[0].mxu0 %v1687
        %v1764 = vpop.f32.mrb[0].mxu0
        %v1765 = vadd.f32 %v544, %v1764
        %v1766 = vpop.f32.mrb[0].mxu0
        %1767 = vdwg.mxu0
        %1768 = vrot.lane.b32.xlu0 %v691, 120
        %v1769 = vpop.permute.xlu0 %1768
        %1770 = vrot.lane.b32.xlu0 %v692, 120
        %v1771 = vpop.permute.xlu0 %1770
        %1772 = vrot.lane.b32.xlu0 %v677, 88
        %v1773 = vpop.permute.xlu0 %1772
        %1774 = vrot.lane.b32.xlu0 %v682, 88
        %v1775 = vpop.permute.xlu0 %1774
        %v1776 = vsel %vm699, %v1769, 0
        %v1778 = vsel %vm699, %v1771, 0
        %v1780 = vsel %vm699, %v1773, 0
        %v1782 = vsel %vm699, %v1775, 0
        %1784 = vmatprep.subr.mxu0 0.0
        %1785 = vmatpush1.xpose.msra.mxu0 %v1780
        %1786 = vmatprep.subr.mxu0 0.0
        %1787 = vmatpush1.xpose.msra.mxu0 %v1782
        %1788 = vmatprep.subr.mxu0 0.0
        %1789 = vmatpush1.xpose.msra.mxu0 0.0
        %1790 = vmatprep.subr.mxu0 0.0
        %1791 = vmatpush1.xpose.msra.mxu0 0.0
        %1792 = vmatprep.subr.mxu0 0.0
        %1793 = vmatpush1.xpose.msra.mxu0 0.0
        %1794 = vmatprep.subr.mxu0 0.0
        %1795 = vmatpush1.xpose.msra.mxu0 0.0
        %1796 = vmatprep.subr.mxu0 0.0
        %1797 = vmatpush1.xpose.msra.mxu0 0.0
        %1798 = vmatprep.subr.mxu0 0.0
        %1799 = vmatpush1.xpose.msra.mxu0 0.0
        %1800 = vmatprep.subr.mxu0 0.0
        %1801 = vmatpush1.xpose.msra.mxu0 0.0
        %1802 = vmatprep.subr.mxu0 0.0
        %1803 = vmatpush1.xpose.msra.mxu0 0.0
        %1804 = vmatprep.subr.mxu0 0.0
        %1805 = vmatpush1.xpose.msra.mxu0 0.0
        %1806 = vmatprep.subr.mxu0 0.0
        %1807 = vmatpush1.xpose.msra.mxu0 0.0
        %1808 = vmatprep.subr.mxu0 0.0
        %1809 = vmatpush1.xpose.msra.mxu0 0.0
        %1810 = vmatprep.subr.mxu0 0.0
        %1811 = vmatpush1.xpose.msra.mxu0 0.0
        %1812 = vmatprep.subr.mxu0 0.0
        %1813 = vmatpush1.xpose.msra.mxu0 0.0
        %1814 = vmatprep.subr.mxu0 0.0
        %1815 = vmatpush1.xpose.msra.mxu0 0.0
        %1816 = vmatprep.subr.mxu0 0.0
        %1817 = vmatpush1.xpose.msra.mxu0 0.0
        %1818 = vmatprep.subr.mxu0 0.0
        %1819 = vmatpush1.xpose.msra.mxu0 0.0
        %1820 = vmatprep.subr.mxu0 0.0
        %1821 = vmatpush1.xpose.msra.mxu0 0.0
        %1822 = vmatprep.subr.mxu0 0.0
        %1823 = vmatpush1.xpose.msra.mxu0 0.0
        %1824 = vmatprep.subr.mxu0 0.0
        %1825 = vmatpush1.xpose.msra.mxu0 0.0
        %1826 = vmatprep.subr.mxu0 0.0
        %1827 = vmatpush1.xpose.msra.mxu0 0.0
        %1828 = vmatprep.subr.mxu0 0.0
        %1829 = vmatpush1.xpose.msra.mxu0 0.0
        %1830 = vmatprep.subr.mxu0 0.0
        %1831 = vmatpush1.xpose.msra.mxu0 0.0
        %1832 = vmatprep.subr.mxu0 0.0
        %1833 = vmatpush1.xpose.msra.mxu0 0.0
        %1834 = vmatprep.subr.mxu0 0.0
        %1835 = vmatpush1.xpose.msra.mxu0 0.0
        %1836 = vmatprep.subr.mxu0 0.0
        %1837 = vmatpush1.xpose.msra.mxu0 0.0
        %1838 = vmatprep.subr.mxu0 0.0
        %1839 = vmatpush1.xpose.msra.mxu0 0.0
        %1840 = vmatprep.subr.mxu0 0.0
        %1841 = vmatpush1.xpose.msra.mxu0 0.0
        %1842 = vmatprep.subr.mxu0 0.0
        %1843 = vmatpush1.xpose.msra.mxu0 0.0
        %1844 = vmatprep.subr.mxu0 0.0
        %1845 = vmatpush1.xpose.msra.mxu0 0.0
        %1846 = vmatprep.subr.mxu0 0.0
        %1847 = vmatpush1.xpose.msra.mxu0 0.0
        %1848 = vmatprep.mubr.f32.mxu0 0.0
        %1849 = vmatmul.mubr.f32.gmra.mrb[0].mxu0 %v1776
        %v1850 = vpop.f32.mrb[0].mxu0
        %v1851 = vadd.f32 %v543, %v1850
        %v1852 = vpop.f32.mrb[0].mxu0
        %1853 = vmatprep.mubr.f32.mxu0 0.0
        %1854 = vmatmul.mubr.f32.gmra.mrb[0].mxu0 %v1778
        %v1855 = vpop.f32.mrb[0].mxu0
        %v1856 = vadd.f32 %v544, %v1855
        %v1857 = vpop.f32.mrb[0].mxu0
        %1858 = vdwg.mxu0
        %v1859 = vsel %vm1058, %v1578, -inf
        %1860 = vmax.xlane.f32.xlu0 %v1859
        %v1861 = vpop.xlane.xlu0 %1860
        %v1862 = vsel %vm1058, %v1583, -inf
        %1863 = vmax.xlane.f32.xlu0 %v1862
        %v1864 = vpop.xlane.xlu0 %1863
        %v1865 = vsel %vm1058, %v1669, -inf
        %1866 = vmax.xlane.f32.xlu0 %v1865
        %v1867 = vpop.xlane.xlu0 %1866
        %v1868 = vsel %vm1058, %v1674, -inf
        %1869 = vmax.xlane.f32.xlu0 %v1868
        %v1870 = vpop.xlane.xlu0 %1869
        %v1871 = vsel %vm1058, %v1760, -inf
        %1872 = vmax.xlane.f32.xlu0 %v1871
        %v1873 = vpop.xlane.xlu0 %1872
        %v1874 = vsel %vm1058, %v1765, -inf
        %1875 = vmax.xlane.f32.xlu0 %v1874
        %v1876 = vpop.xlane.xlu0 %1875
        %v1877 = vsel %vm1058, %v1851, -inf
        %1878 = vmax.xlane.f32.xlu0 %v1877
        %v1879 = vpop.xlane.xlu0 %1878
        %v1880 = vsel %vm1058, %v1856, -inf
        %1881 = vmax.xlane.f32.xlu0 %v1880
        %v1882 = vpop.xlane.xlu0 %1881
        %v1883 = vsub.f32 %v1578, %v1861
        %v1884 = vsub.f32 %v1583, %v1864
        %v1885 = vsub.f32 %v1669, %v1867
        %v1886 = vsub.f32 %v1674, %v1870
        %v1887 = vsub.f32 %v1760, %v1873
        %v1888 = vsub.f32 %v1765, %v1876
        %v1889 = vsub.f32 %v1851, %v1879
        %v1890 = vsub.f32 %v1856, %v1882
        %v1891 = vmul.f32 %v1883, 1.442695
        %v1892 = vpow.pop %v1891
        %v1893 = vmul.f32 %v1884, 1.442695
        %v1894 = vpow.pop %v1893
        %v1895 = vmul.f32 %v1885, 1.442695
        %v1896 = vpow.pop %v1895
        %v1897 = vmul.f32 %v1886, 1.442695
        %v1898 = vpow.pop %v1897
        %v1899 = vmul.f32 %v1887, 1.442695
        %v1900 = vpow.pop %v1899
        %v1901 = vmul.f32 %v1888, 1.442695
        %v1902 = vpow.pop %v1901
        %v1903 = vmul.f32 %v1889, 1.442695
        %v1904 = vpow.pop %v1903
        %v1905 = vmul.f32 %v1890, 1.442695
        %v1906 = vpow.pop %v1905
        %v1907 = vsel %vm1058, %v1892, 0.0
        %1908 = vadd.xlane.f32.xlu0 %v1907
        %v1909 = vpop.xlane.xlu0 %1908
        %v1910 = vsel %vm1058, %v1894, 0.0
        %1911 = vadd.xlane.f32.xlu0 %v1910
        %v1912 = vpop.xlane.xlu0 %1911
        %v1913 = vsel %vm1058, %v1896, 0.0
        %1914 = vadd.xlane.f32.xlu0 %v1913
        %v1915 = vpop.xlane.xlu0 %1914
        %v1916 = vsel %vm1058, %v1898, 0.0
        %1917 = vadd.xlane.f32.xlu0 %v1916
        %v1918 = vpop.xlane.xlu0 %1917
        %v1919 = vsel %vm1058, %v1900, 0.0
        %1920 = vadd.xlane.f32.xlu0 %v1919
        %v1921 = vpop.xlane.xlu0 %1920
        %v1922 = vsel %vm1058, %v1902, 0.0
        %1923 = vadd.xlane.f32.xlu0 %v1922
        %v1924 = vpop.xlane.xlu0 %1923
        %v1925 = vsel %vm1058, %v1904, 0.0
        %1926 = vadd.xlane.f32.xlu0 %v1925
        %v1927 = vpop.xlane.xlu0 %1926
        %v1928 = vsel %vm1058, %v1906, 0.0
        %1929 = vadd.xlane.f32.xlu0 %v1928
        %v1930 = vpop.xlane.xlu0 %1929
        %v1931 = vrcp.pop %v1909
        %v1932 = vmul.f32 %v1892, %v1931
        %v1933 = vrcp.pop %v1912
        %v1934 = vmul.f32 %v1894, %v1933
        %v1935 = vrcp.pop %v1915
        %v1936 = vmul.f32 %v1896, %v1935
        %v1937 = vrcp.pop %v1918
        %v1938 = vmul.f32 %v1898, %v1937
        %v1939 = vrcp.pop %v1921
        %v1940 = vmul.f32 %v1900, %v1939
        %v1941 = vrcp.pop %v1924
        %v1942 = vmul.f32 %v1902, %v1941
        %v1943 = vrcp.pop %v1927
        %v1944 = vmul.f32 %v1904, %v1943
        %v1945 = vrcp.pop %v1930
        %v1946 = vmul.f32 %v1906, %v1945
        %1947 = vrot.lane.b32.xlu0 %v647, 56
        %v1948 = vpop.permute.xlu0 %1947
        %1949 = vrot.lane.b32.xlu0 %v652, 56
        %v1950 = vpop.permute.xlu0 %1949
        %v1954 = vsel %vm1058, %v1932, 0
        %v1957 = vsel %vm1058, %v1934, 0
        %1959 = vmatprep.subr.mxu0 0.0
        %1960 = vmatpush1.msra.mxu0 %v1948
        %1961 = vmatprep.subr.mxu0 0.0
        %1962 = vmatpush1.msra.mxu0 %v1950
        %1963 = vmatprep.subr.mxu0 0.0
        %1964 = vmatpush1.msra.mxu0 0.0
        %1965 = vmatprep.subr.mxu0 0.0
        %1966 = vmatpush1.msra.mxu0 0.0
        %1967 = vmatprep.subr.mxu0 0.0
        %1968 = vmatpush1.msra.mxu0 0.0
        %1969 = vmatprep.subr.mxu0 0.0
        %1970 = vmatpush1.msra.mxu0 0.0
        %1971 = vmatprep.subr.mxu0 0.0
        %1972 = vmatpush1.msra.mxu0 0.0
        %1973 = vmatprep.subr.mxu0 0.0
        %1974 = vmatpush1.msra.mxu0 0.0
        %1975 = vmatprep.subr.mxu0 0.0
        %1976 = vmatpush1.msra.mxu0 0.0
        %1977 = vmatprep.subr.mxu0 0.0
        %1978 = vmatpush1.msra.mxu0 0.0
        %1979 = vmatprep.subr.mxu0 0.0
        %1980 = vmatpush1.msra.mxu0 0.0
        %1981 = vmatprep.subr.mxu0 0.0
        %1982 = vmatpush1.msra.mxu0 0.0
        %1983 = vmatprep.subr.mxu0 0.0
        %1984 = vmatpush1.msra.mxu0 0.0
        %1985 = vmatprep.subr.mxu0 0.0
        %1986 = vmatpush1.msra.mxu0 0.0
        %1987 = vmatprep.subr.mxu0 0.0
        %1988 = vmatpush1.msra.mxu0 0.0
        %1989 = vmatprep.subr.mxu0 0.0
        %1990 = vmatpush1.msra.mxu0 0.0
        %1991 = vmatprep.subr.mxu0 0.0
        %1992 = vmatpush1.msra.mxu0 0.0
        %1993 = vmatprep.subr.mxu0 0.0
        %1994 = vmatpush1.msra.mxu0 0.0
        %1995 = vmatprep.subr.mxu0 0.0
        %1996 = vmatpush1.msra.mxu0 0.0
        %1997 = vmatprep.subr.mxu0 0.0
        %1998 = vmatpush1.msra.mxu0 0.0
        %1999 = vmatprep.subr.mxu0 0.0
        %2000 = vmatpush1.msra.mxu0 0.0
        %2001 = vmatprep.subr.mxu0 0.0
        %2002 = vmatpush1.msra.mxu0 0.0
        %2003 = vmatprep.subr.mxu0 0.0
        %2004 = vmatpush1.msra.mxu0 0.0
        %2005 = vmatprep.subr.mxu0 0.0
        %2006 = vmatpush1.msra.mxu0 0.0
        %2007 = vmatprep.subr.mxu0 0.0
        %2008 = vmatpush1.msra.mxu0 0.0
        %2009 = vmatprep.subr.mxu0 0.0
        %2010 = vmatpush1.msra.mxu0 0.0
        %2011 = vmatprep.subr.mxu0 0.0
        %2012 = vmatpush1.msra.mxu0 0.0
        %2013 = vmatprep.subr.mxu0 0.0
        %2014 = vmatpush1.msra.mxu0 0.0
        %2015 = vmatprep.subr.mxu0 0.0
        %2016 = vmatpush1.msra.mxu0 0.0
        %2017 = vmatprep.subr.mxu0 0.0
        %2018 = vmatpush1.msra.mxu0 0.0
        %2019 = vmatprep.subr.mxu0 0.0
        %2020 = vmatpush1.msra.mxu0 0.0
        %2021 = vmatprep.subr.mxu0 0.0
        %2022 = vmatpush1.msra.mxu0 0.0
        %2023 = vmatprep.mubr.f32.mxu0 0.0
        %2024 = vmatmul.mubr.f32.gmra.mrb[0].mxu0 %v1954
        %v2025 = vpop.f32.mrb[0].mxu0
        %v2026 = vadd.f32 0.0, %v2025
        %v2027 = vpop.f32.mrb[0].mxu0
        %2028 = vmatprep.mubr.f32.mxu0 0.0
        %2029 = vmatmul.mubr.f32.gmra.mrb[0].mxu0 %v1957
        %v2030 = vpop.f32.mrb[0].mxu0
        %v2031 = vadd.f32 0.0, %v2030
        %v2032 = vpop.f32.mrb[0].mxu0
        %2033 = vdwg.mxu0
        %2034 = vrot.lane.b32.xlu0 %v657, 56
        %v2035 = vpop.permute.xlu0 %2034
        %2036 = vrot.lane.b32.xlu0 %v662, 56
        %v2037 = vpop.permute.xlu0 %2036
        %v2041 = vsel %vm1058, %v1936, 0
        %v2044 = vsel %vm1058, %v1938, 0
        %2046 = vmatprep.subr.mxu0 0.0
        %2047 = vmatpush1.msra.mxu0 %v2035
        %2048 = vmatprep.subr.mxu0 0.0
        %2049 = vmatpush1.msra.mxu0 %v2037
        %2050 = vmatprep.subr.mxu0 0.0
        %2051 = vmatpush1.msra.mxu0 0.0
        %2052 = vmatprep.subr.mxu0 0.0
        %2053 = vmatpush1.msra.mxu0 0.0
        %2054 = vmatprep.subr.mxu0 0.0
        %2055 = vmatpush1.msra.mxu0 0.0
        %2056 = vmatprep.subr.mxu0 0.0
        %2057 = vmatpush1.msra.mxu0 0.0
        %2058 = vmatprep.subr.mxu0 0.0
        %2059 = vmatpush1.msra.mxu0 0.0
        %2060 = vmatprep.subr.mxu0 0.0
        %2061 = vmatpush1.msra.mxu0 0.0
        %2062 = vmatprep.subr.mxu0 0.0
        %2063 = vmatpush1.msra.mxu0 0.0
        %2064 = vmatprep.subr.mxu0 0.0
        %2065 = vmatpush1.msra.mxu0 0.0
        %2066 = vmatprep.subr.mxu0 0.0
        %2067 = vmatpush1.msra.mxu0 0.0
        %2068 = vmatprep.subr.mxu0 0.0
        %2069 = vmatpush1.msra.mxu0 0.0
        %2070 = vmatprep.subr.mxu0 0.0
        %2071 = vmatpush1.msra.mxu0 0.0
        %2072 = vmatprep.subr.mxu0 0.0
        %2073 = vmatpush1.msra.mxu0 0.0
        %2074 = vmatprep.subr.mxu0 0.0
        %2075 = vmatpush1.msra.mxu0 0.0
        %2076 = vmatprep.subr.mxu0 0.0
        %2077 = vmatpush1.msra.mxu0 0.0
        %2078 = vmatprep.subr.mxu0 0.0
        %2079 = vmatpush1.msra.mxu0 0.0
        %2080 = vmatprep.subr.mxu0 0.0
        %2081 = vmatpush1.msra.mxu0 0.0
        %2082 = vmatprep.subr.mxu0 0.0
        %2083 = vmatpush1.msra.mxu0 0.0
        %2084 = vmatprep.subr.mxu0 0.0
        %2085 = vmatpush1.msra.mxu0 0.0
        %2086 = vmatprep.subr.mxu0 0.0
        %2087 = vmatpush1.msra.mxu0 0.0
        %2088 = vmatprep.subr.mxu0 0.0
        %2089 = vmatpush1.msra.mxu0 0.0
        %2090 = vmatprep.subr.mxu0 0.0
        %2091 = vmatpush1.msra.mxu0 0.0
        %2092 = vmatprep.subr.mxu0 0.0
        %2093 = vmatpush1.msra.mxu0 0.0
        %2094 = vmatprep.subr.mxu0 0.0
        %2095 = vmatpush1.msra.mxu0 0.0
        %2096 = vmatprep.subr.mxu0 0.0
        %2097 = vmatpush1.msra.mxu0 0.0
        %2098 = vmatprep.subr.mxu0 0.0
        %2099 = vmatpush1.msra.mxu0 0.0
        %2100 = vmatprep.subr.mxu0 0.0
        %2101 = vmatpush1.msra.mxu0 0.0
        %2102 = vmatprep.subr.mxu0 0.0
        %2103 = vmatpush1.msra.mxu0 0.0
        %2104 = vmatprep.subr.mxu0 0.0
        %2105 = vmatpush1.msra.mxu0 0.0
        %2106 = vmatprep.subr.mxu0 0.0
        %2107 = vmatpush1.msra.mxu0 0.0
        %2108 = vmatprep.subr.mxu0 0.0
        %2109 = vmatpush1.msra.mxu0 0.0
        %2110 = vmatprep.mubr.f32.mxu0 0.0
        %2111 = vmatmul.mubr.f32.gmra.mrb[0].mxu0 %v2041
        %v2112 = vpop.f32.mrb[0].mxu0
        %v2113 = vadd.f32 0.0, %v2112
        %v2114 = vpop.f32.mrb[0].mxu0
        %2115 = vmatprep.mubr.f32.mxu0 0.0
        %2116 = vmatmul.mubr.f32.gmra.mrb[0].mxu0 %v2044
        %v2117 = vpop.f32.mrb[0].mxu0
        %v2118 = vadd.f32 0.0, %v2117
        %v2119 = vpop.f32.mrb[0].mxu0
        %2120 = vdwg.mxu0
        %2121 = vrot.lane.b32.xlu0 %v667, 56
        %v2122 = vpop.permute.xlu0 %2121
        %2123 = vrot.lane.b32.xlu0 %v672, 56
        %v2124 = vpop.permute.xlu0 %2123
        %v2128 = vsel %vm1058, %v1940, 0
        %v2131 = vsel %vm1058, %v1942, 0
        %2133 = vmatprep.subr.mxu0 0.0
        %2134 = vmatpush1.msra.mxu0 %v2122
        %2135 = vmatprep.subr.mxu0 0.0
        %2136 = vmatpush1.msra.mxu0 %v2124
        %2137 = vmatprep.subr.mxu0 0.0
        %2138 = vmatpush1.msra.mxu0 0.0
        %2139 = vmatprep.subr.mxu0 0.0
        %2140 = vmatpush1.msra.mxu0 0.0
        %2141 = vmatprep.subr.mxu0 0.0
        %2142 = vmatpush1.msra.mxu0 0.0
        %2143 = vmatprep.subr.mxu0 0.0
        %2144 = vmatpush1.msra.mxu0 0.0
        %2145 = vmatprep.subr.mxu0 0.0
        %2146 = vmatpush1.msra.mxu0 0.0
        %2147 = vmatprep.subr.mxu0 0.0
        %2148 = vmatpush1.msra.mxu0 0.0
        %2149 = vmatprep.subr.mxu0 0.0
        %2150 = vmatpush1.msra.mxu0 0.0
        %2151 = vmatprep.subr.mxu0 0.0
        %2152 = vmatpush1.msra.mxu0 0.0
        %2153 = vmatprep.subr.mxu0 0.0
        %2154 = vmatpush1.msra.mxu0 0.0
        %2155 = vmatprep.subr.mxu0 0.0
        %2156 = vmatpush1.msra.mxu0 0.0
        %2157 = vmatprep.subr.mxu0 0.0
        %2158 = vmatpush1.msra.mxu0 0.0
        %2159 = vmatprep.subr.mxu0 0.0
        %2160 = vmatpush1.msra.mxu0 0.0
        %2161 = vmatprep.subr.mxu0 0.0
        %2162 = vmatpush1.msra.mxu0 0.0
        %2163 = vmatprep.subr.mxu0 0.0
        %2164 = vmatpush1.msra.mxu0 0.0
        %2165 = vmatprep.subr.mxu0 0.0
        %2166 = vmatpush1.msra.mxu0 0.0
        %2167 = vmatprep.subr.mxu0 0.0
        %2168 = vmatpush1.msra.mxu0 0.0
        %2169 = vmatprep.subr.mxu0 0.0
        %2170 = vmatpush1.msra.mxu0 0.0
        %2171 = vmatprep.subr.mxu0 0.0
        %2172 = vmatpush1.msra.mxu0 0.0
        %2173 = vmatprep.subr.mxu0 0.0
        %2174 = vmatpush1.msra.mxu0 0.0
        %2175 = vmatprep.subr.mxu0 0.0
        %2176 = vmatpush1.msra.mxu0 0.0
        %2177 = vmatprep.subr.mxu0 0.0
        %2178 = vmatpush1.msra.mxu0 0.0
        %2179 = vmatprep.subr.mxu0 0.0
        %2180 = vmatpush1.msra.mxu0 0.0
        %2181 = vmatprep.subr.mxu0 0.0
        %2182 = vmatpush1.msra.mxu0 0.0
        %2183 = vmatprep.subr.mxu0 0.0
        %2184 = vmatpush1.msra.mxu0 0.0
        %2185 = vmatprep.subr.mxu0 0.0
        %2186 = vmatpush1.msra.mxu0 0.0
        %2187 = vmatprep.subr.mxu0 0.0
        %2188 = vmatpush1.msra.mxu0 0.0
        %2189 = vmatprep.subr.mxu0 0.0
        %2190 = vmatpush1.msra.mxu0 0.0
        %2191 = vmatprep.subr.mxu0 0.0
        %2192 = vmatpush1.msra.mxu0 0.0
        %2193 = vmatprep.subr.mxu0 0.0
        %2194 = vmatpush1.msra.mxu0 0.0
        %2195 = vmatprep.subr.mxu0 0.0
        %2196 = vmatpush1.msra.mxu0 0.0
        %2197 = vmatprep.mubr.f32.mxu0 0.0
        %2198 = vmatmul.mubr.f32.gmra.mrb[0].mxu0 %v2128
        %v2199 = vpop.f32.mrb[0].mxu0
        %v2200 = vadd.f32 0.0, %v2199
        %v2201 = vpop.f32.mrb[0].mxu0
        %2202 = vmatprep.mubr.f32.mxu0 0.0
        %2203 = vmatmul.mubr.f32.gmra.mrb[0].mxu0 %v2131
        %v2204 = vpop.f32.mrb[0].mxu0
        %v2205 = vadd.f32 0.0, %v2204
        %v2206 = vpop.f32.mrb[0].mxu0
        %2207 = vdwg.mxu0
        %2208 = vrot.lane.b32.xlu0 %v677, 56
        %v2209 = vpop.permute.xlu0 %2208
        %2210 = vrot.lane.b32.xlu0 %v682, 56
        %v2211 = vpop.permute.xlu0 %2210
        %v2215 = vsel %vm1058, %v1944, 0
        %v2218 = vsel %vm1058, %v1946, 0
        %2220 = vmatprep.subr.mxu0 0.0
        %2221 = vmatpush1.msra.mxu0 %v2209
        %2222 = vmatprep.subr.mxu0 0.0
        %2223 = vmatpush1.msra.mxu0 %v2211
        %2224 = vmatprep.subr.mxu0 0.0
        %2225 = vmatpush1.msra.mxu0 0.0
        %2226 = vmatprep.subr.mxu0 0.0
        %2227 = vmatpush1.msra.mxu0 0.0
        %2228 = vmatprep.subr.mxu0 0.0
        %2229 = vmatpush1.msra.mxu0 0.0
        %2230 = vmatprep.subr.mxu0 0.0
        %2231 = vmatpush1.msra.mxu0 0.0
        %2232 = vmatprep.subr.mxu0 0.0
        %2233 = vmatpush1.msra.mxu0 0.0
        %2234 = vmatprep.subr.mxu0 0.0
        %2235 = vmatpush1.msra.mxu0 0.0
        %2236 = vmatprep.subr.mxu0 0.0
        %2237 = vmatpush1.msra.mxu0 0.0
        %2238 = vmatprep.subr.mxu0 0.0
        %2239 = vmatpush1.msra.mxu0 0.0
        %2240 = vmatprep.subr.mxu0 0.0
        %2241 = vmatpush1.msra.mxu0 0.0
        %2242 = vmatprep.subr.mxu0 0.0
        %2243 = vmatpush1.msra.mxu0 0.0
        %2244 = vmatprep.subr.mxu0 0.0
        %2245 = vmatpush1.msra.mxu0 0.0
        %2246 = vmatprep.subr.mxu0 0.0
        %2247 = vmatpush1.msra.mxu0 0.0
        %2248 = vmatprep.subr.mxu0 0.0
        %2249 = vmatpush1.msra.mxu0 0.0
        %2250 = vmatprep.subr.mxu0 0.0
        %2251 = vmatpush1.msra.mxu0 0.0
        %2252 = vmatprep.subr.mxu0 0.0
        %2253 = vmatpush1.msra.mxu0 0.0
        %2254 = vmatprep.subr.mxu0 0.0
        %2255 = vmatpush1.msra.mxu0 0.0
        %2256 = vmatprep.subr.mxu0 0.0
        %2257 = vmatpush1.msra.mxu0 0.0
        %2258 = vmatprep.subr.mxu0 0.0
        %2259 = vmatpush1.msra.mxu0 0.0
        %2260 = vmatprep.subr.mxu0 0.0
        %2261 = vmatpush1.msra.mxu0 0.0
        %2262 = vmatprep.subr.mxu0 0.0
        %2263 = vmatpush1.msra.mxu0 0.0
        %2264 = vmatprep.subr.mxu0 0.0
        %2265 = vmatpush1.msra.mxu0 0.0
        %2266 = vmatprep.subr.mxu0 0.0
        %2267 = vmatpush1.msra.mxu0 0.0
        %2268 = vmatprep.subr.mxu0 0.0
        %2269 = vmatpush1.msra.mxu0 0.0
        %2270 = vmatprep.subr.mxu0 0.0
        %2271 = vmatpush1.msra.mxu0 0.0
        %2272 = vmatprep.subr.mxu0 0.0
        %2273 = vmatpush1.msra.mxu0 0.0
        %2274 = vmatprep.subr.mxu0 0.0
        %2275 = vmatpush1.msra.mxu0 0.0
        %2276 = vmatprep.subr.mxu0 0.0
        %2277 = vmatpush1.msra.mxu0 0.0
        %2278 = vmatprep.subr.mxu0 0.0
        %2279 = vmatpush1.msra.mxu0 0.0
        %2280 = vmatprep.subr.mxu0 0.0
        %2281 = vmatpush1.msra.mxu0 0.0
        %2282 = vmatprep.subr.mxu0 0.0
        %2283 = vmatpush1.msra.mxu0 0.0
        %2284 = vmatprep.mubr.f32.mxu0 0.0
        %2285 = vmatmul.mubr.f32.gmra.mrb[0].mxu0 %v2215
        %v2286 = vpop.f32.mrb[0].mxu0
        %v2287 = vadd.f32 0.0, %v2286
        %v2288 = vpop.f32.mrb[0].mxu0
        %2289 = vmatprep.mubr.f32.mxu0 0.0
        %2290 = vmatmul.mubr.f32.gmra.mrb[0].mxu0 %v2218
        %v2291 = vpop.f32.mrb[0].mxu0
        %v2292 = vadd.f32 0.0, %v2291
        %v2293 = vpop.f32.mrb[0].mxu0
        %2294 = vdwg.mxu0
        %v2296 = vsel %vm699, %v2026, 0
        %v2299 = vsel %vm699, %v2031, 0
        %v2302 = vsel %vm699, %v2113, 0
        %v2305 = vsel %vm699, %v2118, 0
        %v2308 = vsel %vm699, %v2200, 0
        %v2311 = vsel %vm699, %v2205, 0
        %v2314 = vsel %vm699, %v2287, 0
        %v2317 = vsel %vm699, %v2292, 0
        %2319 = vmatprep.subr.mxu0 0.0
        %2320 = vmatpush1.msra.mxu0 %v538
        %2321 = vmatprep.subr.mxu0 0.0
        %2322 = vmatpush1.msra.mxu0 0.0
        %2323 = vmatprep.subr.mxu0 0.0
        %2324 = vmatpush1.msra.mxu0 0.0
        %2325 = vmatprep.subr.mxu0 0.0
        %2326 = vmatpush1.msra.mxu0 0.0
        %2327 = vmatprep.subr.mxu0 0.0
        %2328 = vmatpush1.msra.mxu0 0.0
        %2329 = vmatprep.subr.mxu0 0.0
        %2330 = vmatpush1.msra.mxu0 0.0
        %2331 = vmatprep.subr.mxu0 0.0
        %2332 = vmatpush1.msra.mxu0 0.0
        %2333 = vmatprep.subr.mxu0 0.0
        %2334 = vmatpush1.msra.mxu0 0.0
        %2335 = vmatprep.subr.mxu0 0.0
        %2336 = vmatpush1.msra.mxu0 0.0
        %2337 = vmatprep.subr.mxu0 0.0
        %2338 = vmatpush1.msra.mxu0 0.0
        %2339 = vmatprep.subr.mxu0 0.0
        %2340 = vmatpush1.msra.mxu0 0.0
        %2341 = vmatprep.subr.mxu0 0.0
        %2342 = vmatpush1.msra.mxu0 0.0
        %2343 = vmatprep.subr.mxu0 0.0
        %2344 = vmatpush1.msra.mxu0 0.0
        %2345 = vmatprep.subr.mxu0 0.0
        %2346 = vmatpush1.msra.mxu0 0.0
        %2347 = vmatprep.subr.mxu0 0.0
        %2348 = vmatpush1.msra.mxu0 0.0
        %2349 = vmatprep.subr.mxu0 0.0
        %2350 = vmatpush1.msra.mxu0 0.0
        %2351 = vmatprep.subr.mxu0 0.0
        %2352 = vmatpush1.msra.mxu0 0.0
        %2353 = vmatprep.subr.mxu0 0.0
        %2354 = vmatpush1.msra.mxu0 0.0
        %2355 = vmatprep.subr.mxu0 0.0
        %2356 = vmatpush1.msra.mxu0 0.0
        %2357 = vmatprep.subr.mxu0 0.0
        %2358 = vmatpush1.msra.mxu0 0.0
        %2359 = vmatprep.subr.mxu0 0.0
        %2360 = vmatpush1.msra.mxu0 0.0
        %2361 = vmatprep.subr.mxu0 0.0
        %2362 = vmatpush1.msra.mxu0 0.0
        %2363 = vmatprep.subr.mxu0 0.0
        %2364 = vmatpush1.msra.mxu0 0.0
        %2365 = vmatprep.subr.mxu0 0.0
        %2366 = vmatpush1.msra.mxu0 0.0
        %2367 = vmatprep.subr.mxu0 0.0
        %2368 = vmatpush1.msra.mxu0 0.0
        %2369 = vmatprep.subr.mxu0 0.0
        %2370 = vmatpush1.msra.mxu0 0.0
        %2371 = vmatprep.subr.mxu0 0.0
        %2372 = vmatpush1.msra.mxu0 0.0
        %2373 = vmatprep.subr.mxu0 0.0
        %2374 = vmatpush1.msra.mxu0 0.0
        %2375 = vmatprep.subr.mxu0 0.0
        %2376 = vmatpush1.msra.mxu0 0.0
        %2377 = vmatprep.subr.mxu0 0.0
        %2378 = vmatpush1.msra.mxu0 0.0
        %2379 = vmatprep.subr.mxu0 0.0
        %2380 = vmatpush1.msra.mxu0 0.0
        %2381 = vmatprep.subr.mxu0 0.0
        %2382 = vmatpush1.msra.mxu0 0.0
        %2383 = vmatprep.mubr.f32.mxu0 0.0
        %2384 = vmatmul.mubr.f32.gmra.mrb[0].mxu0 %v2296
        %v2385 = vpop.f32.mrb[0].mxu0
        %v2386 = vadd.f32 0.0, %v2385
        %v2387 = vpop.f32.mrb[0].mxu0
        %2388 = vmatprep.mubr.f32.mxu0 0.0
        %2389 = vmatmul.mubr.f32.gmra.mrb[0].mxu0 %v2299
        %v2390 = vpop.f32.mrb[0].mxu0
        %v2391 = vadd.f32 0.0, %v2390
        %v2392 = vpop.f32.mrb[0].mxu0
        %2393 = vmatprep.mubr.f32.mxu0 0.0
        %2394 = vmatmul.mubr.f32.gmra.mrb[0].mxu0 %v2302
        %v2395 = vpop.f32.mrb[0].mxu0
        %v2396 = vadd.f32 0.0, %v2395
        %v2397 = vpop.f32.mrb[0].mxu0
        %2398 = vmatprep.mubr.f32.mxu0 0.0
        %2399 = vmatmul.mubr.f32.gmra.mrb[0].mxu0 %v2305
        %v2400 = vpop.f32.mrb[0].mxu0
        %v2401 = vadd.f32 0.0, %v2400
        %v2402 = vpop.f32.mrb[0].mxu0
        %2403 = vmatprep.mubr.f32.mxu0 0.0
        %2404 = vmatmul.mubr.f32.gmra.mrb[0].mxu0 %v2308
        %v2405 = vpop.f32.mrb[0].mxu0
        %v2406 = vadd.f32 0.0, %v2405
        %v2407 = vpop.f32.mrb[0].mxu0
        %2408 = vmatprep.mubr.f32.mxu0 0.0
        %2409 = vmatmul.mubr.f32.gmra.mrb[0].mxu0 %v2311
        %v2410 = vpop.f32.mrb[0].mxu0
        %v2411 = vadd.f32 0.0, %v2410
        %v2412 = vpop.f32.mrb[0].mxu0
        %2413 = vmatprep.mubr.f32.mxu0 0.0
        %2414 = vmatmul.mubr.f32.gmra.mrb[0].mxu0 %v2314
        %v2415 = vpop.f32.mrb[0].mxu0
        %v2416 = vadd.f32 0.0, %v2415
        %v2417 = vpop.f32.mrb[0].mxu0
        %2418 = vmatprep.mubr.f32.mxu0 0.0
        %2419 = vmatmul.mubr.f32.gmra.mrb[0].mxu0 %v2317
        %v2420 = vpop.f32.mrb[0].mxu0
        %v2421 = vadd.f32 0.0, %v2420
        %v2422 = vpop.f32.mrb[0].mxu0
        %2423 = vdwg.mxu0
        %v2425 = vsel %vm699, %v1226, 0
        %v2428 = vsel %vm699, %v1231, 0
        %v2431 = vsel %vm699, %v1313, 0
        %v2434 = vsel %vm699, %v1318, 0
        %v2437 = vsel %vm699, %v1400, 0
        %v2440 = vsel %vm699, %v1405, 0
        %v2443 = vsel %vm699, %v1487, 0
        %v2446 = vsel %vm699, %v1492, 0
        %2448 = vmatprep.subr.mxu0 0.0
        %2449 = vmatpush1.msra.mxu0 %v537
        %2450 = vmatprep.subr.mxu0 0.0
        %2451 = vmatpush1.msra.mxu0 0.0
        %2452 = vmatprep.subr.mxu0 0.0
        %2453 = vmatpush1.msra.mxu0 0.0
        %2454 = vmatprep.subr.mxu0 0.0
        %2455 = vmatpush1.msra.mxu0 0.0
        %2456 = vmatprep.subr.mxu0 0.0
        %2457 = vmatpush1.msra.mxu0 0.0
        %2458 = vmatprep.subr.mxu0 0.0
        %2459 = vmatpush1.msra.mxu0 0.0
        %2460 = vmatprep.subr.mxu0 0.0
        %2461 = vmatpush1.msra.mxu0 0.0
        %2462 = vmatprep.subr.mxu0 0.0
        %2463 = vmatpush1.msra.mxu0 0.0
        %2464 = vmatprep.subr.mxu0 0.0
        %2465 = vmatpush1.msra.mxu0 0.0
        %2466 = vmatprep.subr.mxu0 0.0
        %2467 = vmatpush1.msra.mxu0 0.0
        %2468 = vmatprep.subr.mxu0 0.0
        %2469 = vmatpush1.msra.mxu0 0.0
        %2470 = vmatprep.subr.mxu0 0.0
        %2471 = vmatpush1.msra.mxu0 0.0
        %2472 = vmatprep.subr.mxu0 0.0
        %2473 = vmatpush1.msra.mxu0 0.0
        %2474 = vmatprep.subr.mxu0 0.0
        %2475 = vmatpush1.msra.mxu0 0.0
        %2476 = vmatprep.subr.mxu0 0.0
        %2477 = vmatpush1.msra.mxu0 0.0
        %2478 = vmatprep.subr.mxu0 0.0
        %2479 = vmatpush1.msra.mxu0 0.0
        %2480 = vmatprep.subr.mxu0 0.0
        %2481 = vmatpush1.msra.mxu0 0.0
        %2482 = vmatprep.subr.mxu0 0.0
        %2483 = vmatpush1.msra.mxu0 0.0
        %2484 = vmatprep.subr.mxu0 0.0
        %2485 = vmatpush1.msra.mxu0 0.0
        %2486 = vmatprep.subr.mxu0 0.0
        %2487 = vmatpush1.msra.mxu0 0.0
        %2488 = vmatprep.subr.mxu0 0.0
        %2489 = vmatpush1.msra.mxu0 0.0
        %2490 = vmatprep.subr.mxu0 0.0
        %2491 = vmatpush1.msra.mxu0 0.0
        %2492 = vmatprep.subr.mxu0 0.0
        %2493 = vmatpush1.msra.mxu0 0.0
        %2494 = vmatprep.subr.mxu0 0.0
        %2495 = vmatpush1.msra.mxu0 0.0
        %2496 = vmatprep.subr.mxu0 0.0
        %2497 = vmatpush1.msra.mxu0 0.0
        %2498 = vmatprep.subr.mxu0 0.0
        %2499 = vmatpush1.msra.mxu0 0.0
        %2500 = vmatprep.subr.mxu0 0.0
        %2501 = vmatpush1.msra.mxu0 0.0
        %2502 = vmatprep.subr.mxu0 0.0
        %2503 = vmatpush1.msra.mxu0 0.0
        %2504 = vmatprep.subr.mxu0 0.0
        %2505 = vmatpush1.msra.mxu0 0.0
        %2506 = vmatprep.subr.mxu0 0.0
        %2507 = vmatpush1.msra.mxu0 0.0
        %2508 = vmatprep.subr.mxu0 0.0
        %2509 = vmatpush1.msra.mxu0 0.0
        %2510 = vmatprep.subr.mxu0 0.0
        %2511 = vmatpush1.msra.mxu0 0.0
        %2512 = vmatprep.mubr.f32.mxu0 0.0
        %2513 = vmatmul.mubr.f32.gmra.mrb[0].mxu0 %v2425
        %v2514 = vpop.f32.mrb[0].mxu0
        %v2515 = vadd.f32 %v2386, %v2514
        %v2516 = vpop.f32.mrb[0].mxu0
        %2517 = vmatprep.mubr.f32.mxu0 0.0
        %2518 = vmatmul.mubr.f32.gmra.mrb[0].mxu0 %v2428
        %v2519 = vpop.f32.mrb[0].mxu0
        %v2520 = vadd.f32 %v2391, %v2519
        %v2521 = vpop.f32.mrb[0].mxu0
        %2522 = vmatprep.mubr.f32.mxu0 0.0
        %2523 = vmatmul.mubr.f32.gmra.mrb[0].mxu0 %v2431
        %v2524 = vpop.f32.mrb[0].mxu0
        %v2525 = vadd.f32 %v2396, %v2524
        %v2526 = vpop.f32.mrb[0].mxu0
        %2527 = vmatprep.mubr.f32.mxu0 0.0
        %2528 = vmatmul.mubr.f32.gmra.mrb[0].mxu0 %v2434
        %v2529 = vpop.f32.mrb[0].mxu0
        %v2530 = vadd.f32 %v2401, %v2529
        %v2531 = vpop.f32.mrb[0].mxu0
        %2532 = vmatprep.mubr.f32.mxu0 0.0
        %2533 = vmatmul.mubr.f32.gmra.mrb[0].mxu0 %v2437
        %v2534 = vpop.f32.mrb[0].mxu0
        %v2535 = vadd.f32 %v2406, %v2534
        %v2536 = vpop.f32.mrb[0].mxu0
        %2537 = vmatprep.mubr.f32.mxu0 0.0
        %2538 = vmatmul.mubr.f32.gmra.mrb[0].mxu0 %v2440
        %v2539 = vpop.f32.mrb[0].mxu0
        %v2540 = vadd.f32 %v2411, %v2539
        %v2541 = vpop.f32.mrb[0].mxu0
        %2542 = vmatprep.mubr.f32.mxu0 0.0
        %2543 = vmatmul.mubr.f32.gmra.mrb[0].mxu0 %v2443
        %v2544 = vpop.f32.mrb[0].mxu0
        %v2545 = vadd.f32 %v2416, %v2544
        %v2546 = vpop.f32.mrb[0].mxu0
        %2547 = vmatprep.mubr.f32.mxu0 0.0
        %2548 = vmatmul.mubr.f32.gmra.mrb[0].mxu0 %v2446
        %v2549 = vpop.f32.mrb[0].mxu0
        %v2550 = vadd.f32 %v2421, %v2549
        %v2551 = vpop.f32.mrb[0].mxu0
        %2552 = vdwg.mxu0
        %2553 = vrot.lane.b32.xlu0 %v685, 112
        %v2554 = vpop.permute.xlu0 %2553
        %2555 = vrot.lane.b32.xlu0 %v686, 112
        %v2556 = vpop.permute.xlu0 %2555
        %2557 = vrot.lane.b32.xlu0 %v647, 80
        %v2558 = vpop.permute.xlu0 %2557
        %2559 = vrot.lane.b32.xlu0 %v652, 80
        %v2560 = vpop.permute.xlu0 %2559
        %v2561 = vsel %vm699, %v2554, 0
        %v2563 = vsel %vm699, %v2556, 0
        %v2565 = vsel %vm699, %v2558, 0
        %v2567 = vsel %vm699, %v2560, 0
        %2569 = vmatprep.subr.mxu0 0.0
        %2570 = vmatpush1.xpose.msra.mxu0 %v2565
        %2571 = vmatprep.subr.mxu0 0.0
        %2572 = vmatpush1.xpose.msra.mxu0 %v2567
        %2573 = vmatprep.subr.mxu0 0.0
        %2574 = vmatpush1.xpose.msra.mxu0 0.0
        %2575 = vmatprep.subr.mxu0 0.0
        %2576 = vmatpush1.xpose.msra.mxu0 0.0
        %2577 = vmatprep.subr.mxu0 0.0
        %2578 = vmatpush1.xpose.msra.mxu0 0.0
        %2579 = vmatprep.subr.mxu0 0.0
        %2580 = vmatpush1.xpose.msra.mxu0 0.0
        %2581 = vmatprep.subr.mxu0 0.0
        %2582 = vmatpush1.xpose.msra.mxu0 0.0
        %2583 = vmatprep.subr.mxu0 0.0
        %2584 = vmatpush1.xpose.msra.mxu0 0.0
        %2585 = vmatprep.subr.mxu0 0.0
        %2586 = vmatpush1.xpose.msra.mxu0 0.0
        %2587 = vmatprep.subr.mxu0 0.0
        %2588 = vmatpush1.xpose.msra.mxu0 0.0
        %2589 = vmatprep.subr.mxu0 0.0
        %2590 = vmatpush1.xpose.msra.mxu0 0.0
        %2591 = vmatprep.subr.mxu0 0.0
        %2592 = vmatpush1.xpose.msra.mxu0 0.0
        %2593 = vmatprep.subr.mxu0 0.0
        %2594 = vmatpush1.xpose.msra.mxu0 0.0
        %2595 = vmatprep.subr.mxu0 0.0
        %2596 = vmatpush1.xpose.msra.mxu0 0.0
        %2597 = vmatprep.subr.mxu0 0.0
        %2598 = vmatpush1.xpose.msra.mxu0 0.0
        %2599 = vmatprep.subr.mxu0 0.0
        %2600 = vmatpush1.xpose.msra.mxu0 0.0
        %2601 = vmatprep.subr.mxu0 0.0
        %2602 = vmatpush1.xpose.msra.mxu0 0.0
        %2603 = vmatprep.subr.mxu0 0.0
        %2604 = vmatpush1.xpose.msra.mxu0 0.0
        %2605 = vmatprep.subr.mxu0 0.0
        %2606 = vmatpush1.xpose.msra.mxu0 0.0
        %2607 = vmatprep.subr.mxu0 0.0
        %2608 = vmatpush1.xpose.msra.mxu0 0.0
        %2609 = vmatprep.subr.mxu0 0.0
        %2610 = vmatpush1.xpose.msra.mxu0 0.0
        %2611 = vmatprep.subr.mxu0 0.0
        %2612 = vmatpush1.xpose.msra.mxu0 0.0
        %2613 = vmatprep.subr.mxu0 0.0
        %2614 = vmatpush1.xpose.msra.mxu0 0.0
        %2615 = vmatprep.subr.mxu0 0.0
        %2616 = vmatpush1.xpose.msra.mxu0 0.0
        %2617 = vmatprep.subr.mxu0 0.0
        %2618 = vmatpush1.xpose.msra.mxu0 0.0
        %2619 = vmatprep.subr.mxu0 0.0
        %2620 = vmatpush1.xpose.msra.mxu0 0.0
        %2621 = vmatprep.subr.mxu0 0.0
        %2622 = vmatpush1.xpose.msra.mxu0 0.0
        %2623 = vmatprep.subr.mxu0 0.0
        %2624 = vmatpush1.xpose.msra.mxu0 0.0
        %2625 = vmatprep.subr.mxu0 0.0
        %2626 = vmatpush1.xpose.msra.mxu0 0.0
        %2627 = vmatprep.subr.mxu0 0.0
        %2628 = vmatpush1.xpose.msra.mxu0 0.0
        %2629 = vmatprep.subr.mxu0 0.0
        %2630 = vmatpush1.xpose.msra.mxu0 0.0
        %2631 = vmatprep.subr.mxu0 0.0
        %2632 = vmatpush1.xpose.msra.mxu0 0.0
        %2633 = vmatprep.mubr.f32.mxu0 0.0
        %2634 = vmatmul.mubr.f32.gmra.mrb[0].mxu0 %v2561
        %v2635 = vpop.f32.mrb[0].mxu0
        %v2636 = vadd.f32 %v545, %v2635
        %v2637 = vpop.f32.mrb[0].mxu0
        %2638 = vmatprep.mubr.f32.mxu0 0.0
        %2639 = vmatmul.mubr.f32.gmra.mrb[0].mxu0 %v2563
        %v2640 = vpop.f32.mrb[0].mxu0
        %v2641 = vadd.f32 %v546, %v2640
        %v2642 = vpop.f32.mrb[0].mxu0
        %2643 = vdwg.mxu0
        %2644 = vrot.lane.b32.xlu0 %v687, 112
        %v2645 = vpop.permute.xlu0 %2644
        %2646 = vrot.lane.b32.xlu0 %v688, 112
        %v2647 = vpop.permute.xlu0 %2646
        %2648 = vrot.lane.b32.xlu0 %v657, 80
        %v2649 = vpop.permute.xlu0 %2648
        %2650 = vrot.lane.b32.xlu0 %v662, 80
        %v2651 = vpop.permute.xlu0 %2650
        %v2652 = vsel %vm699, %v2645, 0
        %v2654 = vsel %vm699, %v2647, 0
        %v2656 = vsel %vm699, %v2649, 0
        %v2658 = vsel %vm699, %v2651, 0
        %2660 = vmatprep.subr.mxu0 0.0
        %2661 = vmatpush1.xpose.msra.mxu0 %v2656
        %2662 = vmatprep.subr.mxu0 0.0
        %2663 = vmatpush1.xpose.msra.mxu0 %v2658
        %2664 = vmatprep.subr.mxu0 0.0
        %2665 = vmatpush1.xpose.msra.mxu0 0.0
        %2666 = vmatprep.subr.mxu0 0.0
        %2667 = vmatpush1.xpose.msra.mxu0 0.0
        %2668 = vmatprep.subr.mxu0 0.0
        %2669 = vmatpush1.xpose.msra.mxu0 0.0
        %2670 = vmatprep.subr.mxu0 0.0
        %2671 = vmatpush1.xpose.msra.mxu0 0.0
        %2672 = vmatprep.subr.mxu0 0.0
        %2673 = vmatpush1.xpose.msra.mxu0 0.0
        %2674 = vmatprep.subr.mxu0 0.0
        %2675 = vmatpush1.xpose.msra.mxu0 0.0
        %2676 = vmatprep.subr.mxu0 0.0
        %2677 = vmatpush1.xpose.msra.mxu0 0.0
        %2678 = vmatprep.subr.mxu0 0.0
        %2679 = vmatpush1.xpose.msra.mxu0 0.0
        %2680 = vmatprep.subr.mxu0 0.0
        %2681 = vmatpush1.xpose.msra.mxu0 0.0
        %2682 = vmatprep.subr.mxu0 0.0
        %2683 = vmatpush1.xpose.msra.mxu0 0.0
        %2684 = vmatprep.subr.mxu0 0.0
        %2685 = vmatpush1.xpose.msra.mxu0 0.0
        %2686 = vmatprep.subr.mxu0 0.0
        %2687 = vmatpush1.xpose.msra.mxu0 0.0
        %2688 = vmatprep.subr.mxu0 0.0
        %2689 = vmatpush1.xpose.msra.mxu0 0.0
        %2690 = vmatprep.subr.mxu0 0.0
        %2691 = vmatpush1.xpose.msra.mxu0 0.0
        %2692 = vmatprep.subr.mxu0 0.0
        %2693 = vmatpush1.xpose.msra.mxu0 0.0
        %2694 = vmatprep.subr.mxu0 0.0
        %2695 = vmatpush1.xpose.msra.mxu0 0.0
        %2696 = vmatprep.subr.mxu0 0.0
        %2697 = vmatpush1.xpose.msra.mxu0 0.0
        %2698 = vmatprep.subr.mxu0 0.0
        %2699 = vmatpush1.xpose.msra.mxu0 0.0
        %2700 = vmatprep.subr.mxu0 0.0
        %2701 = vmatpush1.xpose.msra.mxu0 0.0
        %2702 = vmatprep.subr.mxu0 0.0
        %2703 = vmatpush1.xpose.msra.mxu0 0.0
        %2704 = vmatprep.subr.mxu0 0.0
        %2705 = vmatpush1.xpose.msra.mxu0 0.0
        %2706 = vmatprep.subr.mxu0 0.0
        %2707 = vmatpush1.xpose.msra.mxu0 0.0
        %2708 = vmatprep.subr.mxu0 0.0
        %2709 = vmatpush1.xpose.msra.mxu0 0.0
        %2710 = vmatprep.subr.mxu0 0.0
        %2711 = vmatpush1.xpose.msra.mxu0 0.0
        %2712 = vmatprep.subr.mxu0 0.0
        %2713 = vmatpush1.xpose.msra.mxu0 0.0
        %2714 = vmatprep.subr.mxu0 0.0
        %2715 = vmatpush1.xpose.msra.mxu0 0.0
        %2716 = vmatprep.subr.mxu0 0.0
        %2717 = vmatpush1.xpose.msra.mxu0 0.0
        %2718 = vmatprep.subr.mxu0 0.0
        %2719 = vmatpush1.xpose.msra.mxu0 0.0
        %2720 = vmatprep.subr.mxu0 0.0
        %2721 = vmatpush1.xpose.msra.mxu0 0.0
        %2722 = vmatprep.subr.mxu0 0.0
        %2723 = vmatpush1.xpose.msra.mxu0 0.0
        %2724 = vmatprep.mubr.f32.mxu0 0.0
        %2725 = vmatmul.mubr.f32.gmra.mrb[0].mxu0 %v2652
        %v2726 = vpop.f32.mrb[0].mxu0
        %v2727 = vadd.f32 %v545, %v2726
        %v2728 = vpop.f32.mrb[0].mxu0
        %2729 = vmatprep.mubr.f32.mxu0 0.0
        %2730 = vmatmul.mubr.f32.gmra.mrb[0].mxu0 %v2654
        %v2731 = vpop.f32.mrb[0].mxu0
        %v2732 = vadd.f32 %v546, %v2731
        %v2733 = vpop.f32.mrb[0].mxu0
        %2734 = vdwg.mxu0
        %2735 = vrot.lane.b32.xlu0 %v689, 112
        %v2736 = vpop.permute.xlu0 %2735
        %2737 = vrot.lane.b32.xlu0 %v690, 112
        %v2738 = vpop.permute.xlu0 %2737
        %2739 = vrot.lane.b32.xlu0 %v667, 80
        %v2740 = vpop.permute.xlu0 %2739
        %2741 = vrot.lane.b32.xlu0 %v672, 80
        %v2742 = vpop.permute.xlu0 %2741
        %v2743 = vsel %vm699, %v2736, 0
        %v2745 = vsel %vm699, %v2738, 0
        %v2747 = vsel %vm699, %v2740, 0
        %v2749 = vsel %vm699, %v2742, 0
        %2751 = vmatprep.subr.mxu0 0.0
        %2752 = vmatpush1.xpose.msra.mxu0 %v2747
        %2753 = vmatprep.subr.mxu0 0.0
        %2754 = vmatpush1.xpose.msra.mxu0 %v2749
        %2755 = vmatprep.subr.mxu0 0.0
        %2756 = vmatpush1.xpose.msra.mxu0 0.0
        %2757 = vmatprep.subr.mxu0 0.0
        %2758 = vmatpush1.xpose.msra.mxu0 0.0
        %2759 = vmatprep.subr.mxu0 0.0
        %2760 = vmatpush1.xpose.msra.mxu0 0.0
        %2761 = vmatprep.subr.mxu0 0.0
        %2762 = vmatpush1.xpose.msra.mxu0 0.0
        %2763 = vmatprep.subr.mxu0 0.0
        %2764 = vmatpush1.xpose.msra.mxu0 0.0
        %2765 = vmatprep.subr.mxu0 0.0
        %2766 = vmatpush1.xpose.msra.mxu0 0.0
        %2767 = vmatprep.subr.mxu0 0.0
        %2768 = vmatpush1.xpose.msra.mxu0 0.0
        %2769 = vmatprep.subr.mxu0 0.0
        %2770 = vmatpush1.xpose.msra.mxu0 0.0
        %2771 = vmatprep.subr.mxu0 0.0
        %2772 = vmatpush1.xpose.msra.mxu0 0.0
        %2773 = vmatprep.subr.mxu0 0.0
        %2774 = vmatpush1.xpose.msra.mxu0 0.0
        %2775 = vmatprep.subr.mxu0 0.0
        %2776 = vmatpush1.xpose.msra.mxu0 0.0
        %2777 = vmatprep.subr.mxu0 0.0
        %2778 = vmatpush1.xpose.msra.mxu0 0.0
        %2779 = vmatprep.subr.mxu0 0.0
        %2780 = vmatpush1.xpose.msra.mxu0 0.0
        %2781 = vmatprep.subr.mxu0 0.0
        %2782 = vmatpush1.xpose.msra.mxu0 0.0
        %2783 = vmatprep.subr.mxu0 0.0
        %2784 = vmatpush1.xpose.msra.mxu0 0.0
        %2785 = vmatprep.subr.mxu0 0.0
        %2786 = vmatpush1.xpose.msra.mxu0 0.0
        %2787 = vmatprep.subr.mxu0 0.0
        %2788 = vmatpush1.xpose.msra.mxu0 0.0
        %2789 = vmatprep.subr.mxu0 0.0
        %2790 = vmatpush1.xpose.msra.mxu0 0.0
        %2791 = vmatprep.subr.mxu0 0.0
        %2792 = vmatpush1.xpose.msra.mxu0 0.0
        %2793 = vmatprep.subr.mxu0 0.0
        %2794 = vmatpush1.xpose.msra.mxu0 0.0
        %2795 = vmatprep.subr.mxu0 0.0
        %2796 = vmatpush1.xpose.msra.mxu0 0.0
        %2797 = vmatprep.subr.mxu0 0.0
        %2798 = vmatpush1.xpose.msra.mxu0 0.0
        %2799 = vmatprep.subr.mxu0 0.0
        %2800 = vmatpush1.xpose.msra.mxu0 0.0
        %2801 = vmatprep.subr.mxu0 0.0
        %2802 = vmatpush1.xpose.msra.mxu0 0.0
        %2803 = vmatprep.subr.mxu0 0.0
        %2804 = vmatpush1.xpose.msra.mxu0 0.0
        %2805 = vmatprep.subr.mxu0 0.0
        %2806 = vmatpush1.xpose.msra.mxu0 0.0
        %2807 = vmatprep.subr.mxu0 0.0
        %2808 = vmatpush1.xpose.msra.mxu0 0.0
        %2809 = vmatprep.subr.mxu0 0.0
        %2810 = vmatpush1.xpose.msra.mxu0 0.0
        %2811 = vmatprep.subr.mxu0 0.0
        %2812 = vmatpush1.xpose.msra.mxu0 0.0
        %2813 = vmatprep.subr.mxu0 0.0
        %2814 = vmatpush1.xpose.msra.mxu0 0.0
        %2815 = vmatprep.mubr.f32.mxu0 0.0
        %2816 = vmatmul.mubr.f32.gmra.mrb[0].mxu0 %v2743
        %v2817 = vpop.f32.mrb[0].mxu0
        %v2818 = vadd.f32 %v545, %v2817
        %v2819 = vpop.f32.mrb[0].mxu0
        %2820 = vmatprep.mubr.f32.mxu0 0.0
        %2821 = vmatmul.mubr.f32.gmra.mrb[0].mxu0 %v2745
        %v2822 = vpop.f32.mrb[0].mxu0
        %v2823 = vadd.f32 %v546, %v2822
        %v2824 = vpop.f32.mrb[0].mxu0
        %2825 = vdwg.mxu0
        %2826 = vrot.lane.b32.xlu0 %v691, 112
        %v2827 = vpop.permute.xlu0 %2826
        %2828 = vrot.lane.b32.xlu0 %v692, 112
        %v2829 = vpop.permute.xlu0 %2828
        %2830 = vrot.lane.b32.xlu0 %v677, 80
        %v2831 = vpop.permute.xlu0 %2830
        %2832 = vrot.lane.b32.xlu0 %v682, 80
        %v2833 = vpop.permute.xlu0 %2832
        %v2834 = vsel %vm699, %v2827, 0
        %v2836 = vsel %vm699, %v2829, 0
        %v2838 = vsel %vm699, %v2831, 0
        %v2840 = vsel %vm699, %v2833, 0
        %2842 = vmatprep.subr.mxu0 0.0
        %2843 = vmatpush1.xpose.msra.mxu0 %v2838
        %2844 = vmatprep.subr.mxu0 0.0
        %2845 = vmatpush1.xpose.msra.mxu0 %v2840
        %2846 = vmatprep.subr.mxu0 0.0
        %2847 = vmatpush1.xpose.msra.mxu0 0.0
        %2848 = vmatprep.subr.mxu0 0.0
        %2849 = vmatpush1.xpose.msra.mxu0 0.0
        %2850 = vmatprep.subr.mxu0 0.0
        %2851 = vmatpush1.xpose.msra.mxu0 0.0
        %2852 = vmatprep.subr.mxu0 0.0
        %2853 = vmatpush1.xpose.msra.mxu0 0.0
        %2854 = vmatprep.subr.mxu0 0.0
        %2855 = vmatpush1.xpose.msra.mxu0 0.0
        %2856 = vmatprep.subr.mxu0 0.0
        %2857 = vmatpush1.xpose.msra.mxu0 0.0
        %2858 = vmatprep.subr.mxu0 0.0
        %2859 = vmatpush1.xpose.msra.mxu0 0.0
        %2860 = vmatprep.subr.mxu0 0.0
        %2861 = vmatpush1.xpose.msra.mxu0 0.0
        %2862 = vmatprep.subr.mxu0 0.0
        %2863 = vmatpush1.xpose.msra.mxu0 0.0
        %2864 = vmatprep.subr.mxu0 0.0
        %2865 = vmatpush1.xpose.msra.mxu0 0.0
        %2866 = vmatprep.subr.mxu0 0.0
        %2867 = vmatpush1.xpose.msra.mxu0 0.0
        %2868 = vmatprep.subr.mxu0 0.0
        %2869 = vmatpush1.xpose.msra.mxu0 0.0
        %2870 = vmatprep.subr.mxu0 0.0
        %2871 = vmatpush1.xpose.msra.mxu0 0.0
        %2872 = vmatprep.subr.mxu0 0.0
        %2873 = vmatpush1.xpose.msra.mxu0 0.0
        %2874 = vmatprep.subr.mxu0 0.0
        %2875 = vmatpush1.xpose.msra.mxu0 0.0
        %2876 = vmatprep.subr.mxu0 0.0
        %2877 = vmatpush1.xpose.msra.mxu0 0.0
        %2878 = vmatprep.subr.mxu0 0.0
        %2879 = vmatpush1.xpose.msra.mxu0 0.0
        %2880 = vmatprep.subr.mxu0 0.0
        %2881 = vmatpush1.xpose.msra.mxu0 0.0
        %2882 = vmatprep.subr.mxu0 0.0
        %2883 = vmatpush1.xpose.msra.mxu0 0.0
        %2884 = vmatprep.subr.mxu0 0.0
        %2885 = vmatpush1.xpose.msra.mxu0 0.0
        %2886 = vmatprep.subr.mxu0 0.0
        %2887 = vmatpush1.xpose.msra.mxu0 0.0
        %2888 = vmatprep.subr.mxu0 0.0
        %2889 = vmatpush1.xpose.msra.mxu0 0.0
        %2890 = vmatprep.subr.mxu0 0.0
        %2891 = vmatpush1.xpose.msra.mxu0 0.0
        %2892 = vmatprep.subr.mxu0 0.0
        %2893 = vmatpush1.xpose.msra.mxu0 0.0
        %2894 = vmatprep.subr.mxu0 0.0
        %2895 = vmatpush1.xpose.msra.mxu0 0.0
        %2896 = vmatprep.subr.mxu0 0.0
        %2897 = vmatpush1.xpose.msra.mxu0 0.0
        %2898 = vmatprep.subr.mxu0 0.0
        %2899 = vmatpush1.xpose.msra.mxu0 0.0
        %2900 = vmatprep.subr.mxu0 0.0
        %2901 = vmatpush1.xpose.msra.mxu0 0.0
        %2902 = vmatprep.subr.mxu0 0.0
        %2903 = vmatpush1.xpose.msra.mxu0 0.0
        %2904 = vmatprep.subr.mxu0 0.0
        %2905 = vmatpush1.xpose.msra.mxu0 0.0
        %2906 = vmatprep.mubr.f32.mxu0 0.0
        %2907 = vmatmul.mubr.f32.gmra.mrb[0].mxu0 %v2834
        %v2908 = vpop.f32.mrb[0].mxu0
        %v2909 = vadd.f32 %v545, %v2908
        %v2910 = vpop.f32.mrb[0].mxu0
        %2911 = vmatprep.mubr.f32.mxu0 0.0
        %2912 = vmatmul.mubr.f32.gmra.mrb[0].mxu0 %v2836
        %v2913 = vpop.f32.mrb[0].mxu0
        %v2914 = vadd.f32 %v546, %v2913
        %v2915 = vpop.f32.mrb[0].mxu0
        %2916 = vdwg.mxu0
        %v2917 = vsel %vm1058, %v2636, -inf
        %2918 = vmax.xlane.f32.xlu0 %v2917
        %v2919 = vpop.xlane.xlu0 %2918
        %v2920 = vsel %vm1058, %v2641, -inf
        %2921 = vmax.xlane.f32.xlu0 %v2920
        %v2922 = vpop.xlane.xlu0 %2921
        %v2923 = vsel %vm1058, %v2727, -inf
        %2924 = vmax.xlane.f32.xlu0 %v2923
        %v2925 = vpop.xlane.xlu0 %2924
        %v2926 = vsel %vm1058, %v2732, -inf
        %2927 = vmax.xlane.f32.xlu0 %v2926
        %v2928 = vpop.xlane.xlu0 %2927
        %v2929 = vsel %vm1058, %v2818, -inf
        %2930 = vmax.xlane.f32.xlu0 %v2929
        %v2931 = vpop.xlane.xlu0 %2930
        %v2932 = vsel %vm1058, %v2823, -inf
        %2933 = vmax.xlane.f32.xlu0 %v2932
        %v2934 = vpop.xlane.xlu0 %2933
        %v2935 = vsel %vm1058, %v2909, -inf
        %2936 = vmax.xlane.f32.xlu0 %v2935
        %v2937 = vpop.xlane.xlu0 %2936
        %v2938 = vsel %vm1058, %v2914, -inf
        %2939 = vmax.xlane.f32.xlu0 %v2938
        %v2940 = vpop.xlane.xlu0 %2939
        %v2941 = vsub.f32 %v2636, %v2919
        %v2942 = vsub.f32 %v2641, %v2922
        %v2943 = vsub.f32 %v2727, %v2925
        %v2944 = vsub.f32 %v2732, %v2928
        %v2945 = vsub.f32 %v2818, %v2931
        %v2946 = vsub.f32 %v2823, %v2934
        %v2947 = vsub.f32 %v2909, %v2937
        %v2948 = vsub.f32 %v2914, %v2940
        %v2949 = vmul.f32 %v2941, 1.442695
        %v2950 = vpow.pop %v2949
        %v2951 = vmul.f32 %v2942, 1.442695
        %v2952 = vpow.pop %v2951
        %v2953 = vmul.f32 %v2943, 1.442695
        %v2954 = vpow.pop %v2953
        %v2955 = vmul.f32 %v2944, 1.442695
        %v2956 = vpow.pop %v2955
        %v2957 = vmul.f32 %v2945, 1.442695
        %v2958 = vpow.pop %v2957
        %v2959 = vmul.f32 %v2946, 1.442695
        %v2960 = vpow.pop %v2959
        %v2961 = vmul.f32 %v2947, 1.442695
        %v2962 = vpow.pop %v2961
        %v2963 = vmul.f32 %v2948, 1.442695
        %v2964 = vpow.pop %v2963
        %v2965 = vsel %vm1058, %v2950, 0.0
        %2966 = vadd.xlane.f32.xlu0 %v2965
        %v2967 = vpop.xlane.xlu0 %2966
        %v2968 = vsel %vm1058, %v2952, 0.0
        %2969 = vadd.xlane.f32.xlu0 %v2968
        %v2970 = vpop.xlane.xlu0 %2969
        %v2971 = vsel %vm1058, %v2954, 0.0
        %2972 = vadd.xlane.f32.xlu0 %v2971
        %v2973 = vpop.xlane.xlu0 %2972
        %v2974 = vsel %vm1058, %v2956, 0.0
        %2975 = vadd.xlane.f32.xlu0 %v2974
        %v2976 = vpop.xlane.xlu0 %2975
        %v2977 = vsel %vm1058, %v2958, 0.0
        %2978 = vadd.xlane.f32.xlu0 %v2977
        %v2979 = vpop.xlane.xlu0 %2978
        %v2980 = vsel %vm1058, %v2960, 0.0
        %2981 = vadd.xlane.f32.xlu0 %v2980
        %v2982 = vpop.xlane.xlu0 %2981
        %v2983 = vsel %vm1058, %v2962, 0.0
        %2984 = vadd.xlane.f32.xlu0 %v2983
        %v2985 = vpop.xlane.xlu0 %2984
        %v2986 = vsel %vm1058, %v2964, 0.0
        %2987 = vadd.xlane.f32.xlu0 %v2986
        %v2988 = vpop.xlane.xlu0 %2987
        %v2989 = vrcp.pop %v2967
        %v2990 = vmul.f32 %v2950, %v2989
        %v2991 = vrcp.pop %v2970
        %v2992 = vmul.f32 %v2952, %v2991
        %v2993 = vrcp.pop %v2973
        %v2994 = vmul.f32 %v2954, %v2993
        %v2995 = vrcp.pop %v2976
        %v2996 = vmul.f32 %v2956, %v2995
        %v2997 = vrcp.pop %v2979
        %v2998 = vmul.f32 %v2958, %v2997
        %v2999 = vrcp.pop %v2982
        %v3000 = vmul.f32 %v2960, %v2999
        %v3001 = vrcp.pop %v2985
        %v3002 = vmul.f32 %v2962, %v3001
        %v3003 = vrcp.pop %v2988
        %v3004 = vmul.f32 %v2964, %v3003
        %3005 = vrot.lane.b32.xlu0 %v647, 48
        %v3006 = vpop.permute.xlu0 %3005
        %3007 = vrot.lane.b32.xlu0 %v652, 48
        %v3008 = vpop.permute.xlu0 %3007
        %v3012 = vsel %vm1058, %v2990, 0
        %v3015 = vsel %vm1058, %v2992, 0
        %3017 = vmatprep.subr.mxu0 0.0
        %3018 = vmatpush1.msra.mxu0 %v3006
        %3019 = vmatprep.subr.mxu0 0.0
        %3020 = vmatpush1.msra.mxu0 %v3008
        %3021 = vmatprep.subr.mxu0 0.0
        %3022 = vmatpush1.msra.mxu0 0.0
        %3023 = vmatprep.subr.mxu0 0.0
        %3024 = vmatpush1.msra.mxu0 0.0
        %3025 = vmatprep.subr.mxu0 0.0
        %3026 = vmatpush1.msra.mxu0 0.0
        %3027 = vmatprep.subr.mxu0 0.0
        %3028 = vmatpush1.msra.mxu0 0.0
        %3029 = vmatprep.subr.mxu0 0.0
        %3030 = vmatpush1.msra.mxu0 0.0
        %3031 = vmatprep.subr.mxu0 0.0
        %3032 = vmatpush1.msra.mxu0 0.0
        %3033 = vmatprep.subr.mxu0 0.0
        %3034 = vmatpush1.msra.mxu0 0.0
        %3035 = vmatprep.subr.mxu0 0.0
        %3036 = vmatpush1.msra.mxu0 0.0
        %3037 = vmatprep.subr.mxu0 0.0
        %3038 = vmatpush1.msra.mxu0 0.0
        %3039 = vmatprep.subr.mxu0 0.0
        %3040 = vmatpush1.msra.mxu0 0.0
        %3041 = vmatprep.subr.mxu0 0.0
        %3042 = vmatpush1.msra.mxu0 0.0
        %3043 = vmatprep.subr.mxu0 0.0
        %3044 = vmatpush1.msra.mxu0 0.0
        %3045 = vmatprep.subr.mxu0 0.0
        %3046 = vmatpush1.msra.mxu0 0.0
        %3047 = vmatprep.subr.mxu0 0.0
        %3048 = vmatpush1.msra.mxu0 0.0
        %3049 = vmatprep.subr.mxu0 0.0
        %3050 = vmatpush1.msra.mxu0 0.0
        %3051 = vmatprep.subr.mxu0 0.0
        %3052 = vmatpush1.msra.mxu0 0.0
        %3053 = vmatprep.subr.mxu0 0.0
        %3054 = vmatpush1.msra.mxu0 0.0
        %3055 = vmatprep.subr.mxu0 0.0
        %3056 = vmatpush1.msra.mxu0 0.0
        %3057 = vmatprep.subr.mxu0 0.0
        %3058 = vmatpush1.msra.mxu0 0.0
        %3059 = vmatprep.subr.mxu0 0.0
        %3060 = vmatpush1.msra.mxu0 0.0
        %3061 = vmatprep.subr.mxu0 0.0
        %3062 = vmatpush1.msra.mxu0 0.0
        %3063 = vmatprep.subr.mxu0 0.0
        %3064 = vmatpush1.msra.mxu0 0.0
        %3065 = vmatprep.subr.mxu0 0.0
        %3066 = vmatpush1.msra.mxu0 0.0
        %3067 = vmatprep.subr.mxu0 0.0
        %3068 = vmatpush1.msra.mxu0 0.0
        %3069 = vmatprep.subr.mxu0 0.0
        %3070 = vmatpush1.msra.mxu0 0.0
        %3071 = vmatprep.subr.mxu0 0.0
        %3072 = vmatpush1.msra.mxu0 0.0
        %3073 = vmatprep.subr.mxu0 0.0
        %3074 = vmatpush1.msra.mxu0 0.0
        %3075 = vmatprep.subr.mxu0 0.0
        %3076 = vmatpush1.msra.mxu0 0.0
        %3077 = vmatprep.subr.mxu0 0.0
        %3078 = vmatpush1.msra.mxu0 0.0
        %3079 = vmatprep.subr.mxu0 0.0
        %3080 = vmatpush1.msra.mxu0 0.0
        %3081 = vmatprep.mubr.f32.mxu0 0.0
        %3082 = vmatmul.mubr.f32.gmra.mrb[0].mxu0 %v3012
        %v3083 = vpop.f32.mrb[0].mxu0
        %v3084 = vadd.f32 0.0, %v3083
        %v3085 = vpop.f32.mrb[0].mxu0
        %3086 = vmatprep.mubr.f32.mxu0 0.0
        %3087 = vmatmul.mubr.f32.gmra.mrb[0].mxu0 %v3015
        %v3088 = vpop.f32.mrb[0].mxu0
        %v3089 = vadd.f32 0.0, %v3088
        %v3090 = vpop.f32.mrb[0].mxu0
        %3091 = vdwg.mxu0
        %3092 = vrot.lane.b32.xlu0 %v657, 48
        %v3093 = vpop.permute.xlu0 %3092
        %3094 = vrot.lane.b32.xlu0 %v662, 48
        %v3095 = vpop.permute.xlu0 %3094
        %v3099 = vsel %vm1058, %v2994, 0
        %v3102 = vsel %vm1058, %v2996, 0
        %3104 = vmatprep.subr.mxu0 0.0
        %3105 = vmatpush1.msra.mxu0 %v3093
        %3106 = vmatprep.subr.mxu0 0.0
        %3107 = vmatpush1.msra.mxu0 %v3095
        %3108 = vmatprep.subr.mxu0 0.0
        %3109 = vmatpush1.msra.mxu0 0.0
        %3110 = vmatprep.subr.mxu0 0.0
        %3111 = vmatpush1.msra.mxu0 0.0
        %3112 = vmatprep.subr.mxu0 0.0
        %3113 = vmatpush1.msra.mxu0 0.0
        %3114 = vmatprep.subr.mxu0 0.0
        %3115 = vmatpush1.msra.mxu0 0.0
        %3116 = vmatprep.subr.mxu0 0.0
        %3117 = vmatpush1.msra.mxu0 0.0
        %3118 = vmatprep.subr.mxu0 0.0
        %3119 = vmatpush1.msra.mxu0 0.0
        %3120 = vmatprep.subr.mxu0 0.0
        %3121 = vmatpush1.msra.mxu0 0.0
        %3122 = vmatprep.subr.mxu0 0.0
        %3123 = vmatpush1.msra.mxu0 0.0
        %3124 = vmatprep.subr.mxu0 0.0
        %3125 = vmatpush1.msra.mxu0 0.0
        %3126 = vmatprep.subr.mxu0 0.0
        %3127 = vmatpush1.msra.mxu0 0.0
        %3128 = vmatprep.subr.mxu0 0.0
        %3129 = vmatpush1.msra.mxu0 0.0
        %3130 = vmatprep.subr.mxu0 0.0
        %3131 = vmatpush1.msra.mxu0 0.0
        %3132 = vmatprep.subr.mxu0 0.0
        %3133 = vmatpush1.msra.mxu0 0.0
        %3134 = vmatprep.subr.mxu0 0.0
        %3135 = vmatpush1.msra.mxu0 0.0
        %3136 = vmatprep.subr.mxu0 0.0
        %3137 = vmatpush1.msra.mxu0 0.0
        %3138 = vmatprep.subr.mxu0 0.0
        %3139 = vmatpush1.msra.mxu0 0.0
        %3140 = vmatprep.subr.mxu0 0.0
        %3141 = vmatpush1.msra.mxu0 0.0
        %3142 = vmatprep.subr.mxu0 0.0
        %3143 = vmatpush1.msra.mxu0 0.0
        %3144 = vmatprep.subr.mxu0 0.0
        %3145 = vmatpush1.msra.mxu0 0.0
        %3146 = vmatprep.subr.mxu0 0.0
        %3147 = vmatpush1.msra.mxu0 0.0
        %3148 = vmatprep.subr.mxu0 0.0
        %3149 = vmatpush1.msra.mxu0 0.0
        %3150 = vmatprep.subr.mxu0 0.0
        %3151 = vmatpush1.msra.mxu0 0.0
        %3152 = vmatprep.subr.mxu0 0.0
        %3153 = vmatpush1.msra.mxu0 0.0
        %3154 = vmatprep.subr.mxu0 0.0
        %3155 = vmatpush1.msra.mxu0 0.0
        %3156 = vmatprep.subr.mxu0 0.0
        %3157 = vmatpush1.msra.mxu0 0.0
        %3158 = vmatprep.subr.mxu0 0.0
        %3159 = vmatpush1.msra.mxu0 0.0
        %3160 = vmatprep.subr.mxu0 0.0
        %3161 = vmatpush1.msra.mxu0 0.0
        %3162 = vmatprep.subr.mxu0 0.0
        %3163 = vmatpush1.msra.mxu0 0.0
        %3164 = vmatprep.subr.mxu0 0.0
        %3165 = vmatpush1.msra.mxu0 0.0
        %3166 = vmatprep.subr.mxu0 0.0
        %3167 = vmatpush1.msra.mxu0 0.0
        %3168 = vmatprep.mubr.f32.mxu0 0.0
        %3169 = vmatmul.mubr.f32.gmra.mrb[0].mxu0 %v3099
        %v3170 = vpop.f32.mrb[0].mxu0
        %v3171 = vadd.f32 0.0, %v3170
        %v3172 = vpop.f32.mrb[0].mxu0
        %3173 = vmatprep.mubr.f32.mxu0 0.0
        %3174 = vmatmul.mubr.f32.gmra.mrb[0].mxu0 %v3102
        %v3175 = vpop.f32.mrb[0].mxu0
        %v3176 = vadd.f32 0.0, %v3175
        %v3177 = vpop.f32.mrb[0].mxu0
        %3178 = vdwg.mxu0
        %3179 = vrot.lane.b32.xlu0 %v667, 48
        %v3180 = vpop.permute.xlu0 %3179
        %3181 = vrot.lane.b32.xlu0 %v672, 48
        %v3182 = vpop.permute.xlu0 %3181
        %v3186 = vsel %vm1058, %v2998, 0
        %v3189 = vsel %vm1058, %v3000, 0
        %3191 = vmatprep.subr.mxu0 0.0
        %3192 = vmatpush1.msra.mxu0 %v3180
        %3193 = vmatprep.subr.mxu0 0.0
        %3194 = vmatpush1.msra.mxu0 %v3182
        %3195 = vmatprep.subr.mxu0 0.0
        %3196 = vmatpush1.msra.mxu0 0.0
        %3197 = vmatprep.subr.mxu0 0.0
        %3198 = vmatpush1.msra.mxu0 0.0
        %3199 = vmatprep.subr.mxu0 0.0
        %3200 = vmatpush1.msra.mxu0 0.0
        %3201 = vmatprep.subr.mxu0 0.0
        %3202 = vmatpush1.msra.mxu0 0.0
        %3203 = vmatprep.subr.mxu0 0.0
        %3204 = vmatpush1.msra.mxu0 0.0
        %3205 = vmatprep.subr.mxu0 0.0
        %3206 = vmatpush1.msra.mxu0 0.0
        %3207 = vmatprep.subr.mxu0 0.0
        %3208 = vmatpush1.msra.mxu0 0.0
        %3209 = vmatprep.subr.mxu0 0.0
        %3210 = vmatpush1.msra.mxu0 0.0
        %3211 = vmatprep.subr.mxu0 0.0
        %3212 = vmatpush1.msra.mxu0 0.0
        %3213 = vmatprep.subr.mxu0 0.0
        %3214 = vmatpush1.msra.mxu0 0.0
        %3215 = vmatprep.subr.mxu0 0.0
        %3216 = vmatpush1.msra.mxu0 0.0
        %3217 = vmatprep.subr.mxu0 0.0
        %3218 = vmatpush1.msra.mxu0 0.0
        %3219 = vmatprep.subr.mxu0 0.0
        %3220 = vmatpush1.msra.mxu0 0.0
        %3221 = vmatprep.subr.mxu0 0.0
        %3222 = vmatpush1.msra.mxu0 0.0
        %3223 = vmatprep.subr.mxu0 0.0
        %3224 = vmatpush1.msra.mxu0 0.0
        %3225 = vmatprep.subr.mxu0 0.0
        %3226 = vmatpush1.msra.mxu0 0.0
        %3227 = vmatprep.subr.mxu0 0.0
        %3228 = vmatpush1.msra.mxu0 0.0
        %3229 = vmatprep.subr.mxu0 0.0
        %3230 = vmatpush1.msra.mxu0 0.0
        %3231 = vmatprep.subr.mxu0 0.0
        %3232 = vmatpush1.msra.mxu0 0.0
        %3233 = vmatprep.subr.mxu0 0.0
        %3234 = vmatpush1.msra.mxu0 0.0
        %3235 = vmatprep.subr.mxu0 0.0
        %3236 = vmatpush1.msra.mxu0 0.0
        %3237 = vmatprep.subr.mxu0 0.0
        %3238 = vmatpush1.msra.mxu0 0.0
        %3239 = vmatprep.subr.mxu0 0.0
        %3240 = vmatpush1.msra.mxu0 0.0
        %3241 = vmatprep.subr.mxu0 0.0
        %3242 = vmatpush1.msra.mxu0 0.0
        %3243 = vmatprep.subr.mxu0 0.0
        %3244 = vmatpush1.msra.mxu0 0.0
        %3245 = vmatprep.subr.mxu0 0.0
        %3246 = vmatpush1.msra.mxu0 0.0
        %3247 = vmatprep.subr.mxu0 0.0
        %3248 = vmatpush1.msra.mxu0 0.0
        %3249 = vmatprep.subr.mxu0 0.0
        %3250 = vmatpush1.msra.mxu0 0.0
        %3251 = vmatprep.subr.mxu0 0.0
        %3252 = vmatpush1.msra.mxu0 0.0
        %3253 = vmatprep.subr.mxu0 0.0
        %3254 = vmatpush1.msra.mxu0 0.0
        %3255 = vmatprep.mubr.f32.mxu0 0.0
        %3256 = vmatmul.mubr.f32.gmra.mrb[0].mxu0 %v3186
        %v3257 = vpop.f32.mrb[0].mxu0
        %v3258 = vadd.f32 0.0, %v3257
        %v3259 = vpop.f32.mrb[0].mxu0
        %3260 = vmatprep.mubr.f32.mxu0 0.0
        %3261 = vmatmul.mubr.f32.gmra.mrb[0].mxu0 %v3189
        %v3262 = vpop.f32.mrb[0].mxu0
        %v3263 = vadd.f32 0.0, %v3262
        %v3264 = vpop.f32.mrb[0].mxu0
        %3265 = vdwg.mxu0
        %3266 = vrot.lane.b32.xlu0 %v677, 48
        %v3267 = vpop.permute.xlu0 %3266
        %3268 = vrot.lane.b32.xlu0 %v682, 48
        %v3269 = vpop.permute.xlu0 %3268
        %v3273 = vsel %vm1058, %v3002, 0
        %v3276 = vsel %vm1058, %v3004, 0
        %3278 = vmatprep.subr.mxu0 0.0
        %3279 = vmatpush1.msra.mxu0 %v3267
        %3280 = vmatprep.subr.mxu0 0.0
        %3281 = vmatpush1.msra.mxu0 %v3269
        %3282 = vmatprep.subr.mxu0 0.0
        %3283 = vmatpush1.msra.mxu0 0.0
        %3284 = vmatprep.subr.mxu0 0.0
        %3285 = vmatpush1.msra.mxu0 0.0
        %3286 = vmatprep.subr.mxu0 0.0
        %3287 = vmatpush1.msra.mxu0 0.0
        %3288 = vmatprep.subr.mxu0 0.0
        %3289 = vmatpush1.msra.mxu0 0.0
        %3290 = vmatprep.subr.mxu0 0.0
        %3291 = vmatpush1.msra.mxu0 0.0
        %3292 = vmatprep.subr.mxu0 0.0
        %3293 = vmatpush1.msra.mxu0 0.0
        %3294 = vmatprep.subr.mxu0 0.0
        %3295 = vmatpush1.msra.mxu0 0.0
        %3296 = vmatprep.subr.mxu0 0.0
        %3297 = vmatpush1.msra.mxu0 0.0
        %3298 = vmatprep.subr.mxu0 0.0
        %3299 = vmatpush1.msra.mxu0 0.0
        %3300 = vmatprep.subr.mxu0 0.0
        %3301 = vmatpush1.msra.mxu0 0.0
        %3302 = vmatprep.subr.mxu0 0.0
        %3303 = vmatpush1.msra.mxu0 0.0
        %3304 = vmatprep.subr.mxu0 0.0
        %3305 = vmatpush1.msra.mxu0 0.0
        %3306 = vmatprep.subr.mxu0 0.0
        %3307 = vmatpush1.msra.mxu0 0.0
        %3308 = vmatprep.subr.mxu0 0.0
        %3309 = vmatpush1.msra.mxu0 0.0
        %3310 = vmatprep.subr.mxu0 0.0
        %3311 = vmatpush1.msra.mxu0 0.0
        %3312 = vmatprep.subr.mxu0 0.0
        %3313 = vmatpush1.msra.mxu0 0.0
        %3314 = vmatprep.subr.mxu0 0.0
        %3315 = vmatpush1.msra.mxu0 0.0
        %3316 = vmatprep.subr.mxu0 0.0
        %3317 = vmatpush1.msra.mxu0 0.0
        %3318 = vmatprep.subr.mxu0 0.0
        %3319 = vmatpush1.msra.mxu0 0.0
        %3320 = vmatprep.subr.mxu0 0.0
        %3321 = vmatpush1.msra.mxu0 0.0
        %3322 = vmatprep.subr.mxu0 0.0
        %3323 = vmatpush1.msra.mxu0 0.0
        %3324 = vmatprep.subr.mxu0 0.0
        %3325 = vmatpush1.msra.mxu0 0.0
        %3326 = vmatprep.subr.mxu0 0.0
        %3327 = vmatpush1.msra.mxu0 0.0
        %3328 = vmatprep.subr.mxu0 0.0
        %3329 = vmatpush1.msra.mxu0 0.0
        %3330 = vmatprep.subr.mxu0 0.0
        %3331 = vmatpush1.msra.mxu0 0.0
        %3332 = vmatprep.subr.mxu0 0.0
        %3333 = vmatpush1.msra.mxu0 0.0
        %3334 = vmatprep.subr.mxu0 0.0
        %3335 = vmatpush1.msra.mxu0 0.0
        %3336 = vmatprep.subr.mxu0 0.0
        %3337 = vmatpush1.msra.mxu0 0.0
        %3338 = vmatprep.subr.mxu0 0.0
        %3339 = vmatpush1.msra.mxu0 0.0
        %3340 = vmatprep.subr.mxu0 0.0
        %3341 = vmatpush1.msra.mxu0 0.0
        %3342 = vmatprep.mubr.f32.mxu0 0.0
        %3343 = vmatmul.mubr.f32.gmra.mrb[0].mxu0 %v3273
        %v3344 = vpop.f32.mrb[0].mxu0
        %v3345 = vadd.f32 0.0, %v3344
        %v3346 = vpop.f32.mrb[0].mxu0
        %3347 = vmatprep.mubr.f32.mxu0 0.0
        %3348 = vmatmul.mubr.f32.gmra.mrb[0].mxu0 %v3276
        %v3349 = vpop.f32.mrb[0].mxu0
        %v3350 = vadd.f32 0.0, %v3349
        %v3351 = vpop.f32.mrb[0].mxu0
        %3352 = vdwg.mxu0
        %v3354 = vsel %vm699, %v3084, 0
        %v3357 = vsel %vm699, %v3089, 0
        %v3360 = vsel %vm699, %v3171, 0
        %v3363 = vsel %vm699, %v3176, 0
        %v3366 = vsel %vm699, %v3258, 0
        %v3369 = vsel %vm699, %v3263, 0
        %v3372 = vsel %vm699, %v3345, 0
        %v3375 = vsel %vm699, %v3350, 0
        %3377 = vmatprep.subr.mxu0 0.0
        %3378 = vmatpush1.msra.mxu0 %v539
        %3379 = vmatprep.subr.mxu0 0.0
        %3380 = vmatpush1.msra.mxu0 0.0
        %3381 = vmatprep.subr.mxu0 0.0
        %3382 = vmatpush1.msra.mxu0 0.0
        %3383 = vmatprep.subr.mxu0 0.0
        %3384 = vmatpush1.msra.mxu0 0.0
        %3385 = vmatprep.subr.mxu0 0.0
        %3386 = vmatpush1.msra.mxu0 0.0
        %3387 = vmatprep.subr.mxu0 0.0
        %3388 = vmatpush1.msra.mxu0 0.0
        %3389 = vmatprep.subr.mxu0 0.0
        %3390 = vmatpush1.msra.mxu0 0.0
        %3391 = vmatprep.subr.mxu0 0.0
        %3392 = vmatpush1.msra.mxu0 0.0
        %3393 = vmatprep.subr.mxu0 0.0
        %3394 = vmatpush1.msra.mxu0 0.0
        %3395 = vmatprep.subr.mxu0 0.0
        %3396 = vmatpush1.msra.mxu0 0.0
        %3397 = vmatprep.subr.mxu0 0.0
        %3398 = vmatpush1.msra.mxu0 0.0
        %3399 = vmatprep.subr.mxu0 0.0
        %3400 = vmatpush1.msra.mxu0 0.0
        %3401 = vmatprep.subr.mxu0 0.0
        %3402 = vmatpush1.msra.mxu0 0.0
        %3403 = vmatprep.subr.mxu0 0.0
        %3404 = vmatpush1.msra.mxu0 0.0
        %3405 = vmatprep.subr.mxu0 0.0
        %3406 = vmatpush1.msra.mxu0 0.0
        %3407 = vmatprep.subr.mxu0 0.0
        %3408 = vmatpush1.msra.mxu0 0.0
        %3409 = vmatprep.subr.mxu0 0.0
        %3410 = vmatpush1.msra.mxu0 0.0
        %3411 = vmatprep.subr.mxu0 0.0
        %3412 = vmatpush1.msra.mxu0 0.0
        %3413 = vmatprep.subr.mxu0 0.0
        %3414 = vmatpush1.msra.mxu0 0.0
        %3415 = vmatprep.subr.mxu0 0.0
        %3416 = vmatpush1.msra.mxu0 0.0
        %3417 = vmatprep.subr.mxu0 0.0
        %3418 = vmatpush1.msra.mxu0 0.0
        %3419 = vmatprep.subr.mxu0 0.0
        %3420 = vmatpush1.msra.mxu0 0.0
        %3421 = vmatprep.subr.mxu0 0.0
        %3422 = vmatpush1.msra.mxu0 0.0
        %3423 = vmatprep.subr.mxu0 0.0
        %3424 = vmatpush1.msra.mxu0 0.0
        %3425 = vmatprep.subr.mxu0 0.0
        %3426 = vmatpush1.msra.mxu0 0.0
        %3427 = vmatprep.subr.mxu0 0.0
        %3428 = vmatpush1.msra.mxu0 0.0
        %3429 = vmatprep.subr.mxu0 0.0
        %3430 = vmatpush1.msra.mxu0 0.0
        %3431 = vmatprep.subr.mxu0 0.0
        %3432 = vmatpush1.msra.mxu0 0.0
        %3433 = vmatprep.subr.mxu0 0.0
        %3434 = vmatpush1.msra.mxu0 0.0
        %3435 = vmatprep.subr.mxu0 0.0
        %3436 = vmatpush1.msra.mxu0 0.0
        %3437 = vmatprep.subr.mxu0 0.0
        %3438 = vmatpush1.msra.mxu0 0.0
        %3439 = vmatprep.subr.mxu0 0.0
        %3440 = vmatpush1.msra.mxu0 0.0
        %3441 = vmatprep.mubr.f32.mxu0 0.0
        %3442 = vmatmul.mubr.f32.gmra.mrb[0].mxu0 %v3354
        %v3443 = vpop.f32.mrb[0].mxu0
        %v3444 = vadd.f32 0.0, %v3443
        %v3445 = vpop.f32.mrb[0].mxu0
        %3446 = vmatprep.mubr.f32.mxu0 0.0
        %3447 = vmatmul.mubr.f32.gmra.mrb[0].mxu0 %v3357
        %v3448 = vpop.f32.mrb[0].mxu0
        %v3449 = vadd.f32 0.0, %v3448
        %v3450 = vpop.f32.mrb[0].mxu0
        %3451 = vmatprep.mubr.f32.mxu0 0.0
        %3452 = vmatmul.mubr.f32.gmra.mrb[0].mxu0 %v3360
        %v3453 = vpop.f32.mrb[0].mxu0
        %v3454 = vadd.f32 0.0, %v3453
        %v3455 = vpop.f32.mrb[0].mxu0
        %3456 = vmatprep.mubr.f32.mxu0 0.0
        %3457 = vmatmul.mubr.f32.gmra.mrb[0].mxu0 %v3363
        %v3458 = vpop.f32.mrb[0].mxu0
        %v3459 = vadd.f32 0.0, %v3458
        %v3460 = vpop.f32.mrb[0].mxu0
        %3461 = vmatprep.mubr.f32.mxu0 0.0
        %3462 = vmatmul.mubr.f32.gmra.mrb[0].mxu0 %v3366
        %v3463 = vpop.f32.mrb[0].mxu0
        %v3464 = vadd.f32 0.0, %v3463
        %v3465 = vpop.f32.mrb[0].mxu0
        %3466 = vmatprep.mubr.f32.mxu0 0.0
        %3467 = vmatmul.mubr.f32.gmra.mrb[0].mxu0 %v3369
        %v3468 = vpop.f32.mrb[0].mxu0
        %v3469 = vadd.f32 0.0, %v3468
        %v3470 = vpop.f32.mrb[0].mxu0
        %3471 = vmatprep.mubr.f32.mxu0 0.0
        %3472 = vmatmul.mubr.f32.gmra.mrb[0].mxu0 %v3372
        %v3473 = vpop.f32.mrb[0].mxu0
        %v3474 = vadd.f32 0.0, %v3473
        %v3475 = vpop.f32.mrb[0].mxu0
        %3476 = vmatprep.mubr.f32.mxu0 0.0
        %3477 = vmatmul.mubr.f32.gmra.mrb[0].mxu0 %v3375
        %v3478 = vpop.f32.mrb[0].mxu0
        %v3479 = vadd.f32 0.0, %v3478
        %v3480 = vpop.f32.mrb[0].mxu0
        %3481 = vdwg.mxu0
        %v3482 = vadd.f32 %v2515, %v3444
        %v3483 = vadd.f32 %v2520, %v3449
        %v3484 = vadd.f32 %v2525, %v3454
        %v3485 = vadd.f32 %v2530, %v3459
        %v3486 = vadd.f32 %v2535, %v3464
        %v3487 = vadd.f32 %v2540, %v3469
        %v3488 = vadd.f32 %v2545, %v3474
        %v3489 = vadd.f32 %v2550, %v3479
        %3490 = vrot.lane.b32.xlu0 %v685, 104
        %v3491 = vpop.permute.xlu0 %3490
        %3492 = vrot.lane.b32.xlu0 %v686, 104
        %v3493 = vpop.permute.xlu0 %3492
        %3494 = vrot.lane.b32.xlu0 %v647, 72
        %v3495 = vpop.permute.xlu0 %3494
        %3496 = vrot.lane.b32.xlu0 %v652, 72
        %v3497 = vpop.permute.xlu0 %3496
        %v3498 = vsel %vm699, %v3491, 0
        %v3500 = vsel %vm699, %v3493, 0
        %v3502 = vsel %vm699, %v3495, 0
        %v3504 = vsel %vm699, %v3497, 0
        %3506 = vmatprep.subr.mxu0 0.0
        %3507 = vmatpush1.xpose.msra.mxu0 %v3502
        %3508 = vmatprep.subr.mxu0 0.0
        %3509 = vmatpush1.xpose.msra.mxu0 %v3504
        %3510 = vmatprep.subr.mxu0 0.0
        %3511 = vmatpush1.xpose.msra.mxu0 0.0
        %3512 = vmatprep.subr.mxu0 0.0
        %3513 = vmatpush1.xpose.msra.mxu0 0.0
        %3514 = vmatprep.subr.mxu0 0.0
        %3515 = vmatpush1.xpose.msra.mxu0 0.0
        %3516 = vmatprep.subr.mxu0 0.0
        %3517 = vmatpush1.xpose.msra.mxu0 0.0
        %3518 = vmatprep.subr.mxu0 0.0
        %3519 = vmatpush1.xpose.msra.mxu0 0.0
        %3520 = vmatprep.subr.mxu0 0.0
        %3521 = vmatpush1.xpose.msra.mxu0 0.0
        %3522 = vmatprep.subr.mxu0 0.0
        %3523 = vmatpush1.xpose.msra.mxu0 0.0
        %3524 = vmatprep.subr.mxu0 0.0
        %3525 = vmatpush1.xpose.msra.mxu0 0.0
        %3526 = vmatprep.subr.mxu0 0.0
        %3527 = vmatpush1.xpose.msra.mxu0 0.0
        %3528 = vmatprep.subr.mxu0 0.0
        %3529 = vmatpush1.xpose.msra.mxu0 0.0
        %3530 = vmatprep.subr.mxu0 0.0
        %3531 = vmatpush1.xpose.msra.mxu0 0.0
        %3532 = vmatprep.subr.mxu0 0.0
        %3533 = vmatpush1.xpose.msra.mxu0 0.0
        %3534 = vmatprep.subr.mxu0 0.0
        %3535 = vmatpush1.xpose.msra.mxu0 0.0
        %3536 = vmatprep.subr.mxu0 0.0
        %3537 = vmatpush1.xpose.msra.mxu0 0.0
        %3538 = vmatprep.subr.mxu0 0.0
        %3539 = vmatpush1.xpose.msra.mxu0 0.0
        %3540 = vmatprep.subr.mxu0 0.0
        %3541 = vmatpush1.xpose.msra.mxu0 0.0
        %3542 = vmatprep.subr.mxu0 0.0
        %3543 = vmatpush1.xpose.msra.mxu0 0.0
        %3544 = vmatprep.subr.mxu0 0.0
        %3545 = vmatpush1.xpose.msra.mxu0 0.0
        %3546 = vmatprep.subr.mxu0 0.0
        %3547 = vmatpush1.xpose.msra.mxu0 0.0
        %3548 = vmatprep.subr.mxu0 0.0
        %3549 = vmatpush1.xpose.msra.mxu0 0.0
        %3550 = vmatprep.subr.mxu0 0.0
        %3551 = vmatpush1.xpose.msra.mxu0 0.0
        %3552 = vmatprep.subr.mxu0 0.0
        %3553 = vmatpush1.xpose.msra.mxu0 0.0
        %3554 = vmatprep.subr.mxu0 0.0
        %3555 = vmatpush1.xpose.msra.mxu0 0.0
        %3556 = vmatprep.subr.mxu0 0.0
        %3557 = vmatpush1.xpose.msra.mxu0 0.0
        %3558 = vmatprep.subr.mxu0 0.0
        %3559 = vmatpush1.xpose.msra.mxu0 0.0
        %3560 = vmatprep.subr.mxu0 0.0
        %3561 = vmatpush1.xpose.msra.mxu0 0.0
        %3562 = vmatprep.subr.mxu0 0.0
        %3563 = vmatpush1.xpose.msra.mxu0 0.0
        %3564 = vmatprep.subr.mxu0 0.0
        %3565 = vmatpush1.xpose.msra.mxu0 0.0
        %3566 = vmatprep.subr.mxu0 0.0
        %3567 = vmatpush1.xpose.msra.mxu0 0.0
        %3568 = vmatprep.subr.mxu0 0.0
        %3569 = vmatpush1.xpose.msra.mxu0 0.0
        %3570 = vmatprep.mubr.f32.mxu0 0.0
        %3571 = vmatmul.mubr.f32.gmra.mrb[0].mxu0 %v3498
        %v3572 = vpop.f32.mrb[0].mxu0
        %v3573 = vadd.f32 %v547, %v3572
        %v3574 = vpop.f32.mrb[0].mxu0
        %3575 = vmatprep.mubr.f32.mxu0 0.0
        %3576 = vmatmul.mubr.f32.gmra.mrb[0].mxu0 %v3500
        %v3577 = vpop.f32.mrb[0].mxu0
        %v3578 = vadd.f32 %v548, %v3577
        %v3579 = vpop.f32.mrb[0].mxu0
        %3580 = vdwg.mxu0
        %3581 = vrot.lane.b32.xlu0 %v687, 104
        %v3582 = vpop.permute.xlu0 %3581
        %3583 = vrot.lane.b32.xlu0 %v688, 104
        %v3584 = vpop.permute.xlu0 %3583
        %3585 = vrot.lane.b32.xlu0 %v657, 72
        %v3586 = vpop.permute.xlu0 %3585
        %3587 = vrot.lane.b32.xlu0 %v662, 72
        %v3588 = vpop.permute.xlu0 %3587
        %v3589 = vsel %vm699, %v3582, 0
        %v3591 = vsel %vm699, %v3584, 0
        %v3593 = vsel %vm699, %v3586, 0
        %v3595 = vsel %vm699, %v3588, 0
        %3597 = vmatprep.subr.mxu0 0.0
        %3598 = vmatpush1.xpose.msra.mxu0 %v3593
        %3599 = vmatprep.subr.mxu0 0.0
        %3600 = vmatpush1.xpose.msra.mxu0 %v3595
        %3601 = vmatprep.subr.mxu0 0.0
        %3602 = vmatpush1.xpose.msra.mxu0 0.0
        %3603 = vmatprep.subr.mxu0 0.0
        %3604 = vmatpush1.xpose.msra.mxu0 0.0
        %3605 = vmatprep.subr.mxu0 0.0
        %3606 = vmatpush1.xpose.msra.mxu0 0.0
        %3607 = vmatprep.subr.mxu0 0.0
        %3608 = vmatpush1.xpose.msra.mxu0 0.0
        %3609 = vmatprep.subr.mxu0 0.0
        %3610 = vmatpush1.xpose.msra.mxu0 0.0
        %3611 = vmatprep.subr.mxu0 0.0
        %3612 = vmatpush1.xpose.msra.mxu0 0.0
        %3613 = vmatprep.subr.mxu0 0.0
        %3614 = vmatpush1.xpose.msra.mxu0 0.0
        %3615 = vmatprep.subr.mxu0 0.0
        %3616 = vmatpush1.xpose.msra.mxu0 0.0
        %3617 = vmatprep.subr.mxu0 0.0
        %3618 = vmatpush1.xpose.msra.mxu0 0.0
        %3619 = vmatprep.subr.mxu0 0.0
        %3620 = vmatpush1.xpose.msra.mxu0 0.0
        %3621 = vmatprep.subr.mxu0 0.0
        %3622 = vmatpush1.xpose.msra.mxu0 0.0
        %3623 = vmatprep.subr.mxu0 0.0
        %3624 = vmatpush1.xpose.msra.mxu0 0.0
        %3625 = vmatprep.subr.mxu0 0.0
        %3626 = vmatpush1.xpose.msra.mxu0 0.0
        %3627 = vmatprep.subr.mxu0 0.0
        %3628 = vmatpush1.xpose.msra.mxu0 0.0
        %3629 = vmatprep.subr.mxu0 0.0
        %3630 = vmatpush1.xpose.msra.mxu0 0.0
        %3631 = vmatprep.subr.mxu0 0.0
        %3632 = vmatpush1.xpose.msra.mxu0 0.0
        %3633 = vmatprep.subr.mxu0 0.0
        %3634 = vmatpush1.xpose.msra.mxu0 0.0
        %3635 = vmatprep.subr.mxu0 0.0
        %3636 = vmatpush1.xpose.msra.mxu0 0.0
        %3637 = vmatprep.subr.mxu0 0.0
        %3638 = vmatpush1.xpose.msra.mxu0 0.0
        %3639 = vmatprep.subr.mxu0 0.0
        %3640 = vmatpush1.xpose.msra.mxu0 0.0
        %3641 = vmatprep.subr.mxu0 0.0
        %3642 = vmatpush1.xpose.msra.mxu0 0.0
        %3643 = vmatprep.subr.mxu0 0.0
        %3644 = vmatpush1.xpose.msra.mxu0 0.0
        %3645 = vmatprep.subr.mxu0 0.0
        %3646 = vmatpush1.xpose.msra.mxu0 0.0
        %3647 = vmatprep.subr.mxu0 0.0
        %3648 = vmatpush1.xpose.msra.mxu0 0.0
        %3649 = vmatprep.subr.mxu0 0.0
        %3650 = vmatpush1.xpose.msra.mxu0 0.0
        %3651 = vmatprep.subr.mxu0 0.0
        %3652 = vmatpush1.xpose.msra.mxu0 0.0
        %3653 = vmatprep.subr.mxu0 0.0
        %3654 = vmatpush1.xpose.msra.mxu0 0.0
        %3655 = vmatprep.subr.mxu0 0.0
        %3656 = vmatpush1.xpose.msra.mxu0 0.0
        %3657 = vmatprep.subr.mxu0 0.0
        %3658 = vmatpush1.xpose.msra.mxu0 0.0
        %3659 = vmatprep.subr.mxu0 0.0
        %3660 = vmatpush1.xpose.msra.mxu0 0.0
        %3661 = vmatprep.mubr.f32.mxu0 0.0
        %3662 = vmatmul.mubr.f32.gmra.mrb[0].mxu0 %v3589
        %v3663 = vpop.f32.mrb[0].mxu0
        %v3664 = vadd.f32 %v547, %v3663
        %v3665 = vpop.f32.mrb[0].mxu0
        %3666 = vmatprep.mubr.f32.mxu0 0.0
        %3667 = vmatmul.mubr.f32.gmra.mrb[0].mxu0 %v3591
        %v3668 = vpop.f32.mrb[0].mxu0
        %v3669 = vadd.f32 %v548, %v3668
        %v3670 = vpop.f32.mrb[0].mxu0
        %3671 = vdwg.mxu0
        %3672 = vrot.lane.b32.xlu0 %v689, 104
        %v3673 = vpop.permute.xlu0 %3672
        %3674 = vrot.lane.b32.xlu0 %v690, 104
        %v3675 = vpop.permute.xlu0 %3674
        %3676 = vrot.lane.b32.xlu0 %v667, 72
        %v3677 = vpop.permute.xlu0 %3676
        %3678 = vrot.lane.b32.xlu0 %v672, 72
        %v3679 = vpop.permute.xlu0 %3678
        %v3680 = vsel %vm699, %v3673, 0
        %v3682 = vsel %vm699, %v3675, 0
        %v3684 = vsel %vm699, %v3677, 0
        %v3686 = vsel %vm699, %v3679, 0
        %3688 = vmatprep.subr.mxu0 0.0
        %3689 = vmatpush1.xpose.msra.mxu0 %v3684
        %3690 = vmatprep.subr.mxu0 0.0
        %3691 = vmatpush1.xpose.msra.mxu0 %v3686
        %3692 = vmatprep.subr.mxu0 0.0
        %3693 = vmatpush1.xpose.msra.mxu0 0.0
        %3694 = vmatprep.subr.mxu0 0.0
        %3695 = vmatpush1.xpose.msra.mxu0 0.0
        %3696 = vmatprep.subr.mxu0 0.0
        %3697 = vmatpush1.xpose.msra.mxu0 0.0
        %3698 = vmatprep.subr.mxu0 0.0
        %3699 = vmatpush1.xpose.msra.mxu0 0.0
        %3700 = vmatprep.subr.mxu0 0.0
        %3701 = vmatpush1.xpose.msra.mxu0 0.0
        %3702 = vmatprep.subr.mxu0 0.0
        %3703 = vmatpush1.xpose.msra.mxu0 0.0
        %3704 = vmatprep.subr.mxu0 0.0
        %3705 = vmatpush1.xpose.msra.mxu0 0.0
        %3706 = vmatprep.subr.mxu0 0.0
        %3707 = vmatpush1.xpose.msra.mxu0 0.0
        %3708 = vmatprep.subr.mxu0 0.0
        %3709 = vmatpush1.xpose.msra.mxu0 0.0
        %3710 = vmatprep.subr.mxu0 0.0
        %3711 = vmatpush1.xpose.msra.mxu0 0.0
        %3712 = vmatprep.subr.mxu0 0.0
        %3713 = vmatpush1.xpose.msra.mxu0 0.0
        %3714 = vmatprep.subr.mxu0 0.0
        %3715 = vmatpush1.xpose.msra.mxu0 0.0
        %3716 = vmatprep.subr.mxu0 0.0
        %3717 = vmatpush1.xpose.msra.mxu0 0.0
        %3718 = vmatprep.subr.mxu0 0.0
        %3719 = vmatpush1.xpose.msra.mxu0 0.0
        %3720 = vmatprep.subr.mxu0 0.0
        %3721 = vmatpush1.xpose.msra.mxu0 0.0
        %3722 = vmatprep.subr.mxu0 0.0
        %3723 = vmatpush1.xpose.msra.mxu0 0.0
        %3724 = vmatprep.subr.mxu0 0.0
        %3725 = vmatpush1.xpose.msra.mxu0 0.0
        %3726 = vmatprep.subr.mxu0 0.0
        %3727 = vmatpush1.xpose.msra.mxu0 0.0
        %3728 = vmatprep.subr.mxu0 0.0
        %3729 = vmatpush1.xpose.msra.mxu0 0.0
        %3730 = vmatprep.subr.mxu0 0.0
        %3731 = vmatpush1.xpose.msra.mxu0 0.0
        %3732 = vmatprep.subr.mxu0 0.0
        %3733 = vmatpush1.xpose.msra.mxu0 0.0
        %3734 = vmatprep.subr.mxu0 0.0
        %3735 = vmatpush1.xpose.msra.mxu0 0.0
        %3736 = vmatprep.subr.mxu0 0.0
        %3737 = vmatpush1.xpose.msra.mxu0 0.0
        %3738 = vmatprep.subr.mxu0 0.0
        %3739 = vmatpush1.xpose.msra.mxu0 0.0
        %3740 = vmatprep.subr.mxu0 0.0
        %3741 = vmatpush1.xpose.msra.mxu0 0.0
        %3742 = vmatprep.subr.mxu0 0.0
        %3743 = vmatpush1.xpose.msra.mxu0 0.0
        %3744 = vmatprep.subr.mxu0 0.0
        %3745 = vmatpush1.xpose.msra.mxu0 0.0
        %3746 = vmatprep.subr.mxu0 0.0
        %3747 = vmatpush1.xpose.msra.mxu0 0.0
        %3748 = vmatprep.subr.mxu0 0.0
        %3749 = vmatpush1.xpose.msra.mxu0 0.0
        %3750 = vmatprep.subr.mxu0 0.0
        %3751 = vmatpush1.xpose.msra.mxu0 0.0
        %3752 = vmatprep.mubr.f32.mxu0 0.0
        %3753 = vmatmul.mubr.f32.gmra.mrb[0].mxu0 %v3680
        %v3754 = vpop.f32.mrb[0].mxu0
        %v3755 = vadd.f32 %v547, %v3754
        %v3756 = vpop.f32.mrb[0].mxu0
        %3757 = vmatprep.mubr.f32.mxu0 0.0
        %3758 = vmatmul.mubr.f32.gmra.mrb[0].mxu0 %v3682
        %v3759 = vpop.f32.mrb[0].mxu0
        %v3760 = vadd.f32 %v548, %v3759
        %v3761 = vpop.f32.mrb[0].mxu0
        %3762 = vdwg.mxu0
        %3763 = vrot.lane.b32.xlu0 %v691, 104
        %v3764 = vpop.permute.xlu0 %3763
        %3765 = vrot.lane.b32.xlu0 %v692, 104
        %v3766 = vpop.permute.xlu0 %3765
        %3767 = vrot.lane.b32.xlu0 %v677, 72
        %v3768 = vpop.permute.xlu0 %3767
        %3769 = vrot.lane.b32.xlu0 %v682, 72
        %v3770 = vpop.permute.xlu0 %3769
        %v3771 = vsel %vm699, %v3764, 0
        %v3773 = vsel %vm699, %v3766, 0
        %v3775 = vsel %vm699, %v3768, 0
        %v3777 = vsel %vm699, %v3770, 0
        %3779 = vmatprep.subr.mxu0 0.0
        %3780 = vmatpush1.xpose.msra.mxu0 %v3775
        %3781 = vmatprep.subr.mxu0 0.0
        %3782 = vmatpush1.xpose.msra.mxu0 %v3777
        %3783 = vmatprep.subr.mxu0 0.0
        %3784 = vmatpush1.xpose.msra.mxu0 0.0
        %3785 = vmatprep.subr.mxu0 0.0
        %3786 = vmatpush1.xpose.msra.mxu0 0.0
        %3787 = vmatprep.subr.mxu0 0.0
        %3788 = vmatpush1.xpose.msra.mxu0 0.0
        %3789 = vmatprep.subr.mxu0 0.0
        %3790 = vmatpush1.xpose.msra.mxu0 0.0
        %3791 = vmatprep.subr.mxu0 0.0
        %3792 = vmatpush1.xpose.msra.mxu0 0.0
        %3793 = vmatprep.subr.mxu0 0.0
        %3794 = vmatpush1.xpose.msra.mxu0 0.0
        %3795 = vmatprep.subr.mxu0 0.0
        %3796 = vmatpush1.xpose.msra.mxu0 0.0
        %3797 = vmatprep.subr.mxu0 0.0
        %3798 = vmatpush1.xpose.msra.mxu0 0.0
        %3799 = vmatprep.subr.mxu0 0.0
        %3800 = vmatpush1.xpose.msra.mxu0 0.0
        %3801 = vmatprep.subr.mxu0 0.0
        %3802 = vmatpush1.xpose.msra.mxu0 0.0
        %3803 = vmatprep.subr.mxu0 0.0
        %3804 = vmatpush1.xpose.msra.mxu0 0.0
        %3805 = vmatprep.subr.mxu0 0.0
        %3806 = vmatpush1.xpose.msra.mxu0 0.0
        %3807 = vmatprep.subr.mxu0 0.0
        %3808 = vmatpush1.xpose.msra.mxu0 0.0
        %3809 = vmatprep.subr.mxu0 0.0
        %3810 = vmatpush1.xpose.msra.mxu0 0.0
        %3811 = vmatprep.subr.mxu0 0.0
        %3812 = vmatpush1.xpose.msra.mxu0 0.0
        %3813 = vmatprep.subr.mxu0 0.0
        %3814 = vmatpush1.xpose.msra.mxu0 0.0
        %3815 = vmatprep.subr.mxu0 0.0
        %3816 = vmatpush1.xpose.msra.mxu0 0.0
        %3817 = vmatprep.subr.mxu0 0.0
        %3818 = vmatpush1.xpose.msra.mxu0 0.0
        %3819 = vmatprep.subr.mxu0 0.0
        %3820 = vmatpush1.xpose.msra.mxu0 0.0
        %3821 = vmatprep.subr.mxu0 0.0
        %3822 = vmatpush1.xpose.msra.mxu0 0.0
        %3823 = vmatprep.subr.mxu0 0.0
        %3824 = vmatpush1.xpose.msra.mxu0 0.0
        %3825 = vmatprep.subr.mxu0 0.0
        %3826 = vmatpush1.xpose.msra.mxu0 0.0
        %3827 = vmatprep.subr.mxu0 0.0
        %3828 = vmatpush1.xpose.msra.mxu0 0.0
        %3829 = vmatprep.subr.mxu0 0.0
        %3830 = vmatpush1.xpose.msra.mxu0 0.0
        %3831 = vmatprep.subr.mxu0 0.0
        %3832 = vmatpush1.xpose.msra.mxu0 0.0
        %3833 = vmatprep.subr.mxu0 0.0
        %3834 = vmatpush1.xpose.msra.mxu0 0.0
        %3835 = vmatprep.subr.mxu0 0.0
        %3836 = vmatpush1.xpose.msra.mxu0 0.0
        %3837 = vmatprep.subr.mxu0 0.0
        %3838 = vmatpush1.xpose.msra.mxu0 0.0
        %3839 = vmatprep.subr.mxu0 0.0
        %3840 = vmatpush1.xpose.msra.mxu0 0.0
        %3841 = vmatprep.subr.mxu0 0.0
        %3842 = vmatpush1.xpose.msra.mxu0 0.0
        %3843 = vmatprep.mubr.f32.mxu0 0.0
        %3844 = vmatmul.mubr.f32.gmra.mrb[0].mxu0 %v3771
        %v3845 = vpop.f32.mrb[0].mxu0
        %v3846 = vadd.f32 %v547, %v3845
        %v3847 = vpop.f32.mrb[0].mxu0
        %3848 = vmatprep.mubr.f32.mxu0 0.0
        %3849 = vmatmul.mubr.f32.gmra.mrb[0].mxu0 %v3773
        %v3850 = vpop.f32.mrb[0].mxu0
        %v3851 = vadd.f32 %v548, %v3850
        %v3852 = vpop.f32.mrb[0].mxu0
        %3853 = vdwg.mxu0
        %v3854 = vsel %vm1058, %v3573, -inf
        %3855 = vmax.xlane.f32.xlu0 %v3854
        %v3856 = vpop.xlane.xlu0 %3855
        %v3857 = vsel %vm1058, %v3578, -inf
        %3858 = vmax.xlane.f32.xlu0 %v3857
        %v3859 = vpop.xlane.xlu0 %3858
        %v3860 = vsel %vm1058, %v3664, -inf
        %3861 = vmax.xlane.f32.xlu0 %v3860
        %v3862 = vpop.xlane.xlu0 %3861
        %v3863 = vsel %vm1058, %v3669, -inf
        %3864 = vmax.xlane.f32.xlu0 %v3863
        %v3865 = vpop.xlane.xlu0 %3864
        %v3866 = vsel %vm1058, %v3755, -inf
        %3867 = vmax.xlane.f32.xlu0 %v3866
        %v3868 = vpop.xlane.xlu0 %3867
        %v3869 = vsel %vm1058, %v3760, -inf
        %3870 = vmax.xlane.f32.xlu0 %v3869
        %v3871 = vpop.xlane.xlu0 %3870
        %v3872 = vsel %vm1058, %v3846, -inf
        %3873 = vmax.xlane.f32.xlu0 %v3872
        %v3874 = vpop.xlane.xlu0 %3873
        %v3875 = vsel %vm1058, %v3851, -inf
        %3876 = vmax.xlane.f32.xlu0 %v3875
        %v3877 = vpop.xlane.xlu0 %3876
        %v3878 = vsub.f32 %v3573, %v3856
        %v3879 = vsub.f32 %v3578, %v3859
        %v3880 = vsub.f32 %v3664, %v3862
        %v3881 = vsub.f32 %v3669, %v3865
        %v3882 = vsub.f32 %v3755, %v3868
        %v3883 = vsub.f32 %v3760, %v3871
        %v3884 = vsub.f32 %v3846, %v3874
        %v3885 = vsub.f32 %v3851, %v3877
        %v3886 = vmul.f32 %v3878, 1.442695
        %v3887 = vpow.pop %v3886
        %v3888 = vmul.f32 %v3879, 1.442695
        %v3889 = vpow.pop %v3888
        %v3890 = vmul.f32 %v3880, 1.442695
        %v3891 = vpow.pop %v3890
        %v3892 = vmul.f32 %v3881, 1.442695
        %v3893 = vpow.pop %v3892
        %v3894 = vmul.f32 %v3882, 1.442695
        %v3895 = vpow.pop %v3894
        %v3896 = vmul.f32 %v3883, 1.442695
        %v3897 = vpow.pop %v3896
        %v3898 = vmul.f32 %v3884, 1.442695
        %v3899 = vpow.pop %v3898
        %v3900 = vmul.f32 %v3885, 1.442695
        %v3901 = vpow.pop %v3900
        %v3902 = vsel %vm1058, %v3887, 0.0
        %3903 = vadd.xlane.f32.xlu0 %v3902
        %v3904 = vpop.xlane.xlu0 %3903
        %v3905 = vsel %vm1058, %v3889, 0.0
        %3906 = vadd.xlane.f32.xlu0 %v3905
        %v3907 = vpop.xlane.xlu0 %3906
        %v3908 = vsel %vm1058, %v3891, 0.0
        %3909 = vadd.xlane.f32.xlu0 %v3908
        %v3910 = vpop.xlane.xlu0 %3909
        %v3911 = vsel %vm1058, %v3893, 0.0
        %3912 = vadd.xlane.f32.xlu0 %v3911
        %v3913 = vpop.xlane.xlu0 %3912
        %v3914 = vsel %vm1058, %v3895, 0.0
        %3915 = vadd.xlane.f32.xlu0 %v3914
        %v3916 = vpop.xlane.xlu0 %3915
        %v3917 = vsel %vm1058, %v3897, 0.0
        %3918 = vadd.xlane.f32.xlu0 %v3917
        %v3919 = vpop.xlane.xlu0 %3918
        %v3920 = vsel %vm1058, %v3899, 0.0
        %3921 = vadd.xlane.f32.xlu0 %v3920
        %v3922 = vpop.xlane.xlu0 %3921
        %v3923 = vsel %vm1058, %v3901, 0.0
        %3924 = vadd.xlane.f32.xlu0 %v3923
        %v3925 = vpop.xlane.xlu0 %3924
        %v3926 = vrcp.pop %v3904
        %v3927 = vmul.f32 %v3887, %v3926
        %v3928 = vrcp.pop %v3907
        %v3929 = vmul.f32 %v3889, %v3928
        %v3930 = vrcp.pop %v3910
        %v3931 = vmul.f32 %v3891, %v3930
        %v3932 = vrcp.pop %v3913
        %v3933 = vmul.f32 %v3893, %v3932
        %v3934 = vrcp.pop %v3916
        %v3935 = vmul.f32 %v3895, %v3934
        %v3936 = vrcp.pop %v3919
        %v3937 = vmul.f32 %v3897, %v3936
        %v3938 = vrcp.pop %v3922
        %v3939 = vmul.f32 %v3899, %v3938
        %v3940 = vrcp.pop %v3925
        %v3941 = vmul.f32 %v3901, %v3940
        %3942 = vrot.lane.b32.xlu0 %v647, 40
        %v3943 = vpop.permute.xlu0 %3942
        %3944 = vrot.lane.b32.xlu0 %v652, 40
        %v3945 = vpop.permute.xlu0 %3944
        %v3949 = vsel %vm1058, %v3927, 0
        %v3952 = vsel %vm1058, %v3929, 0
        %3954 = vmatprep.subr.mxu0 0.0
        %3955 = vmatpush1.msra.mxu0 %v3943
        %3956 = vmatprep.subr.mxu0 0.0
        %3957 = vmatpush1.msra.mxu0 %v3945
        %3958 = vmatprep.subr.mxu0 0.0
        %3959 = vmatpush1.msra.mxu0 0.0
        %3960 = vmatprep.subr.mxu0 0.0
        %3961 = vmatpush1.msra.mxu0 0.0
        %3962 = vmatprep.subr.mxu0 0.0
        %3963 = vmatpush1.msra.mxu0 0.0
        %3964 = vmatprep.subr.mxu0 0.0
        %3965 = vmatpush1.msra.mxu0 0.0
        %3966 = vmatprep.subr.mxu0 0.0
        %3967 = vmatpush1.msra.mxu0 0.0
        %3968 = vmatprep.subr.mxu0 0.0
        %3969 = vmatpush1.msra.mxu0 0.0
        %3970 = vmatprep.subr.mxu0 0.0
        %3971 = vmatpush1.msra.mxu0 0.0
        %3972 = vmatprep.subr.mxu0 0.0
        %3973 = vmatpush1.msra.mxu0 0.0
        %3974 = vmatprep.subr.mxu0 0.0
        %3975 = vmatpush1.msra.mxu0 0.0
        %3976 = vmatprep.subr.mxu0 0.0
        %3977 = vmatpush1.msra.mxu0 0.0
        %3978 = vmatprep.subr.mxu0 0.0
        %3979 = vmatpush1.msra.mxu0 0.0
        %3980 = vmatprep.subr.mxu0 0.0
        %3981 = vmatpush1.msra.mxu0 0.0
        %3982 = vmatprep.subr.mxu0 0.0
        %3983 = vmatpush1.msra.mxu0 0.0
        %3984 = vmatprep.subr.mxu0 0.0
        %3985 = vmatpush1.msra.mxu0 0.0
        %3986 = vmatprep.subr.mxu0 0.0
        %3987 = vmatpush1.msra.mxu0 0.0
        %3988 = vmatprep.subr.mxu0 0.0
        %3989 = vmatpush1.msra.mxu0 0.0
        %3990 = vmatprep.subr.mxu0 0.0
        %3991 = vmatpush1.msra.mxu0 0.0
        %3992 = vmatprep.subr.mxu0 0.0
        %3993 = vmatpush1.msra.mxu0 0.0
        %3994 = vmatprep.subr.mxu0 0.0
        %3995 = vmatpush1.msra.mxu0 0.0
        %3996 = vmatprep.subr.mxu0 0.0
        %3997 = vmatpush1.msra.mxu0 0.0
        %3998 = vmatprep.subr.mxu0 0.0
        %3999 = vmatpush1.msra.mxu0 0.0
        %4000 = vmatprep.subr.mxu0 0.0
        %4001 = vmatpush1.msra.mxu0 0.0
        %4002 = vmatprep.subr.mxu0 0.0
        %4003 = vmatpush1.msra.mxu0 0.0
        %4004 = vmatprep.subr.mxu0 0.0
        %4005 = vmatpush1.msra.mxu0 0.0
        %4006 = vmatprep.subr.mxu0 0.0
        %4007 = vmatpush1.msra.mxu0 0.0
        %4008 = vmatprep.subr.mxu0 0.0
        %4009 = vmatpush1.msra.mxu0 0.0
        %4010 = vmatprep.subr.mxu0 0.0
        %4011 = vmatpush1.msra.mxu0 0.0
        %4012 = vmatprep.subr.mxu0 0.0
        %4013 = vmatpush1.msra.mxu0 0.0
        %4014 = vmatprep.subr.mxu0 0.0
        %4015 = vmatpush1.msra.mxu0 0.0
        %4016 = vmatprep.subr.mxu0 0.0
        %4017 = vmatpush1.msra.mxu0 0.0
        %4018 = vmatprep.mubr.f32.mxu0 0.0
        %4019 = vmatmul.mubr.f32.gmra.mrb[0].mxu0 %v3949
        %v4020 = vpop.f32.mrb[0].mxu0
        %v4021 = vadd.f32 0.0, %v4020
        %v4022 = vpop.f32.mrb[0].mxu0
        %4023 = vmatprep.mubr.f32.mxu0 0.0
        %4024 = vmatmul.mubr.f32.gmra.mrb[0].mxu0 %v3952
        %v4025 = vpop.f32.mrb[0].mxu0
        %v4026 = vadd.f32 0.0, %v4025
        %v4027 = vpop.f32.mrb[0].mxu0
        %4028 = vdwg.mxu0
        %4029 = vrot.lane.b32.xlu0 %v657, 40
        %v4030 = vpop.permute.xlu0 %4029
        %4031 = vrot.lane.b32.xlu0 %v662, 40
        %v4032 = vpop.permute.xlu0 %4031
        %v4036 = vsel %vm1058, %v3931, 0
        %v4039 = vsel %vm1058, %v3933, 0
        %4041 = vmatprep.subr.mxu0 0.0
        %4042 = vmatpush1.msra.mxu0 %v4030
        %4043 = vmatprep.subr.mxu0 0.0
        %4044 = vmatpush1.msra.mxu0 %v4032
        %4045 = vmatprep.subr.mxu0 0.0
        %4046 = vmatpush1.msra.mxu0 0.0
        %4047 = vmatprep.subr.mxu0 0.0
        %4048 = vmatpush1.msra.mxu0 0.0
        %4049 = vmatprep.subr.mxu0 0.0
        %4050 = vmatpush1.msra.mxu0 0.0
        %4051 = vmatprep.subr.mxu0 0.0
        %4052 = vmatpush1.msra.mxu0 0.0
        %4053 = vmatprep.subr.mxu0 0.0
        %4054 = vmatpush1.msra.mxu0 0.0
        %4055 = vmatprep.subr.mxu0 0.0
        %4056 = vmatpush1.msra.mxu0 0.0
        %4057 = vmatprep.subr.mxu0 0.0
        %4058 = vmatpush1.msra.mxu0 0.0
        %4059 = vmatprep.subr.mxu0 0.0
        %4060 = vmatpush1.msra.mxu0 0.0
        %4061 = vmatprep.subr.mxu0 0.0
        %4062 = vmatpush1.msra.mxu0 0.0
        %4063 = vmatprep.subr.mxu0 0.0
        %4064 = vmatpush1.msra.mxu0 0.0
        %4065 = vmatprep.subr.mxu0 0.0
        %4066 = vmatpush1.msra.mxu0 0.0
        %4067 = vmatprep.subr.mxu0 0.0
        %4068 = vmatpush1.msra.mxu0 0.0
        %4069 = vmatprep.subr.mxu0 0.0
        %4070 = vmatpush1.msra.mxu0 0.0
        %4071 = vmatprep.subr.mxu0 0.0
        %4072 = vmatpush1.msra.mxu0 0.0
        %4073 = vmatprep.subr.mxu0 0.0
        %4074 = vmatpush1.msra.mxu0 0.0
        %4075 = vmatprep.subr.mxu0 0.0
        %4076 = vmatpush1.msra.mxu0 0.0
        %4077 = vmatprep.subr.mxu0 0.0
        %4078 = vmatpush1.msra.mxu0 0.0
        %4079 = vmatprep.subr.mxu0 0.0
        %4080 = vmatpush1.msra.mxu0 0.0
        %4081 = vmatprep.subr.mxu0 0.0
        %4082 = vmatpush1.msra.mxu0 0.0
        %4083 = vmatprep.subr.mxu0 0.0
        %4084 = vmatpush1.msra.mxu0 0.0
        %4085 = vmatprep.subr.mxu0 0.0
        %4086 = vmatpush1.msra.mxu0 0.0
        %4087 = vmatprep.subr.mxu0 0.0
        %4088 = vmatpush1.msra.mxu0 0.0
        %4089 = vmatprep.subr.mxu0 0.0
        %4090 = vmatpush1.msra.mxu0 0.0
        %4091 = vmatprep.subr.mxu0 0.0
        %4092 = vmatpush1.msra.mxu0 0.0
        %4093 = vmatprep.subr.mxu0 0.0
        %4094 = vmatpush1.msra.mxu0 0.0
        %4095 = vmatprep.subr.mxu0 0.0
        %4096 = vmatpush1.msra.mxu0 0.0
        %4097 = vmatprep.subr.mxu0 0.0
        %4098 = vmatpush1.msra.mxu0 0.0
        %4099 = vmatprep.subr.mxu0 0.0
        %4100 = vmatpush1.msra.mxu0 0.0
        %4101 = vmatprep.subr.mxu0 0.0
        %4102 = vmatpush1.msra.mxu0 0.0
        %4103 = vmatprep.subr.mxu0 0.0
        %4104 = vmatpush1.msra.mxu0 0.0
        %4105 = vmatprep.mubr.f32.mxu0 0.0
        %4106 = vmatmul.mubr.f32.gmra.mrb[0].mxu0 %v4036
        %v4107 = vpop.f32.mrb[0].mxu0
        %v4108 = vadd.f32 0.0, %v4107
        %v4109 = vpop.f32.mrb[0].mxu0
        %4110 = vmatprep.mubr.f32.mxu0 0.0
        %4111 = vmatmul.mubr.f32.gmra.mrb[0].mxu0 %v4039
        %v4112 = vpop.f32.mrb[0].mxu0
        %v4113 = vadd.f32 0.0, %v4112
        %v4114 = vpop.f32.mrb[0].mxu0
        %4115 = vdwg.mxu0
        %4116 = vrot.lane.b32.xlu0 %v667, 40
        %v4117 = vpop.permute.xlu0 %4116
        %4118 = vrot.lane.b32.xlu0 %v672, 40
        %v4119 = vpop.permute.xlu0 %4118
        %v4123 = vsel %vm1058, %v3935, 0
        %v4126 = vsel %vm1058, %v3937, 0
        %4128 = vmatprep.subr.mxu0 0.0
        %4129 = vmatpush1.msra.mxu0 %v4117
        %4130 = vmatprep.subr.mxu0 0.0
        %4131 = vmatpush1.msra.mxu0 %v4119
        %4132 = vmatprep.subr.mxu0 0.0
        %4133 = vmatpush1.msra.mxu0 0.0
        %4134 = vmatprep.subr.mxu0 0.0
        %4135 = vmatpush1.msra.mxu0 0.0
        %4136 = vmatprep.subr.mxu0 0.0
        %4137 = vmatpush1.msra.mxu0 0.0
        %4138 = vmatprep.subr.mxu0 0.0
        %4139 = vmatpush1.msra.mxu0 0.0
        %4140 = vmatprep.subr.mxu0 0.0
        %4141 = vmatpush1.msra.mxu0 0.0
        %4142 = vmatprep.subr.mxu0 0.0
        %4143 = vmatpush1.msra.mxu0 0.0
        %4144 = vmatprep.subr.mxu0 0.0
        %4145 = vmatpush1.msra.mxu0 0.0
        %4146 = vmatprep.subr.mxu0 0.0
        %4147 = vmatpush1.msra.mxu0 0.0
        %4148 = vmatprep.subr.mxu0 0.0
        %4149 = vmatpush1.msra.mxu0 0.0
        %4150 = vmatprep.subr.mxu0 0.0
        %4151 = vmatpush1.msra.mxu0 0.0
        %4152 = vmatprep.subr.mxu0 0.0
        %4153 = vmatpush1.msra.mxu0 0.0
        %4154 = vmatprep.subr.mxu0 0.0
        %4155 = vmatpush1.msra.mxu0 0.0
        %4156 = vmatprep.subr.mxu0 0.0
        %4157 = vmatpush1.msra.mxu0 0.0
        %4158 = vmatprep.subr.mxu0 0.0
        %4159 = vmatpush1.msra.mxu0 0.0
        %4160 = vmatprep.subr.mxu0 0.0
        %4161 = vmatpush1.msra.mxu0 0.0
        %4162 = vmatprep.subr.mxu0 0.0
        %4163 = vmatpush1.msra.mxu0 0.0
        %4164 = vmatprep.subr.mxu0 0.0
        %4165 = vmatpush1.msra.mxu0 0.0
        %4166 = vmatprep.subr.mxu0 0.0
        %4167 = vmatpush1.msra.mxu0 0.0
        %4168 = vmatprep.subr.mxu0 0.0
        %4169 = vmatpush1.msra.mxu0 0.0
        %4170 = vmatprep.subr.mxu0 0.0
        %4171 = vmatpush1.msra.mxu0 0.0
        %4172 = vmatprep.subr.mxu0 0.0
        %4173 = vmatpush1.msra.mxu0 0.0
        %4174 = vmatprep.subr.mxu0 0.0
        %4175 = vmatpush1.msra.mxu0 0.0
        %4176 = vmatprep.subr.mxu0 0.0
        %4177 = vmatpush1.msra.mxu0 0.0
        %4178 = vmatprep.subr.mxu0 0.0
        %4179 = vmatpush1.msra.mxu0 0.0
        %4180 = vmatprep.subr.mxu0 0.0
        %4181 = vmatpush1.msra.mxu0 0.0
        %4182 = vmatprep.subr.mxu0 0.0
        %4183 = vmatpush1.msra.mxu0 0.0
        %4184 = vmatprep.subr.mxu0 0.0
        %4185 = vmatpush1.msra.mxu0 0.0
        %4186 = vmatprep.subr.mxu0 0.0
        %4187 = vmatpush1.msra.mxu0 0.0
        %4188 = vmatprep.subr.mxu0 0.0
        %4189 = vmatpush1.msra.mxu0 0.0
        %4190 = vmatprep.subr.mxu0 0.0
        %4191 = vmatpush1.msra.mxu0 0.0
        %4192 = vmatprep.mubr.f32.mxu0 0.0
        %4193 = vmatmul.mubr.f32.gmra.mrb[0].mxu0 %v4123
        %v4194 = vpop.f32.mrb[0].mxu0
        %v4195 = vadd.f32 0.0, %v4194
        %v4196 = vpop.f32.mrb[0].mxu0
        %4197 = vmatprep.mubr.f32.mxu0 0.0
        %4198 = vmatmul.mubr.f32.gmra.mrb[0].mxu0 %v4126
        %v4199 = vpop.f32.mrb[0].mxu0
        %v4200 = vadd.f32 0.0, %v4199
        %v4201 = vpop.f32.mrb[0].mxu0
        %4202 = vdwg.mxu0
        %4203 = vrot.lane.b32.xlu0 %v677, 40
        %v4204 = vpop.permute.xlu0 %4203
        %4205 = vrot.lane.b32.xlu0 %v682, 40
        %v4206 = vpop.permute.xlu0 %4205
        %v4210 = vsel %vm1058, %v3939, 0
        %v4213 = vsel %vm1058, %v3941, 0
        %4215 = vmatprep.subr.mxu0 0.0
        %4216 = vmatpush1.msra.mxu0 %v4204
        %4217 = vmatprep.subr.mxu0 0.0
        %4218 = vmatpush1.msra.mxu0 %v4206
        %4219 = vmatprep.subr.mxu0 0.0
        %4220 = vmatpush1.msra.mxu0 0.0
        %4221 = vmatprep.subr.mxu0 0.0
        %4222 = vmatpush1.msra.mxu0 0.0
        %4223 = vmatprep.subr.mxu0 0.0
        %4224 = vmatpush1.msra.mxu0 0.0
        %4225 = vmatprep.subr.mxu0 0.0
        %4226 = vmatpush1.msra.mxu0 0.0
        %4227 = vmatprep.subr.mxu0 0.0
        %4228 = vmatpush1.msra.mxu0 0.0
        %4229 = vmatprep.subr.mxu0 0.0
        %4230 = vmatpush1.msra.mxu0 0.0
        %4231 = vmatprep.subr.mxu0 0.0
        %4232 = vmatpush1.msra.mxu0 0.0
        %4233 = vmatprep.subr.mxu0 0.0
        %4234 = vmatpush1.msra.mxu0 0.0
        %4235 = vmatprep.subr.mxu0 0.0
        %4236 = vmatpush1.msra.mxu0 0.0
        %4237 = vmatprep.subr.mxu0 0.0
        %4238 = vmatpush1.msra.mxu0 0.0
        %4239 = vmatprep.subr.mxu0 0.0
        %4240 = vmatpush1.msra.mxu0 0.0
        %4241 = vmatprep.subr.mxu0 0.0
        %4242 = vmatpush1.msra.mxu0 0.0
        %4243 = vmatprep.subr.mxu0 0.0
        %4244 = vmatpush1.msra.mxu0 0.0
        %4245 = vmatprep.subr.mxu0 0.0
        %4246 = vmatpush1.msra.mxu0 0.0
        %4247 = vmatprep.subr.mxu0 0.0
        %4248 = vmatpush1.msra.mxu0 0.0
        %4249 = vmatprep.subr.mxu0 0.0
        %4250 = vmatpush1.msra.mxu0 0.0
        %4251 = vmatprep.subr.mxu0 0.0
        %4252 = vmatpush1.msra.mxu0 0.0
        %4253 = vmatprep.subr.mxu0 0.0
        %4254 = vmatpush1.msra.mxu0 0.0
        %4255 = vmatprep.subr.mxu0 0.0
        %4256 = vmatpush1.msra.mxu0 0.0
        %4257 = vmatprep.subr.mxu0 0.0
        %4258 = vmatpush1.msra.mxu0 0.0
        %4259 = vmatprep.subr.mxu0 0.0
        %4260 = vmatpush1.msra.mxu0 0.0
        %4261 = vmatprep.subr.mxu0 0.0
        %4262 = vmatpush1.msra.mxu0 0.0
        %4263 = vmatprep.subr.mxu0 0.0
        %4264 = vmatpush1.msra.mxu0 0.0
        %4265 = vmatprep.subr.mxu0 0.0
        %4266 = vmatpush1.msra.mxu0 0.0
        %4267 = vmatprep.subr.mxu0 0.0
        %4268 = vmatpush1.msra.mxu0 0.0
        %4269 = vmatprep.subr.mxu0 0.0
        %4270 = vmatpush1.msra.mxu0 0.0
        %4271 = vmatprep.subr.mxu0 0.0
        %4272 = vmatpush1.msra.mxu0 0.0
        %4273 = vmatprep.subr.mxu0 0.0
        %4274 = vmatpush1.msra.mxu0 0.0
        %4275 = vmatprep.subr.mxu0 0.0
        %4276 = vmatpush1.msra.mxu0 0.0
        %4277 = vmatprep.subr.mxu0 0.0
        %4278 = vmatpush1.msra.mxu0 0.0
        %4279 = vmatprep.mubr.f32.mxu0 0.0
        %4280 = vmatmul.mubr.f32.gmra.mrb[0].mxu0 %v4210
        %v4281 = vpop.f32.mrb[0].mxu0
        %v4282 = vadd.f32 0.0, %v4281
        %v4283 = vpop.f32.mrb[0].mxu0
        %4284 = vmatprep.mubr.f32.mxu0 0.0
        %4285 = vmatmul.mubr.f32.gmra.mrb[0].mxu0 %v4213
        %v4286 = vpop.f32.mrb[0].mxu0
        %v4287 = vadd.f32 0.0, %v4286
        %v4288 = vpop.f32.mrb[0].mxu0
        %4289 = vdwg.mxu0
        %v4291 = vsel %vm699, %v4021, 0
        %v4294 = vsel %vm699, %v4026, 0
        %v4297 = vsel %vm699, %v4108, 0
        %v4300 = vsel %vm699, %v4113, 0
        %v4303 = vsel %vm699, %v4195, 0
        %v4306 = vsel %vm699, %v4200, 0
        %v4309 = vsel %vm699, %v4282, 0
        %v4312 = vsel %vm699, %v4287, 0
        %4314 = vmatprep.subr.mxu0 0.0
        %4315 = vmatpush1.msra.mxu0 %v540
        %4316 = vmatprep.subr.mxu0 0.0
        %4317 = vmatpush1.msra.mxu0 0.0
        %4318 = vmatprep.subr.mxu0 0.0
        %4319 = vmatpush1.msra.mxu0 0.0
        %4320 = vmatprep.subr.mxu0 0.0
        %4321 = vmatpush1.msra.mxu0 0.0
        %4322 = vmatprep.subr.mxu0 0.0
        %4323 = vmatpush1.msra.mxu0 0.0
        %4324 = vmatprep.subr.mxu0 0.0
        %4325 = vmatpush1.msra.mxu0 0.0
        %4326 = vmatprep.subr.mxu0 0.0
        %4327 = vmatpush1.msra.mxu0 0.0
        %4328 = vmatprep.subr.mxu0 0.0
        %4329 = vmatpush1.msra.mxu0 0.0
        %4330 = vmatprep.subr.mxu0 0.0
        %4331 = vmatpush1.msra.mxu0 0.0
        %4332 = vmatprep.subr.mxu0 0.0
        %4333 = vmatpush1.msra.mxu0 0.0
        %4334 = vmatprep.subr.mxu0 0.0
        %4335 = vmatpush1.msra.mxu0 0.0
        %4336 = vmatprep.subr.mxu0 0.0
        %4337 = vmatpush1.msra.mxu0 0.0
        %4338 = vmatprep.subr.mxu0 0.0
        %4339 = vmatpush1.msra.mxu0 0.0
        %4340 = vmatprep.subr.mxu0 0.0
        %4341 = vmatpush1.msra.mxu0 0.0
        %4342 = vmatprep.subr.mxu0 0.0
        %4343 = vmatpush1.msra.mxu0 0.0
        %4344 = vmatprep.subr.mxu0 0.0
        %4345 = vmatpush1.msra.mxu0 0.0
        %4346 = vmatprep.subr.mxu0 0.0
        %4347 = vmatpush1.msra.mxu0 0.0
        %4348 = vmatprep.subr.mxu0 0.0
        %4349 = vmatpush1.msra.mxu0 0.0
        %4350 = vmatprep.subr.mxu0 0.0
        %4351 = vmatpush1.msra.mxu0 0.0
        %4352 = vmatprep.subr.mxu0 0.0
        %4353 = vmatpush1.msra.mxu0 0.0
        %4354 = vmatprep.subr.mxu0 0.0
        %4355 = vmatpush1.msra.mxu0 0.0
        %4356 = vmatprep.subr.mxu0 0.0
        %4357 = vmatpush1.msra.mxu0 0.0
        %4358 = vmatprep.subr.mxu0 0.0
        %4359 = vmatpush1.msra.mxu0 0.0
        %4360 = vmatprep.subr.mxu0 0.0
        %4361 = vmatpush1.msra.mxu0 0.0
        %4362 = vmatprep.subr.mxu0 0.0
        %4363 = vmatpush1.msra.mxu0 0.0
        %4364 = vmatprep.subr.mxu0 0.0
        %4365 = vmatpush1.msra.mxu0 0.0
        %4366 = vmatprep.subr.mxu0 0.0
        %4367 = vmatpush1.msra.mxu0 0.0
        %4368 = vmatprep.subr.mxu0 0.0
        %4369 = vmatpush1.msra.mxu0 0.0
        %4370 = vmatprep.subr.mxu0 0.0
        %4371 = vmatpush1.msra.mxu0 0.0
        %4372 = vmatprep.subr.mxu0 0.0
        %4373 = vmatpush1.msra.mxu0 0.0
        %4374 = vmatprep.subr.mxu0 0.0
        %4375 = vmatpush1.msra.mxu0 0.0
        %4376 = vmatprep.subr.mxu0 0.0
        %4377 = vmatpush1.msra.mxu0 0.0
        %4378 = vmatprep.mubr.f32.mxu0 0.0
        %4379 = vmatmul.mubr.f32.gmra.mrb[0].mxu0 %v4291
        %v4380 = vpop.f32.mrb[0].mxu0
        %v4381 = vadd.f32 0.0, %v4380
        %v4382 = vpop.f32.mrb[0].mxu0
        %4383 = vmatprep.mubr.f32.mxu0 0.0
        %4384 = vmatmul.mubr.f32.gmra.mrb[0].mxu0 %v4294
        %v4385 = vpop.f32.mrb[0].mxu0
        %v4386 = vadd.f32 0.0, %v4385
        %v4387 = vpop.f32.mrb[0].mxu0
        %4388 = vmatprep.mubr.f32.mxu0 0.0
        %4389 = vmatmul.mubr.f32.gmra.mrb[0].mxu0 %v4297
        %v4390 = vpop.f32.mrb[0].mxu0
        %v4391 = vadd.f32 0.0, %v4390
        %v4392 = vpop.f32.mrb[0].mxu0
        %4393 = vmatprep.mubr.f32.mxu0 0.0
        %4394 = vmatmul.mubr.f32.gmra.mrb[0].mxu0 %v4300
        %v4395 = vpop.f32.mrb[0].mxu0
        %v4396 = vadd.f32 0.0, %v4395
        %v4397 = vpop.f32.mrb[0].mxu0
        %4398 = vmatprep.mubr.f32.mxu0 0.0
        %4399 = vmatmul.mubr.f32.gmra.mrb[0].mxu0 %v4303
        %v4400 = vpop.f32.mrb[0].mxu0
        %v4401 = vadd.f32 0.0, %v4400
        %v4402 = vpop.f32.mrb[0].mxu0
        %4403 = vmatprep.mubr.f32.mxu0 0.0
        %4404 = vmatmul.mubr.f32.gmra.mrb[0].mxu0 %v4306
        %v4405 = vpop.f32.mrb[0].mxu0
        %v4406 = vadd.f32 0.0, %v4405
        %v4407 = vpop.f32.mrb[0].mxu0
        %4408 = vmatprep.mubr.f32.mxu0 0.0
        %4409 = vmatmul.mubr.f32.gmra.mrb[0].mxu0 %v4309
        %v4410 = vpop.f32.mrb[0].mxu0
        %v4411 = vadd.f32 0.0, %v4410
        %v4412 = vpop.f32.mrb[0].mxu0
        %4413 = vmatprep.mubr.f32.mxu0 0.0
        %4414 = vmatmul.mubr.f32.gmra.mrb[0].mxu0 %v4312
        %v4415 = vpop.f32.mrb[0].mxu0
        %v4416 = vadd.f32 0.0, %v4415
        %v4417 = vpop.f32.mrb[0].mxu0
        %4418 = vdwg.mxu0
        %v4419 = vadd.f32 %v3482, %v4381
        %v4420 = vadd.f32 %v3483, %v4386
        %v4421 = vadd.f32 %v3484, %v4391
        %v4422 = vadd.f32 %v3485, %v4396
        %v4423 = vadd.f32 %v3486, %v4401
        %v4424 = vadd.f32 %v3487, %v4406
        %v4425 = vadd.f32 %v3488, %v4411
        %v4426 = vadd.f32 %v3489, %v4416
        %v4427 = vadd.f32 %v389, %v4419
        %v4428 = vadd.f32 %v390, %v4420
        %v4429 = vadd.f32 %v391, %v4421
        %v4430 = vadd.f32 %v392, %v4422
        %v4431 = vadd.f32 %v393, %v4423
        %v4432 = vadd.f32 %v394, %v4424
        %v4433 = vadd.f32 %v395, %v4425
        %v4434 = vadd.f32 %v396, %v4426
        %v4435 = vld [vmem:[%s7] sm:$0x1]
        %v4437 = vlaneseq
        %v4438 = vshrl.u32 %v4437, 7
        %v4439 = vsub.s32 0, %v4438
        %v4440 = vrot.slane %v4435, %v4439
        %v4442 = vadd.f32 %v4427, %v4440
        %v4443 = vadd.f32 %v4428, %v4440
        %v4444 = vadd.f32 %v4429, %v4440
        %v4445 = vadd.f32 %v4430, %v4440
        %v4446 = vadd.f32 %v4431, %v4440
        %v4447 = vadd.f32 %v4432, %v4440
        %v4448 = vadd.f32 %v4433, %v4440
        %v4449 = vadd.f32 %v4434, %v4440
        %4450 = vst.msk [vmem:[%s386] sm:$0xff] %vm397, %v4442
        %4451 = vst.msk [vmem:[%s386 + $0x8] sm:$0xff] %vm397, %v4443
        %4452 = vst.msk [vmem:[%s386 + $0x10] sm:$0xff] %vm397, %v4444
        %4453 = vst.msk [vmem:[%s386 + $0x18] sm:$0xff] %vm397, %v4445
        %4454 = vst.msk [vmem:[%s386 + $0x20] sm:$0xff] %vm397, %v4446
        %4455 = vst.msk [vmem:[%s386 + $0x28] sm:$0xff] %vm397, %v4447
        %4456 = vst.msk [vmem:[%s386 + $0x30] sm:$0xff] %vm397, %v4448
        %4457 = vst.msk [vmem:[%s386 + $0x38] sm:$0xff] %vm397, %v4449
        %s4458 = sand.u32 %s224, 1
        %s4459 = scalar_lea.sflag [#allocation4], %s4458
        %s4460 = sand.u32 %s224, 1
        %s4461 = smul.addr %s4460, 64
        %s4462 = scalar_lea.vmem [#allocation10], %s4461
        // Predicated region
        $region69: #{tpu_custom_call.1} parent=51 // pred_check
          %p4463 = pneg %p234
        $region70: #{tpu_custom_call.1} parent=51 // pred_check_branch
          %4465 = sbr.rel (%p4463) target = $region72
        $region71: #{tpu_custom_call.1} parent=51 // pred_region
          %s4466 = smul.u32 4, %s32
          %s4468 = ssub.s32 1024, 1024
          %4469 = vsyncadd %s4459, %s4468
          %s4470 = smul.addr %s4466, 2
          %s4471 = smul.addr %s31, 8
          %s4472 = sadd.s32 %s4470, %s4471
          %s4473 = smul.addr %s4472, 128
          %s4474 = scalar_lea.hbm %s8, %s4473
          %s4475 = sshll.u32 %s4462, 4
          %s4476 = int_to_ptr.vmem [resolvable:$true] %s4475
          %4481 = dma.vmem_to_hbm [thread:$0]  %s4476, 1024, %s4474, %s4459, 128, 128, 8
        $region72: #{tpu_custom_call.1} parent=51 // pred_fallthru
          _
      $region52: #{tpu_custom_call.1} parent=5 // pred_fallthru
        _
      %p4482 = scmp.le.s32.totalorder 2, %s22
      // Predicated region
      $region73: #{tpu_custom_call.1} parent=5 // pred_check
        %p4483 = pneg %p4482
      $region74: #{tpu_custom_call.1} parent=5 // pred_check_branch
        %4485 = sbr.rel (%p4483) target = $region76
      $region75: #{tpu_custom_call.1} parent=5 // pred_region
        %s4486 = ssub.s32 %s22, 2
        // Predicated region
        $region77: #{tpu_custom_call.1} parent=75 // pred_check
          %p4487 = pneg %p240
        $region78: #{tpu_custom_call.1} parent=75 // pred_check_branch
          %4489 = sbr.rel (%p4487) target = $region80
        $region79: #{tpu_custom_call.1} parent=75 // pred_region
          %s4490 = sand.u32 %s225, 1
          %s4491 = scalar_lea.sflag [#allocation4], %s4490
          %s4492 = sand.u32 %s225, 1
          %s4493 = smul.addr %s4492, 64
          %s4494 = scalar_lea.vmem [#allocation10], %s4493
          %4495 = dma.done %s4491, 1024
        $region80: #{tpu_custom_call.1} parent=75 // pred_fallthru
          _
      $region76: #{tpu_custom_call.1} parent=5 // pred_fallthru
        _
    $region6: #{tpu_custom_call.1} parent=1 // loop_footer
      %s26 = sadd.s32 1, %s22
    $region7: #{tpu_custom_call.1} parent=1 // loop_footer_branch
      %21 = sbr.rel target = $region3
    $region8: #{tpu_custom_call.1} parent=1 // loop_exit
      _
    %4496 = vsyncpa [#allocation3], 1
    %s4497 = scalar_lea.sflag [#allocation3], 1
    %4498 = vsyncpa %s4497, 1
    %4499 = vsyncpa [#allocation6], 1
    %4500 = vsyncpa [#allocation9], 1
    %4501 = vsyncpa [#allocation4], 1
    %s4502 = scalar_lea.sflag [#allocation4], 1
    %4503 = vsyncpa %s4502, 1

</llo_original>
